<compile_context>
chip_gen: v6e
topology: v6e:2x2x1
jax: 0.10.0
libtpu: 0.0.40
codegen_flags: <defaults>
</compile_context>

<pallas_src>
import functools

import jax
import jax.numpy as jnp
from jax.experimental import pallas as pl
from jax.experimental.pallas import tpu as pltpu

EPS = 1e-5


# --------------------------------------------------------------------------
# Kernels
# --------------------------------------------------------------------------
def _conv3x3_kernel(x_ref, halo_ref, w_ref, scale_ref, shift_ref,
                    y_ref, stat_ref, *, W, apply_pre):
    """3x3 SAME conv over one chunk of T image rows (P = T*W pixels).

    x_ref    : (P, Cin)   f32  center pixels of this chunk (row-major)
    halo_ref : (2W, Cin)  f32  image row above (first W) / below (last W),
                               zeros at image edges; pre-activated by wrapper
    w_ref    : (3, 3*Cin, 64) bf16  per-dy-group weight chunks (HWIO reshaped)
    scale/shift : (1, 64) f32  previous BN scale/shift (fused pre-activation)
    y_ref    : (P, 64)    f32  raw conv output (pre-BN)
    stat_ref : (8, 128)   f32  per-tile [sum | sumsq] partials (rows identical)
    """
    P, C = x_ref.shape
    Cout = y_ref.shape[-1]

    x = x_ref[...]
    if apply_pre:
        # previous layer's BN + ReLU fused into this pass (center rows only;
        # halo rows were pre-activated -- or zeroed -- by the wrapper).
        x = jnp.maximum(x * scale_ref[...] + shift_ref[...], 0.0)

    # Rows: [row above | T center rows | row below]  ->  (P + 2W, Cin)
    xin = jnp.concatenate([halo_ref[:W, :], x, halo_ref[W:, :]], axis=0)

    # dx border-validity masks (pixel position within an image row).
    col = jax.lax.broadcasted_iota(jnp.int32, (P, 1), 0) % W
    ok_left = col >= 1            # dx = -1 valid
    ok_right = col < (W - 1)      # dx = +1 valid

    acc = jnp.zeros((P, Cout), jnp.float32)
    for g, dy in enumerate((-1, 0, 1)):
        # dy handled by a cheap leading-dim slice of the halo'd chunk.
        base = xin[(dy + 1) * W:(dy + 1) * W + P, :]          # (P, Cin)
        taps = []
        for dx in (-1, 0, 1):
            if dx == 0:
                t = base
            else:
                # out[p] = base[p + dx]; out-of-row wraps are zeroed below.
                t = pltpu.roll(base, shift=(-dx) % P, axis=0)
                t = jnp.where(ok_right if dx == 1 else ok_left, t, 0.0)
            taps.append(t.astype(jnp.bfloat16))               # bf16 before concat
        slab = jnp.concatenate(taps, axis=-1)                 # (P, 3*Cin) bf16 K-chunk
        acc = acc + jnp.dot(slab, w_ref[g], preferred_element_type=jnp.float32)

    y_ref[...] = acc

    # BN partials as one MXU reduction (128-lane aligned, 8 identical rows so
    # the output block stays (8, 128)).
    yy = jnp.concatenate([acc, acc * acc], axis=-1)           # (P, 2*Cout)
    stat_ref[...] = jnp.dot(jnp.ones((8, P), jnp.float32), yy,
                            preferred_element_type=jnp.float32)


def _bn_add_relu_kernel(z_ref, x_ref, scale_ref, shift_ref, o_ref):
    """out = relu(bn2(z) + shortcut) on a lane-dense (rows, 128) view."""
    o_ref[...] = jnp.maximum(
        z_ref[...] * scale_ref[...] + shift_ref[...] + x_ref[...], 0.0)


# --------------------------------------------------------------------------
# pallas_call builders
# --------------------------------------------------------------------------
def _conv_vmem_limit(P, W, C, Cout):
    blocks = 2 * (P * C * 4 + P * Cout * 4 + 2 * W * C * 4
                  + 8 * 2 * Cout * 4 + 9 * C * Cout * 2 + 4 * Cout * 4)
    temps = ((P + 2 * W) * C * 4 + P * C * 4 + P * 3 * C * 2
             + P * Cout * 4 + P * 2 * Cout * 4)
    need = blocks + temps
    return int(min(48 * 2 ** 20, max(16 * 2 ** 20, 2 * need)))


def _conv_pass(x_mc, halo, w3, scale, shift, *, T, W, apply_pre):
    M, C = x_mc.shape
    Cout = w3.shape[-1]
    P = T * W
    n_tiles = M // P
    assert halo.shape == (n_tiles * 2 * W, C)

    kernel = functools.partial(_conv3x3_kernel, W=W, apply_pre=apply_pre)
    cost = pl.CostEstimate(
        flops=2 * M * 9 * C * Cout + 2 * M * 2 * Cout * 8,
        transcendentals=0,
        bytes_accessed=M * C * 4 + M * Cout * 4 + halo.size * 4 + w3.size * 2)

    y, stats = pl.pallas_call(
        kernel,
        out_shape=(jax.ShapeDtypeStruct((M, Cout), jnp.float32),
                   jax.ShapeDtypeStruct((n_tiles * 8, 2 * Cout), jnp.float32)),
        grid=(n_tiles,),
        in_specs=[
            pl.BlockSpec((P, C), lambda i: (i, 0)),            # center rows (pipelined)
            pl.BlockSpec((2 * W, C), lambda i: (i, 0)),        # halo rows   (pipelined)
            pl.BlockSpec(w3.shape, lambda i: (0, 0, 0)),       # weights     (resident)
            pl.BlockSpec((1, Cout), lambda i: (0, 0)),         # pre-BN scale
            pl.BlockSpec((1, Cout), lambda i: (0, 0)),         # pre-BN shift
        ],
        out_specs=(pl.BlockSpec((P, Cout), lambda i: (i, 0)),
                   pl.BlockSpec((8, 2 * Cout), lambda i: (i, 0))),
        compiler_params=pltpu.CompilerParams(
            dimension_semantics=("parallel",),
            vmem_limit_bytes=_conv_vmem_limit(P, W, C, Cout)),
        cost_estimate=cost,
    )(x_mc, halo, w3, scale, shift)
    return y, stats


def _bn_add_relu_pass(z2, x2, scale2, shift2, *, rows_per_tile):
    R, L = z2.shape
    n_tiles = R // rows_per_tile
    cost = pl.CostEstimate(flops=3 * R * L, transcendentals=0,
                           bytes_accessed=3 * R * L * 4)
    return pl.pallas_call(
        _bn_add_relu_kernel,
        out_shape=jax.ShapeDtypeStruct((R, L), jnp.float32),
        grid=(n_tiles,),
        in_specs=[pl.BlockSpec((rows_per_tile, L), lambda i: (i, 0)),
                  pl.BlockSpec((rows_per_tile, L), lambda i: (i, 0)),
                  pl.BlockSpec((1, L), lambda i: (0, 0)),
                  pl.BlockSpec((1, L), lambda i: (0, 0))],
        out_specs=pl.BlockSpec((rows_per_tile, L), lambda i: (i, 0)),
        compiler_params=pltpu.CompilerParams(
            dimension_semantics=("parallel",),
            vmem_limit_bytes=int(min(48 * 2 ** 20,
                                     max(16 * 2 ** 20, 12 * rows_per_tile * L * 4)))),
        cost_estimate=cost,
    )(z2, x2, scale2, shift2)


# --------------------------------------------------------------------------
# Wrapper-side glue (tiny per-channel / halo math)
# --------------------------------------------------------------------------
def _pick_tile_rows(H, W, max_pixels=2048):
    """Largest T | H with (T*W) % 16 == 0 and T*W <= max_pixels (fallback H)."""
    best = None
    for t in range(1, H + 1):
        if H % t == 0 and (t * W) % 16 == 0 and t * W <= max_pixels:
            best = t
    return best if best is not None else H


def _build_halos(img, T, scale=None, shift=None):
    """Image row above/below each T-row chunk (zeros at image edges).

    Returns a (N*nc*2*W, C) array: per chunk, first W rows = row above, last W
    rows = row below.  If scale/shift are given, real halo rows are
    pre-activated with relu(x*scale + shift); edge rows stay exactly zero
    (matching the conv's zero padding applied AFTER bn+relu)."""
    N, H, W, C = img.shape
    nc = H // T
    zero = jnp.zeros((N, 1, W, C), jnp.float32)

    def pre(v):
        if scale is None:
            return v.astype(jnp.float32)
        return jnp.maximum(v * scale.reshape(1, 1, 1, -1)
                           + shift.reshape(1, 1, 1, -1), 0.0)

    above = jnp.concatenate([zero, pre(img[:, T - 1:H - 1:T])], axis=1)   # (N, nc, W, C)
    below = jnp.concatenate([pre(img[:, T:H:T]), zero], axis=1)           # (N, nc, W, C)
    return jnp.stack([above, below], axis=2).reshape(N * nc * 2 * W, C)


def _bn_scale_shift(stats, gamma, beta, m):
    """Fold per-tile [sum | sumsq] partials into training-mode BN scale/shift."""
    s = stats.reshape(-1, 8, stats.shape[-1])[:, 0, :].sum(axis=0)        # (2*C,)
    c = s.shape[0] // 2
    mean = s[:c] / m
    var = jnp.maximum(s[c:] / m - mean * mean, 0.0)   # clamp: one-pass var can dip < 0
    scale = gamma.reshape(-1) * jax.lax.rsqrt(var + EPS)
    shift = beta.reshape(-1) - mean * scale
    return scale.reshape(1, -1), shift.reshape(1, -1)


@functools.partial(jax.jit, static_argnames=("tile_rows",))
def resudial_block(x_nchw, params, tile_rows=None):
    """NCHW (PyTorch convention) in, NCHW out.  Forward of Resudial_Block with
    freshly-constructed BatchNorm2d in training mode (batch stats, eps=1e-5)."""
    N, C, H, W = x_nchw.shape
    assert C == 64, "residual add requires in_c == 64 (same as the torch module)"
    M = N * H * W
    T = tile_rows if tile_rows is not None else _pick_tile_rows(H, W)
    assert H % T == 0, "tile_rows must divide H"
    P = T * W
    assert P % 16 == 0 and (2 * W) % 8 == 0, "need (tile_rows*W)%16==0 and W%4==0"

    x_nhwc = jnp.transpose(x_nchw, (0, 2, 3, 1)).astype(jnp.float32)      # (N,H,W,C)
    x_mc = x_nhwc.reshape(M, C)

    # Weights HWIO (3,3,Cin,64) -> per-dy-group (3, 3*Cin, 64) bf16 MXU operands.
    w1 = params["w1"].astype(jnp.bfloat16).reshape(3, 3 * C, 64)
    w2 = params["w2"].astype(jnp.bfloat16).reshape(3, 3 * 64, 64)
    one = jnp.ones((1, 64), jnp.float32)
    zero = jnp.zeros((1, 64), jnp.float32)
    # NOTE: conv biases b1/b2 are intentionally NOT used: a per-channel
    # constant is exactly cancelled by the BN batch-mean subtraction.

    # ---- pass 1: conv1 + bn1 partials --------------------------------------
    halo1 = _build_halos(x_nhwc, T)
    y1, st1 = _conv_pass(x_mc, halo1, w1, one, zero, T=T, W=W, apply_pre=False)
    scale1, shift1 = _bn_scale_shift(st1, params["g1"], params["be1"], M)

    # ---- pass 2: bn1 + relu (fused) -> conv2 + bn2 partials ----------------
    halo2 = _build_halos(y1.reshape(N, H, W, 64), T, scale1, shift1)
    z, st2 = _conv_pass(y1, halo2, w2, scale1, shift1, T=T, W=W, apply_pre=True)
    scale2, shift2 = _bn_scale_shift(st2, params["g2"], params["be2"], M)

    # ---- pass 3: bn2 + residual + relu, lane-dense (M/2, 128) --------------
    out2 = _bn_add_relu_pass(z.reshape(M // 2, 128), x_mc.reshape(M // 2, 128),
                             jnp.tile(scale2, (1, 2)), jnp.tile(shift2, (1, 2)),
                             rows_per_tile=P // 2)

    out = out2.reshape(N, H, W, 64)
    return jnp.transpose(out, (0, 3, 1, 2))                               # back to NCHW


# --------------------------------------------------------------------------
# Pure-JAX reference & test
# --------------------------------------------------------------------------
def _ref_forward(x_nchw, params):
    """Reference via lax.conv (mirrors the bf16 MXU operand cast; includes the
    conv biases to demonstrate the BN bias-cancellation)."""
    dn = ("NHWC", "HWIO", "NHWC")
    x = jnp.transpose(x_nchw, (0, 2, 3, 1)).astype(jnp.float32)

    y = jax.lax.conv_general_dilated(
        x.astype(jnp.bfloat16), params["w1"].astype(jnp.bfloat16), (1, 1), "SAME",
        dimension_numbers=dn, preferred_element_type=jnp.float32) + params["b1"][0]
    m = y.mean(axis=(0, 1, 2))
    v = ((y - m) ** 2).mean(axis=(0, 1, 2))
    y = (y - m) * jax.lax.rsqrt(v + EPS) * params["g1"][0] + params["be1"][0]
    y = jnp.maximum(y, 0.0)

    z = jax.lax.conv_general_dilated(
        y.astype(jnp.bfloat16), params["w2"].astype(jnp.bfloat16), (1, 1), "SAME",
        dimension_numbers=dn, preferred_element_type=jnp.float32) + params["b2"][0]
    m2 = z.mean(axis=(0, 1, 2))
    v2 = ((z - m2) ** 2).mean(axis=(0, 1, 2))
    z = (z - m2) * jax.lax.rsqrt(v2 + EPS) * params["g2"][0] + params["be2"][0]
    z = jnp.maximum(z + x, 0.0)
    return jnp.transpose(z, (0, 3, 1, 2))


def _init_params(key, in_c=64, out_c=64):
    ks = jax.random.split(key, 6)
    w1 = jax.random.normal(ks[0], (3, 3, in_c, out_c), jnp.float32) * 0.05   # HWIO
    b1 = jax.random.normal(ks[1], (1, out_c), jnp.float32) * 0.05
    w2 = jax.random.normal(ks[2], (3, 3, out_c, out_c), jnp.float32) * 0.05
    b2 = jax.random.normal(ks[3], (1, out_c), jnp.float32) * 0.05
    g1 = 1.0 + 0.1 * jax.random.normal(ks[4], (1, out_c), jnp.float32)
    be1 = 0.1 * jax.random.normal(ks[5], (1, out_c), jnp.float32)
    g2 = jnp.ones((1, out_c), jnp.float32)
    be2 = jnp.zeros((1, out_c), jnp.float32)
    return dict(w1=w1, b1=b1, g1=g1, be1=be1, w2=w2, b2=b2, g2=g2, be2=be2)


if __name__ == "__main__":
    key = jax.random.PRNGKey(0)
    k_x, k_p = jax.random.split(key)

    N, C, H, W = 2, 64, 16, 16     # in_c must be 64 for the residual add
    x = jax.random.normal(k_x, (N, C, H, W), jnp.float32)
    params = _init_params(k_p, in_c=C, out_c=64)

    # tile_rows=8 -> 2 chunks per image: exercises interior halos and both
    # zero-padded image edges (production shapes use the auto tile picker).
    out = jax.block_until_ready(resudial_block(x, params, tile_rows=8))
    ref = jax.block_until_ready(_ref_forward(x, params))

    assert out.shape == (N, 64, H, W)
    max_err = float(jnp.max(jnp.abs(out - ref)))
    assert jnp.allclose(out, ref, atol=3e-3, rtol=3e-3), max_err

    print("KERNEL_OK")
</pallas_src>

<mosaic_0001>
module attributes {stable_mosaic.version = 11 : i64} {
  func.func @_bn_add_relu_kernel(%arg0: i32, %arg1: memref<64x128xf32, #tpu.memory_space<vmem>>, %arg2: memref<64x128xf32, #tpu.memory_space<vmem>>, %arg3: memref<1x128xf32, #tpu.memory_space<vmem>>, %arg4: memref<1x128xf32, #tpu.memory_space<vmem>>, %arg5: memref<64x128xf32, #tpu.memory_space<vmem>>) attributes {dimension_semantics = [#tpu.dimension_semantics<parallel>], iteration_bounds = array<i64: 4>, scalar_prefetch = 0 : i64, scratch_operands = 0 : i64, tpu.core_type = #tpu.core_type<tc>, window_params = [{transform_indices = @transform_0, window_bounds = array<i64: 64, 128>}, {transform_indices = @transform_1, window_bounds = array<i64: 64, 128>}, {pipeline_mode = #tpu.pipeline_mode<synchronous>, transform_indices = @transform_2, window_bounds = array<i64: 1, 128>}, {pipeline_mode = #tpu.pipeline_mode<synchronous>, transform_indices = @transform_3, window_bounds = array<i64: 1, 128>}, {transform_indices = @transform_4, window_bounds = array<i64: 64, 128>}]} {
    %c0 = arith.constant 0 : index
    %c0_0 = arith.constant 0 : index
    %0 = vector.load %arg1[%c0, %c0_0] : memref<64x128xf32, #tpu.memory_space<vmem>>, vector<64x128xf32>
    %c0_1 = arith.constant 0 : index
    %c0_2 = arith.constant 0 : index
    %1 = vector.load %arg3[%c0_1, %c0_2] : memref<1x128xf32, #tpu.memory_space<vmem>>, vector<1x128xf32>
    %2 = vector.broadcast %1 : vector<1x128xf32> to vector<64x128xf32>
    %3 = arith.mulf %0, %2 : vector<64x128xf32>
    %c0_3 = arith.constant 0 : index
    %c0_4 = arith.constant 0 : index
    %4 = vector.load %arg4[%c0_3, %c0_4] : memref<1x128xf32, #tpu.memory_space<vmem>>, vector<1x128xf32>
    %5 = vector.broadcast %4 : vector<1x128xf32> to vector<64x128xf32>
    %6 = arith.addf %3, %5 : vector<64x128xf32>
    %c0_5 = arith.constant 0 : index
    %c0_6 = arith.constant 0 : index
    %7 = vector.load %arg2[%c0_5, %c0_6] : memref<64x128xf32, #tpu.memory_space<vmem>>, vector<64x128xf32>
    %8 = arith.addf %6, %7 : vector<64x128xf32>
    %cst = arith.constant 0.000000e+00 : f32
    %9 = vector.broadcast %cst : f32 to vector<64x128xf32>
    %10 = arith.maximumf %8, %9 : vector<64x128xf32>
    %c0_7 = arith.constant 0 : index
    %c0_8 = arith.constant 0 : index
    %11 = vector.load %arg5[%c0_7, %c0_8] : memref<64x128xf32, #tpu.memory_space<vmem>>, vector<64x128xf32>
    tpu.vector_store %arg5[%c0_7, %c0_8], %10 {strides = array<i32>} : memref<64x128xf32, #tpu.memory_space<vmem>>, vector<64x128xf32>,
    return
  }
  func.func @transform_0(%arg0: i32) -> (i32, i32) {
    %c0_i32 = arith.constant 0 : i32
    %c0_i32_0 = arith.constant 0 : i32
    return %arg0, %c0_i32 : i32, i32
  }
  func.func @transform_1(%arg0: i32) -> (i32, i32) {
    %c0_i32 = arith.constant 0 : i32
    %c0_i32_0 = arith.constant 0 : i32
    return %arg0, %c0_i32 : i32, i32
  }
  func.func @transform_2(%arg0: i32) -> (i32, i32) {
    %c0_i32 = arith.constant 0 : i32
    %c0_i32_0 = arith.constant 0 : i32
    %c0_i32_1 = arith.constant 0 : i32
    return %c0_i32, %c0_i32_0 : i32, i32
  }
  func.func @transform_3(%arg0: i32) -> (i32, i32) {
    %c0_i32 = arith.constant 0 : i32
    %c0_i32_0 = arith.constant 0 : i32
    %c0_i32_1 = arith.constant 0 : i32
    return %c0_i32, %c0_i32_0 : i32, i32
  }
  func.func @transform_4(%arg0: i32) -> (i32, i32) {
    %c0_i32 = arith.constant 0 : i32
    %c0_i32_0 = arith.constant 0 : i32
    return %arg0, %c0_i32 : i32, i32
  }
}

module attributes {stable_mosaic.version = 11 : i64} {
  func.func @_conv3x3_kernel(%arg0: i32, %arg1: memref<128x64xf32, #tpu.memory_space<vmem>>, %arg2: memref<32x64xf32, #tpu.memory_space<vmem>>, %arg3: memref<3x192x64xbf16, #tpu.memory_space<vmem>>, %arg4: memref<1x64xf32, #tpu.memory_space<vmem>>, %arg5: memref<1x64xf32, #tpu.memory_space<vmem>>, %arg6: memref<128x64xf32, #tpu.memory_space<vmem>>, %arg7: memref<8x128xf32, #tpu.memory_space<vmem>>) attributes {dimension_semantics = [#tpu.dimension_semantics<parallel>], iteration_bounds = array<i64: 4>, scalar_prefetch = 0 : i64, scratch_operands = 0 : i64, tpu.core_type = #tpu.core_type<tc>, window_params = [{transform_indices = @transform_0, window_bounds = array<i64: 128, 64>}, {transform_indices = @transform_1, window_bounds = array<i64: 32, 64>}, {pipeline_mode = #tpu.pipeline_mode<synchronous>, transform_indices = @transform_2, window_bounds = array<i64: 3, 192, 64>}, {pipeline_mode = #tpu.pipeline_mode<synchronous>, transform_indices = @transform_3, window_bounds = array<i64: 1, 64>}, {pipeline_mode = #tpu.pipeline_mode<synchronous>, transform_indices = @transform_4, window_bounds = array<i64: 1, 64>}, {transform_indices = @transform_5, window_bounds = array<i64: 128, 64>}, {transform_indices = @transform_6, window_bounds = array<i64: 8, 128>}]} {
    %c0 = arith.constant 0 : index
    %c0_0 = arith.constant 0 : index
    %0 = vector.load %arg1[%c0, %c0_0] : memref<128x64xf32, #tpu.memory_space<vmem>>, vector<128x64xf32>
    %c0_1 = arith.constant 0 : index
    %c0_2 = arith.constant 0 : index
    %1 = vector.load %arg2[%c0_1, %c0_2] : memref<32x64xf32, #tpu.memory_space<vmem>>, vector<16x64xf32>
    %c16 = arith.constant 16 : index
    %c0_3 = arith.constant 0 : index
    %2 = vector.load %arg2[%c16, %c0_3] : memref<32x64xf32, #tpu.memory_space<vmem>>, vector<16x64xf32>
    %3 = tpu.concatenate %1, %0, %2 in 0 : vector<16x64xf32>, vector<128x64xf32>, vector<16x64xf32> -> vector<160x64xf32>
    %4 = tpu.iota {dimensions = array<i32: 0>} : vector<128x1xi32>
    %c16_i32 = arith.constant 16 : i32
    %c0_i32 = arith.constant 0 : i32
    %5 = arith.cmpi eq, %c16_i32, %c0_i32 : i32
    %c1_i32 = arith.constant 1 : i32
    %6 = arith.select %5, %c1_i32, %c16_i32 : i32
    %7 = vector.broadcast %6 : i32 to vector<128x1xi32>
    %8 = arith.remsi %4, %7 : vector<128x1xi32>
    %c0_i32_4 = arith.constant 0 : i32
    %9 = vector.broadcast %c0_i32_4 : i32 to vector<128x1xi32>
    %10 = arith.cmpi ne, %8, %9 : vector<128x1xi32>
    %c0_i32_5 = arith.constant 0 : i32
    %11 = vector.broadcast %c0_i32_5 : i32 to vector<128x1xi32>
    %12 = arith.cmpi slt, %8, %11 : vector<128x1xi32>
    %c0_i32_6 = arith.constant 0 : i32
    %13 = arith.cmpi slt, %6, %c0_i32_6 : i32
    %14 = vector.broadcast %13 : i1 to vector<128x1xi1>
    %15 = vector.broadcast %14 : vector<128x1xi1> to vector<128x1xi1>
    %16 = arith.xori %12, %15 : vector<128x1xi1>
    %17 = arith.andi %16, %10 : vector<128x1xi1>
    %18 = vector.broadcast %6 : i32 to vector<128x1xi32>
    %19 = arith.addi %8, %18 : vector<128x1xi32>
    %20 = arith.select %17, %19, %8 : vector<128x1xi1>, vector<128x1xi32>
    %c1_i32_7 = arith.constant 1 : i32
    %21 = vector.broadcast %c1_i32_7 : i32 to vector<128x1xi32>
    %22 = arith.cmpi sge, %20, %21 : vector<128x1xi32>
    %c15_i32 = arith.constant 15 : i32
    %23 = vector.broadcast %c15_i32 : i32 to vector<128x1xi32>
    %24 = arith.cmpi slt, %20, %23 : vector<128x1xi32>
    %cst = arith.constant 0.000000e+00 : f32
    %25 = vector.broadcast %cst : f32 to vector<128x64xf32>
    %26 = vector.extract_strided_slice %3 {offsets = [0, 0], sizes = [128, 64], strides = [1, 1]} : vector<160x64xf32> to vector<128x64xf32>
    %c1_i32_8 = arith.constant 1 : i32
    %27 = tpu.dynamic_rotate %26 by %c1_i32_8 dim 0 : vector<128x64xf32>, i32 -> vector<128x64xf32>
    %cst_9 = arith.constant 0.000000e+00 : f32
    %28 = vector.shape_cast %22 : vector<128x1xi1> to vector<128x1xi1>
    %29 = vector.broadcast %28 : vector<128x1xi1> to vector<128x64xi1>
    %30 = vector.broadcast %cst_9 : f32 to vector<128x64xf32>
    %31 = arith.select %29, %27, %30 : vector<128x64xi1>, vector<128x64xf32>
    %32 = arith.truncf %31 : vector<128x64xf32> to vector<128x64xbf16>
    %33 = arith.truncf %26 : vector<128x64xf32> to vector<128x64xbf16>
    %c127_i32 = arith.constant 127 : i32
    %34 = tpu.dynamic_rotate %26 by %c127_i32 dim 0 : vector<128x64xf32>, i32 -> vector<128x64xf32>
    %cst_10 = arith.constant 0.000000e+00 : f32
    %35 = vector.shape_cast %24 : vector<128x1xi1> to vector<128x1xi1>
    %36 = vector.broadcast %35 : vector<128x1xi1> to vector<128x64xi1>
    %37 = vector.broadcast %cst_10 : f32 to vector<128x64xf32>
    %38 = arith.select %36, %34, %37 : vector<128x64xi1>, vector<128x64xf32>
    %39 = arith.truncf %38 : vector<128x64xf32> to vector<128x64xbf16>
    %40 = tpu.concatenate %32, %33, %39 in 1 : vector<128x64xbf16>, vector<128x64xbf16>, vector<128x64xbf16> -> vector<128x192xbf16>
    %c0_11 = arith.constant 0 : index
    %c0_12 = arith.constant 0 : index
    %c0_13 = arith.constant 0 : index
    %41 = vector.load %arg3[%c0_11, %c0_12, %c0_13] : memref<3x192x64xbf16, #tpu.memory_space<vmem>>, vector<1x192x64xbf16>
    %42 = vector.shape_cast %41 : vector<1x192x64xbf16> to vector<192x64xbf16>
    %cst_14 = arith.constant dense<0.000000e+00> : vector<128x64xf32>
    %43 = tpu.matmul %40, %42, %cst_14 {dimension_numbers = #tpu.dot_dimension_numbers<[1], [0], [0], [1], [0, 0, 1, 1], [], []>} : vector<128x192xbf16>, vector<192x64xbf16>, vector<128x64xf32> -> vector<128x64xf32>
    %44 = arith.addf %25, %43 : vector<128x64xf32>
    %45 = vector.extract_strided_slice %3 {offsets = [16, 0], sizes = [128, 64], strides = [1, 1]} : vector<160x64xf32> to vector<128x64xf32>
    %c1_i32_15 = arith.constant 1 : i32
    %46 = tpu.dynamic_rotate %45 by %c1_i32_15 dim 0 : vector<128x64xf32>, i32 -> vector<128x64xf32>
    %cst_16 = arith.constant 0.000000e+00 : f32
    %47 = vector.shape_cast %22 : vector<128x1xi1> to vector<128x1xi1>
    %48 = vector.broadcast %47 : vector<128x1xi1> to vector<128x64xi1>
    %49 = vector.broadcast %cst_16 : f32 to vector<128x64xf32>
    %50 = arith.select %48, %46, %49 : vector<128x64xi1>, vector<128x64xf32>
    %51 = arith.truncf %50 : vector<128x64xf32> to vector<128x64xbf16>
    %52 = arith.truncf %45 : vector<128x64xf32> to vector<128x64xbf16>
    %c127_i32_17 = arith.constant 127 : i32
    %53 = tpu.dynamic_rotate %45 by %c127_i32_17 dim 0 : vector<128x64xf32>, i32 -> vector<128x64xf32>
    %cst_18 = arith.constant 0.000000e+00 : f32
    %54 = vector.shape_cast %24 : vector<128x1xi1> to vector<128x1xi1>
    %55 = vector.broadcast %54 : vector<128x1xi1> to vector<128x64xi1>
    %56 = vector.broadcast %cst_18 : f32 to vector<128x64xf32>
    %57 = arith.select %55, %53, %56 : vector<128x64xi1>, vector<128x64xf32>
    %58 = arith.truncf %57 : vector<128x64xf32> to vector<128x64xbf16>
    %59 = tpu.concatenate %51, %52, %58 in 1 : vector<128x64xbf16>, vector<128x64xbf16>, vector<128x64xbf16> -> vector<128x192xbf16>
    %c1 = arith.constant 1 : index
    %c0_19 = arith.constant 0 : index
    %c0_20 = arith.constant 0 : index
    %60 = vector.load %arg3[%c1, %c0_19, %c0_20] : memref<3x192x64xbf16, #tpu.memory_space<vmem>>, vector<1x192x64xbf16>
    %61 = vector.shape_cast %60 : vector<1x192x64xbf16> to vector<192x64xbf16>
    %cst_21 = arith.constant dense<0.000000e+00> : vector<128x64xf32>
    %62 = tpu.matmul %59, %61, %cst_21 {dimension_numbers = #tpu.dot_dimension_numbers<[1], [0], [0], [1], [0, 0, 1, 1], [], []>} : vector<128x192xbf16>, vector<192x64xbf16>, vector<128x64xf32> -> vector<128x64xf32>
    %63 = arith.addf %44, %62 : vector<128x64xf32>
    %64 = vector.extract_strided_slice %3 {offsets = [32, 0], sizes = [128, 64], strides = [1, 1]} : vector<160x64xf32> to vector<128x64xf32>
    %c1_i32_22 = arith.constant 1 : i32
    %65 = tpu.dynamic_rotate %64 by %c1_i32_22 dim 0 : vector<128x64xf32>, i32 -> vector<128x64xf32>
    %cst_23 = arith.constant 0.000000e+00 : f32
    %66 = vector.shape_cast %22 : vector<128x1xi1> to vector<128x1xi1>
    %67 = vector.broadcast %66 : vector<128x1xi1> to vector<128x64xi1>
    %68 = vector.broadcast %cst_23 : f32 to vector<128x64xf32>
    %69 = arith.select %67, %65, %68 : vector<128x64xi1>, vector<128x64xf32>
    %70 = arith.truncf %69 : vector<128x64xf32> to vector<128x64xbf16>
    %71 = arith.truncf %64 : vector<128x64xf32> to vector<128x64xbf16>
    %c127_i32_24 = arith.constant 127 : i32
    %72 = tpu.dynamic_rotate %64 by %c127_i32_24 dim 0 : vector<128x64xf32>, i32 -> vector<128x64xf32>
    %cst_25 = arith.constant 0.000000e+00 : f32
    %73 = vector.shape_cast %24 : vector<128x1xi1> to vector<128x1xi1>
    %74 = vector.broadcast %73 : vector<128x1xi1> to vector<128x64xi1>
    %75 = vector.broadcast %cst_25 : f32 to vector<128x64xf32>
    %76 = arith.select %74, %72, %75 : vector<128x64xi1>, vector<128x64xf32>
    %77 = arith.truncf %76 : vector<128x64xf32> to vector<128x64xbf16>
    %78 = tpu.concatenate %70, %71, %77 in 1 : vector<128x64xbf16>, vector<128x64xbf16>, vector<128x64xbf16> -> vector<128x192xbf16>
    %c2 = arith.constant 2 : index
    %c0_26 = arith.constant 0 : index
    %c0_27 = arith.constant 0 : index
    %79 = vector.load %arg3[%c2, %c0_26, %c0_27] : memref<3x192x64xbf16, #tpu.memory_space<vmem>>, vector<1x192x64xbf16>
    %80 = vector.shape_cast %79 : vector<1x192x64xbf16> to vector<192x64xbf16>
    %cst_28 = arith.constant dense<0.000000e+00> : vector<128x64xf32>
    %81 = tpu.matmul %78, %80, %cst_28 {dimension_numbers = #tpu.dot_dimension_numbers<[1], [0], [0], [1], [0, 0, 1, 1], [], []>} : vector<128x192xbf16>, vector<192x64xbf16>, vector<128x64xf32> -> vector<128x64xf32>
    %82 = arith.addf %63, %81 : vector<128x64xf32>
    %c0_29 = arith.constant 0 : index
    %c0_30 = arith.constant 0 : index
    %83 = vector.load %arg6[%c0_29, %c0_30] : memref<128x64xf32, #tpu.memory_space<vmem>>, vector<128x64xf32>
    tpu.vector_store %arg6[%c0_29, %c0_30], %82 {strides = array<i32>} : memref<128x64xf32, #tpu.memory_space<vmem>>, vector<128x64xf32>,
    %84 = arith.mulf %82, %82 : vector<128x64xf32>
    %85 = tpu.concatenate %82, %84 in 1 : vector<128x64xf32>, vector<128x64xf32> -> vector<128x128xf32>
    %cst_31 = arith.constant 1.000000e+00 : f32
    %86 = vector.broadcast %cst_31 : f32 to vector<8x128xf32>
    %cst_32 = arith.constant dense<0.000000e+00> : vector<8x128xf32>
    %87 = tpu.matmul %86, %85, %cst_32 {dimension_numbers = #tpu.dot_dimension_numbers<[1], [0], [0], [1], [0, 0, 1, 1], [], []>} : vector<8x128xf32>, vector<128x128xf32>, vector<8x128xf32> -> vector<8x128xf32>
    %c0_33 = arith.constant 0 : index
    %c0_34 = arith.constant 0 : index
    %88 = vector.load %arg7[%c0_33, %c0_34] : memref<8x128xf32, #tpu.memory_space<vmem>>, vector<8x128xf32>
    tpu.vector_store %arg7[%c0_33, %c0_34], %87 {strides = array<i32>} : memref<8x128xf32, #tpu.memory_space<vmem>>, vector<8x128xf32>,
    return
  }
  func.func @transform_0(%arg0: i32) -> (i32, i32) {
    %c0_i32 = arith.constant 0 : i32
    %c0_i32_0 = arith.constant 0 : i32
    return %arg0, %c0_i32 : i32, i32
  }
  func.func @transform_1(%arg0: i32) -> (i32, i32) {
    %c0_i32 = arith.constant 0 : i32
    %c0_i32_0 = arith.constant 0 : i32
    return %arg0, %c0_i32 : i32, i32
  }
  func.func @transform_2(%arg0: i32) -> (i32, i32, i32) {
    %c0_i32 = arith.constant 0 : i32
    %c0_i32_0 = arith.constant 0 : i32
    %c0_i32_1 = arith.constant 0 : i32
    %c0_i32_2 = arith.constant 0 : i32
    return %c0_i32, %c0_i32_0, %c0_i32_1 : i32, i32, i32
  }
  func.func @transform_3(%arg0: i32) -> (i32, i32) {
    %c0_i32 = arith.constant 0 : i32
    %c0_i32_0 = arith.constant 0 : i32
    %c0_i32_1 = arith.constant 0 : i32
    return %c0_i32, %c0_i32_0 : i32, i32
  }
  func.func @transform_4(%arg0: i32) -> (i32, i32) {
    %c0_i32 = arith.constant 0 : i32
    %c0_i32_0 = arith.constant 0 : i32
    %c0_i32_1 = arith.constant 0 : i32
    return %c0_i32, %c0_i32_0 : i32, i32
  }
  func.func @transform_5(%arg0: i32) -> (i32, i32) {
    %c0_i32 = arith.constant 0 : i32
    %c0_i32_0 = arith.constant 0 : i32
    return %arg0, %c0_i32 : i32, i32
  }
  func.func @transform_6(%arg0: i32) -> (i32, i32) {
    %c0_i32 = arith.constant 0 : i32
    %c0_i32_0 = arith.constant 0 : i32
    return %arg0, %c0_i32 : i32, i32
  }
}

module attributes {stable_mosaic.version = 11 : i64} {
  func.func @_conv3x3_kernel(%arg0: i32, %arg1: memref<128x64xf32, #tpu.memory_space<vmem>>, %arg2: memref<32x64xf32, #tpu.memory_space<vmem>>, %arg3: memref<3x192x64xbf16, #tpu.memory_space<vmem>>, %arg4: memref<1x64xf32, #tpu.memory_space<vmem>>, %arg5: memref<1x64xf32, #tpu.memory_space<vmem>>, %arg6: memref<128x64xf32, #tpu.memory_space<vmem>>, %arg7: memref<8x128xf32, #tpu.memory_space<vmem>>) attributes {dimension_semantics = [#tpu.dimension_semantics<parallel>], iteration_bounds = array<i64: 4>, scalar_prefetch = 0 : i64, scratch_operands = 0 : i64, tpu.core_type = #tpu.core_type<tc>, window_params = [{transform_indices = @transform_0, window_bounds = array<i64: 128, 64>}, {transform_indices = @transform_1, window_bounds = array<i64: 32, 64>}, {pipeline_mode = #tpu.pipeline_mode<synchronous>, transform_indices = @transform_2, window_bounds = array<i64: 3, 192, 64>}, {pipeline_mode = #tpu.pipeline_mode<synchronous>, transform_indices = @transform_3, window_bounds = array<i64: 1, 64>}, {pipeline_mode = #tpu.pipeline_mode<synchronous>, transform_indices = @transform_4, window_bounds = array<i64: 1, 64>}, {transform_indices = @transform_5, window_bounds = array<i64: 128, 64>}, {transform_indices = @transform_6, window_bounds = array<i64: 8, 128>}]} {
    %c0 = arith.constant 0 : index
    %c0_0 = arith.constant 0 : index
    %0 = vector.load %arg1[%c0, %c0_0] : memref<128x64xf32, #tpu.memory_space<vmem>>, vector<128x64xf32>
    %c0_1 = arith.constant 0 : index
    %c0_2 = arith.constant 0 : index
    %1 = vector.load %arg4[%c0_1, %c0_2] : memref<1x64xf32, #tpu.memory_space<vmem>>, vector<1x64xf32>
    %2 = vector.broadcast %1 : vector<1x64xf32> to vector<128x64xf32>
    %3 = arith.mulf %0, %2 : vector<128x64xf32>
    %c0_3 = arith.constant 0 : index
    %c0_4 = arith.constant 0 : index
    %4 = vector.load %arg5[%c0_3, %c0_4] : memref<1x64xf32, #tpu.memory_space<vmem>>, vector<1x64xf32>
    %5 = vector.broadcast %4 : vector<1x64xf32> to vector<128x64xf32>
    %6 = arith.addf %3, %5 : vector<128x64xf32>
    %cst = arith.constant 0.000000e+00 : f32
    %7 = vector.broadcast %cst : f32 to vector<128x64xf32>
    %8 = arith.maximumf %6, %7 : vector<128x64xf32>
    %c0_5 = arith.constant 0 : index
    %c0_6 = arith.constant 0 : index
    %9 = vector.load %arg2[%c0_5, %c0_6] : memref<32x64xf32, #tpu.memory_space<vmem>>, vector<16x64xf32>
    %c16 = arith.constant 16 : index
    %c0_7 = arith.constant 0 : index
    %10 = vector.load %arg2[%c16, %c0_7] : memref<32x64xf32, #tpu.memory_space<vmem>>, vector<16x64xf32>
    %11 = tpu.concatenate %9, %8, %10 in 0 : vector<16x64xf32>, vector<128x64xf32>, vector<16x64xf32> -> vector<160x64xf32>
    %12 = tpu.iota {dimensions = array<i32: 0>} : vector<128x1xi32>
    %c16_i32 = arith.constant 16 : i32
    %c0_i32 = arith.constant 0 : i32
    %13 = arith.cmpi eq, %c16_i32, %c0_i32 : i32
    %c1_i32 = arith.constant 1 : i32
    %14 = arith.select %13, %c1_i32, %c16_i32 : i32
    %15 = vector.broadcast %14 : i32 to vector<128x1xi32>
    %16 = arith.remsi %12, %15 : vector<128x1xi32>
    %c0_i32_8 = arith.constant 0 : i32
    %17 = vector.broadcast %c0_i32_8 : i32 to vector<128x1xi32>
    %18 = arith.cmpi ne, %16, %17 : vector<128x1xi32>
    %c0_i32_9 = arith.constant 0 : i32
    %19 = vector.broadcast %c0_i32_9 : i32 to vector<128x1xi32>
    %20 = arith.cmpi slt, %16, %19 : vector<128x1xi32>
    %c0_i32_10 = arith.constant 0 : i32
    %21 = arith.cmpi slt, %14, %c0_i32_10 : i32
    %22 = vector.broadcast %21 : i1 to vector<128x1xi1>
    %23 = vector.broadcast %22 : vector<128x1xi1> to vector<128x1xi1>
    %24 = arith.xori %20, %23 : vector<128x1xi1>
    %25 = arith.andi %24, %18 : vector<128x1xi1>
    %26 = vector.broadcast %14 : i32 to vector<128x1xi32>
    %27 = arith.addi %16, %26 : vector<128x1xi32>
    %28 = arith.select %25, %27, %16 : vector<128x1xi1>, vector<128x1xi32>
    %c1_i32_11 = arith.constant 1 : i32
    %29 = vector.broadcast %c1_i32_11 : i32 to vector<128x1xi32>
    %30 = arith.cmpi sge, %28, %29 : vector<128x1xi32>
    %c15_i32 = arith.constant 15 : i32
    %31 = vector.broadcast %c15_i32 : i32 to vector<128x1xi32>
    %32 = arith.cmpi slt, %28, %31 : vector<128x1xi32>
    %cst_12 = arith.constant 0.000000e+00 : f32
    %33 = vector.broadcast %cst_12 : f32 to vector<128x64xf32>
    %34 = vector.extract_strided_slice %11 {offsets = [0, 0], sizes = [128, 64], strides = [1, 1]} : vector<160x64xf32> to vector<128x64xf32>
    %c1_i32_13 = arith.constant 1 : i32
    %35 = tpu.dynamic_rotate %34 by %c1_i32_13 dim 0 : vector<128x64xf32>, i32 -> vector<128x64xf32>
    %cst_14 = arith.constant 0.000000e+00 : f32
    %36 = vector.shape_cast %30 : vector<128x1xi1> to vector<128x1xi1>
    %37 = vector.broadcast %36 : vector<128x1xi1> to vector<128x64xi1>
    %38 = vector.broadcast %cst_14 : f32 to vector<128x64xf32>
    %39 = arith.select %37, %35, %38 : vector<128x64xi1>, vector<128x64xf32>
    %40 = arith.truncf %39 : vector<128x64xf32> to vector<128x64xbf16>
    %41 = arith.truncf %34 : vector<128x64xf32> to vector<128x64xbf16>
    %c127_i32 = arith.constant 127 : i32
    %42 = tpu.dynamic_rotate %34 by %c127_i32 dim 0 : vector<128x64xf32>, i32 -> vector<128x64xf32>
    %cst_15 = arith.constant 0.000000e+00 : f32
    %43 = vector.shape_cast %32 : vector<128x1xi1> to vector<128x1xi1>
    %44 = vector.broadcast %43 : vector<128x1xi1> to vector<128x64xi1>
    %45 = vector.broadcast %cst_15 : f32 to vector<128x64xf32>
    %46 = arith.select %44, %42, %45 : vector<128x64xi1>, vector<128x64xf32>
    %47 = arith.truncf %46 : vector<128x64xf32> to vector<128x64xbf16>
    %48 = tpu.concatenate %40, %41, %47 in 1 : vector<128x64xbf16>, vector<128x64xbf16>, vector<128x64xbf16> -> vector<128x192xbf16>
    %c0_16 = arith.constant 0 : index
    %c0_17 = arith.constant 0 : index
    %c0_18 = arith.constant 0 : index
    %49 = vector.load %arg3[%c0_16, %c0_17, %c0_18] : memref<3x192x64xbf16, #tpu.memory_space<vmem>>, vector<1x192x64xbf16>
    %50 = vector.shape_cast %49 : vector<1x192x64xbf16> to vector<192x64xbf16>
    %cst_19 = arith.constant dense<0.000000e+00> : vector<128x64xf32>
    %51 = tpu.matmul %48, %50, %cst_19 {dimension_numbers = #tpu.dot_dimension_numbers<[1], [0], [0], [1], [0, 0, 1, 1], [], []>} : vector<128x192xbf16>, vector<192x64xbf16>, vector<128x64xf32> -> vector<128x64xf32>
    %52 = arith.addf %33, %51 : vector<128x64xf32>
    %53 = vector.extract_strided_slice %11 {offsets = [16, 0], sizes = [128, 64], strides = [1, 1]} : vector<160x64xf32> to vector<128x64xf32>
    %c1_i32_20 = arith.constant 1 : i32
    %54 = tpu.dynamic_rotate %53 by %c1_i32_20 dim 0 : vector<128x64xf32>, i32 -> vector<128x64xf32>
    %cst_21 = arith.constant 0.000000e+00 : f32
    %55 = vector.shape_cast %30 : vector<128x1xi1> to vector<128x1xi1>
    %56 = vector.broadcast %55 : vector<128x1xi1> to vector<128x64xi1>
    %57 = vector.broadcast %cst_21 : f32 to vector<128x64xf32>
    %58 = arith.select %56, %54, %57 : vector<128x64xi1>, vector<128x64xf32>
    %59 = arith.truncf %58 : vector<128x64xf32> to vector<128x64xbf16>
    %60 = arith.truncf %53 : vector<128x64xf32> to vector<128x64xbf16>
    %c127_i32_22 = arith.constant 127 : i32
    %61 = tpu.dynamic_rotate %53 by %c127_i32_22 dim 0 : vector<128x64xf32>, i32 -> vector<128x64xf32>
    %cst_23 = arith.constant 0.000000e+00 : f32
    %62 = vector.shape_cast %32 : vector<128x1xi1> to vector<128x1xi1>
    %63 = vector.broadcast %62 : vector<128x1xi1> to vector<128x64xi1>
    %64 = vector.broadcast %cst_23 : f32 to vector<128x64xf32>
    %65 = arith.select %63, %61, %64 : vector<128x64xi1>, vector<128x64xf32>
    %66 = arith.truncf %65 : vector<128x64xf32> to vector<128x64xbf16>
    %67 = tpu.concatenate %59, %60, %66 in 1 : vector<128x64xbf16>, vector<128x64xbf16>, vector<128x64xbf16> -> vector<128x192xbf16>
    %c1 = arith.constant 1 : index
    %c0_24 = arith.constant 0 : index
    %c0_25 = arith.constant 0 : index
    %68 = vector.load %arg3[%c1, %c0_24, %c0_25] : memref<3x192x64xbf16, #tpu.memory_space<vmem>>, vector<1x192x64xbf16>
    %69 = vector.shape_cast %68 : vector<1x192x64xbf16> to vector<192x64xbf16>
    %cst_26 = arith.constant dense<0.000000e+00> : vector<128x64xf32>
    %70 = tpu.matmul %67, %69, %cst_26 {dimension_numbers = #tpu.dot_dimension_numbers<[1], [0], [0], [1], [0, 0, 1, 1], [], []>} : vector<128x192xbf16>, vector<192x64xbf16>, vector<128x64xf32> -> vector<128x64xf32>
    %71 = arith.addf %52, %70 : vector<128x64xf32>
    %72 = vector.extract_strided_slice %11 {offsets = [32, 0], sizes = [128, 64], strides = [1, 1]} : vector<160x64xf32> to vector<128x64xf32>
    %c1_i32_27 = arith.constant 1 : i32
    %73 = tpu.dynamic_rotate %72 by %c1_i32_27 dim 0 : vector<128x64xf32>, i32 -> vector<128x64xf32>
    %cst_28 = arith.constant 0.000000e+00 : f32
    %74 = vector.shape_cast %30 : vector<128x1xi1> to vector<128x1xi1>
    %75 = vector.broadcast %74 : vector<128x1xi1> to vector<128x64xi1>
    %76 = vector.broadcast %cst_28 : f32 to vector<128x64xf32>
    %77 = arith.select %75, %73, %76 : vector<128x64xi1>, vector<128x64xf32>
    %78 = arith.truncf %77 : vector<128x64xf32> to vector<128x64xbf16>
    %79 = arith.truncf %72 : vector<128x64xf32> to vector<128x64xbf16>
    %c127_i32_29 = arith.constant 127 : i32
    %80 = tpu.dynamic_rotate %72 by %c127_i32_29 dim 0 : vector<128x64xf32>, i32 -> vector<128x64xf32>
    %cst_30 = arith.constant 0.000000e+00 : f32
    %81 = vector.shape_cast %32 : vector<128x1xi1> to vector<128x1xi1>
    %82 = vector.broadcast %81 : vector<128x1xi1> to vector<128x64xi1>
    %83 = vector.broadcast %cst_30 : f32 to vector<128x64xf32>
    %84 = arith.select %82, %80, %83 : vector<128x64xi1>, vector<128x64xf32>
    %85 = arith.truncf %84 : vector<128x64xf32> to vector<128x64xbf16>
    %86 = tpu.concatenate %78, %79, %85 in 1 : vector<128x64xbf16>, vector<128x64xbf16>, vector<128x64xbf16> -> vector<128x192xbf16>
    %c2 = arith.constant 2 : index
    %c0_31 = arith.constant 0 : index
    %c0_32 = arith.constant 0 : index
    %87 = vector.load %arg3[%c2, %c0_31, %c0_32] : memref<3x192x64xbf16, #tpu.memory_space<vmem>>, vector<1x192x64xbf16>
    %88 = vector.shape_cast %87 : vector<1x192x64xbf16> to vector<192x64xbf16>
    %cst_33 = arith.constant dense<0.000000e+00> : vector<128x64xf32>
    %89 = tpu.matmul %86, %88, %cst_33 {dimension_numbers = #tpu.dot_dimension_numbers<[1], [0], [0], [1], [0, 0, 1, 1], [], []>} : vector<128x192xbf16>, vector<192x64xbf16>, vector<128x64xf32> -> vector<128x64xf32>
    %90 = arith.addf %71, %89 : vector<128x64xf32>
    %c0_34 = arith.constant 0 : index
    %c0_35 = arith.constant 0 : index
    %91 = vector.load %arg6[%c0_34, %c0_35] : memref<128x64xf32, #tpu.memory_space<vmem>>, vector<128x64xf32>
    tpu.vector_store %arg6[%c0_34, %c0_35], %90 {strides = array<i32>} : memref<128x64xf32, #tpu.memory_space<vmem>>, vector<128x64xf32>,
    %92 = arith.mulf %90, %90 : vector<128x64xf32>
    %93 = tpu.concatenate %90, %92 in 1 : vector<128x64xf32>, vector<128x64xf32> -> vector<128x128xf32>
    %cst_36 = arith.constant 1.000000e+00 : f32
    %94 = vector.broadcast %cst_36 : f32 to vector<8x128xf32>
    %cst_37 = arith.constant dense<0.000000e+00> : vector<8x128xf32>
    %95 = tpu.matmul %94, %93, %cst_37 {dimension_numbers = #tpu.dot_dimension_numbers<[1], [0], [0], [1], [0, 0, 1, 1], [], []>} : vector<8x128xf32>, vector<128x128xf32>, vector<8x128xf32> -> vector<8x128xf32>
    %c0_38 = arith.constant 0 : index
    %c0_39 = arith.constant 0 : index
    %96 = vector.load %arg7[%c0_38, %c0_39] : memref<8x128xf32, #tpu.memory_space<vmem>>, vector<8x128xf32>
    tpu.vector_store %arg7[%c0_38, %c0_39], %95 {strides = array<i32>} : memref<8x128xf32, #tpu.memory_space<vmem>>, vector<8x128xf32>,
    return
  }
  func.func @transform_0(%arg0: i32) -> (i32, i32) {
    %c0_i32 = arith.constant 0 : i32
    %c0_i32_0 = arith.constant 0 : i32
    return %arg0, %c0_i32 : i32, i32
  }
  func.func @transform_1(%arg0: i32) -> (i32, i32) {
    %c0_i32 = arith.constant 0 : i32
    %c0_i32_0 = arith.constant 0 : i32
    return %arg0, %c0_i32 : i32, i32
  }
  func.func @transform_2(%arg0: i32) -> (i32, i32, i32) {
    %c0_i32 = arith.constant 0 : i32
    %c0_i32_0 = arith.constant 0 : i32
    %c0_i32_1 = arith.constant 0 : i32
    %c0_i32_2 = arith.constant 0 : i32
    return %c0_i32, %c0_i32_0, %c0_i32_1 : i32, i32, i32
  }
  func.func @transform_3(%arg0: i32) -> (i32, i32) {
    %c0_i32 = arith.constant 0 : i32
    %c0_i32_0 = arith.constant 0 : i32
    %c0_i32_1 = arith.constant 0 : i32
    return %c0_i32, %c0_i32_0 : i32, i32
  }
  func.func @transform_4(%arg0: i32) -> (i32, i32) {
    %c0_i32 = arith.constant 0 : i32
    %c0_i32_0 = arith.constant 0 : i32
    %c0_i32_1 = arith.constant 0 : i32
    return %c0_i32, %c0_i32_0 : i32, i32
  }
  func.func @transform_5(%arg0: i32) -> (i32, i32) {
    %c0_i32 = arith.constant 0 : i32
    %c0_i32_0 = arith.constant 0 : i32
    return %arg0, %c0_i32 : i32, i32
  }
  func.func @transform_6(%arg0: i32) -> (i32, i32) {
    %c0_i32 = arith.constant 0 : i32
    %c0_i32_0 = arith.constant 0 : i32
    return %arg0, %c0_i32 : i32, i32
  }
}

</mosaic_0001>

<llo_original>
// kernel: resudial_block.5
$region0: #{resudial_block.5}
  #allocation0 [shape = 'u32[]', space=smem, size = 0x4, offset = 0x4, fixed_abs, tag = 'smem constant byte address 0x4 - core index']
  #allocation1 [shape = 'u32[144,128]{1,0:T(1,128)}', space=vmem, size = 0x12000, scoped, tag = 'internal scratch']
  %s0 = inlined_call_operand.vmem [shape: f32[256,128], index: 0, kind: input, shape index: {}]
  %s1 = inlined_call_operand.vmem [shape: f32[256,128], index: 1, kind: input, shape index: {}]
  %s2 = inlined_call_operand.vmem [shape: f32[1,128], index: 2, kind: input, shape index: {}]
  %s3 = inlined_call_operand.vmem [shape: f32[1,128], index: 3, kind: input, shape index: {}]
  %s4 = inlined_call_operand.vmem [shape: f32[256,128], index: 4, kind: output, shape index: {}]
  %s5 = sld [smem:[#allocation0]]
  $region49: #{resudial_block.5} parent=0
    _
  %s7 = ssub.s32 1, %s5
  %s8 = scalar_select 0, %s7, %s5
  loop: start=0, step=1, limit=6
  $region2: #{resudial_block.5} parent=0 // loop_pre_header
    _
  $region3: #{resudial_block.5} parent=0 // loop_header
    %s10 = sphi 0, %s14
    %p11 = scmp.ge.s32.totalorder %s10, 6
    %s20 = sphi 0, %s22
    %s23 = sphi 0, %s20
    %s24 = sphi 0, %s23
    %s40 = sphi 0, %s24
    %s46 = sphi 0, %s48
    %s49 = sphi 0, %s46
    %s50 = sphi 0, %s49
    %s66 = sphi 0, %s50
    %s70 = sphi 0, %s70
    %s72 = sphi 0, %s70
    %s73 = sphi 0, %s72
    %s87 = sphi 0, %s73
    %s91 = sphi 0, %s91
    %s93 = sphi 0, %s91
    %s94 = sphi 0, %s93
    %s108 = sphi 0, %s94
    %s114 = sphi 0, %s116
    %s117 = sphi 0, %s114
    %s118 = sphi 0, %s117
    %s134 = sphi 0, %s118
  $region4: #{resudial_block.5} parent=0 // loop_header_branch
    %13 = sbr.rel (%p11) target = $region8
  $region5: #{resudial_block.5} parent=0 // loop_body
    %s15 = ssub.s32 %s10, 1
    %s16 = ssub.s32 %s10, 2
    %s17 = sadd.s32 %s10, 1
    %s18 = ssub.s32 %s10, %s17
    %p19 = scmp.eq.s32.totalorder %s18, 0
    %s21 = sadd.s32 %s20, 1
    %s22 = scalar_select %p19, %s20, %s21
    %p25 = pneg %p19
    %p26 = scmp.eq.s32.totalorder %s10, 3
    %p27 = por %p25, %p26
    %p28 = scmp.ne.s32.totalorder %s20, %s23
    %p29 = scmp.eq.s32.totalorder %s10, 0
    %p30 = por %p28, %p29
    %p31 = scmp.ne.s32.totalorder %s20, %s23
    %p32 = scmp.eq.s32.totalorder %s15, 3
    %p33 = por %p31, %p32
    %p34 = scmp.ne.s32.totalorder %s23, %s24
    %p35 = scmp.eq.s32.totalorder %s15, 0
    %p36 = por %p34, %p35
    %p37 = scmp.ne.s32.totalorder %s23, %s24
    %p38 = scmp.eq.s32.totalorder %s16, 3
    %p39 = por %p37, %p38
    %p41 = scmp.ne.s32.totalorder %s24, %s40
    %p42 = scmp.eq.s32.totalorder %s16, 0
    %p43 = por %p41, %p42
    %s44 = ssub.s32 %s10, %s17
    %p45 = scmp.eq.s32.totalorder %s44, 0
    %s47 = sadd.s32 %s46, 1
    %s48 = scalar_select %p45, %s46, %s47
    %p51 = pneg %p45
    %p52 = scmp.eq.s32.totalorder %s10, 3
    %p53 = por %p51, %p52
    %p54 = scmp.ne.s32.totalorder %s46, %s49
    %p55 = scmp.eq.s32.totalorder %s10, 0
    %p56 = por %p54, %p55
    %p57 = scmp.ne.s32.totalorder %s46, %s49
    %p58 = scmp.eq.s32.totalorder %s15, 3
    %p59 = por %p57, %p58
    %p60 = scmp.ne.s32.totalorder %s49, %s50
    %p61 = scmp.eq.s32.totalorder %s15, 0
    %p62 = por %p60, %p61
    %p63 = scmp.ne.s32.totalorder %s49, %s50
    %p64 = scmp.eq.s32.totalorder %s16, 3
    %p65 = por %p63, %p64
    %p67 = scmp.ne.s32.totalorder %s50, %s66
    %p68 = scmp.eq.s32.totalorder %s16, 0
    %p69 = por %p67, %p68
    %s71 = sadd.s32 %s70, 1
    %p74 = scmp.eq.s32.totalorder %s10, 3
    %p75 = scmp.ne.s32.totalorder %s70, %s72
    %p76 = scmp.eq.s32.totalorder %s10, 0
    %p77 = por %p75, %p76
    %p78 = scmp.ne.s32.totalorder %s70, %s72
    %p79 = scmp.eq.s32.totalorder %s15, 3
    %p80 = por %p78, %p79
    %p81 = scmp.ne.s32.totalorder %s72, %s73
    %p82 = scmp.eq.s32.totalorder %s15, 0
    %p83 = por %p81, %p82
    %p84 = scmp.ne.s32.totalorder %s72, %s73
    %p85 = scmp.eq.s32.totalorder %s16, 3
    %p86 = por %p84, %p85
    %p88 = scmp.ne.s32.totalorder %s73, %s87
    %p89 = scmp.eq.s32.totalorder %s16, 0
    %p90 = por %p88, %p89
    %s92 = sadd.s32 %s91, 1
    %p95 = scmp.eq.s32.totalorder %s10, 3
    %p96 = scmp.ne.s32.totalorder %s91, %s93
    %p97 = scmp.eq.s32.totalorder %s10, 0
    %p98 = por %p96, %p97
    %p99 = scmp.ne.s32.totalorder %s91, %s93
    %p100 = scmp.eq.s32.totalorder %s15, 3
    %p101 = por %p99, %p100
    %p102 = scmp.ne.s32.totalorder %s93, %s94
    %p103 = scmp.eq.s32.totalorder %s15, 0
    %p104 = por %p102, %p103
    %p105 = scmp.ne.s32.totalorder %s93, %s94
    %p106 = scmp.eq.s32.totalorder %s16, 3
    %p107 = por %p105, %p106
    %p109 = scmp.ne.s32.totalorder %s94, %s108
    %p110 = scmp.eq.s32.totalorder %s16, 0
    %p111 = por %p109, %p110
    %s112 = ssub.s32 %s10, %s17
    %p113 = scmp.eq.s32.totalorder %s112, 0
    %s115 = sadd.s32 %s114, 1
    %s116 = scalar_select %p113, %s114, %s115
    %p119 = pneg %p113
    %p120 = scmp.eq.s32.totalorder %s10, 3
    %p121 = por %p119, %p120
    %p122 = scmp.ne.s32.totalorder %s114, %s117
    %p123 = scmp.eq.s32.totalorder %s10, 0
    %p124 = por %p122, %p123
    %p125 = scmp.ne.s32.totalorder %s114, %s117
    %p126 = scmp.eq.s32.totalorder %s15, 3
    %p127 = por %p125, %p126
    %p128 = scmp.ne.s32.totalorder %s117, %s118
    %p129 = scmp.eq.s32.totalorder %s15, 0
    %p130 = por %p128, %p129
    %p131 = scmp.ne.s32.totalorder %s117, %s118
    %p132 = scmp.eq.s32.totalorder %s16, 3
    %p133 = por %p131, %p132
    %p135 = scmp.ne.s32.totalorder %s118, %s134
    %p136 = scmp.eq.s32.totalorder %s16, 0
    %p137 = por %p135, %p136
    %p138 = scmp.le.s32.totalorder 1, %s10
    %p139 = scmp.lt.s32.totalorder %s10, 5
    %p140 = pnand %p138, %p139
    %p141 = pneg %p140
    // Predicated region
    $region9: #{resudial_block.5} parent=5 // pred_check
      _
    $region10: #{resudial_block.5} parent=5 // pred_check_branch
      %143 = sbr.rel (%p140) target = $region12
    $region11: #{resudial_block.5} parent=5 // pred_region
      %s144 = ssub.s32 %s10, 1
      // Predicated region
      $region13: #{resudial_block.5} parent=11 // pred_check
        %p145 = pneg %p83
      $region14: #{resudial_block.5} parent=11 // pred_check_branch
        %147 = sbr.rel (%p145) target = $region16
      $region15: #{resudial_block.5} parent=11 // pred_region
        _
      $region16: #{resudial_block.5} parent=11 // pred_fallthru
        _
      // Predicated region
      $region17: #{resudial_block.5} parent=11 // pred_check
        %p148 = pneg %p104
      $region18: #{resudial_block.5} parent=11 // pred_check_branch
        %150 = sbr.rel (%p148) target = $region20
      $region19: #{resudial_block.5} parent=11 // pred_region
        _
      $region20: #{resudial_block.5} parent=11 // pred_fallthru
        _
    $region12: #{resudial_block.5} parent=5 // pred_fallthru
      _
    %p151 = scmp.lt.s32.totalorder %s10, 4
    // Predicated region
    $region21: #{resudial_block.5} parent=5 // pred_check
      %p152 = pneg %p151
    $region22: #{resudial_block.5} parent=5 // pred_check_branch
      %154 = sbr.rel (%p152) target = $region24
    $region23: #{resudial_block.5} parent=5 // pred_region
      // Predicated region
      $region25: #{resudial_block.5} parent=23 // pred_check
        %p155 = pneg %p30
      $region26: #{resudial_block.5} parent=23 // pred_check_branch
        %157 = sbr.rel (%p155) target = $region28
      $region27: #{resudial_block.5} parent=23 // pred_region
        %s158 = smul.u32 8, %s10
        %p159 = scmp.lt.s32.totalorder %s158, 31
        %s160 = scalar_select %p159, %s158, 31
        %s161 = smul.addr %s160, 8
        %s162 = scalar_lea.vmem %s0, %s161
        %s163 = smul.u32 8, %s10
      $region28: #{resudial_block.5} parent=23 // pred_fallthru
        _
      // Predicated region
      $region29: #{resudial_block.5} parent=23 // pred_check
        %p164 = pneg %p56
      $region30: #{resudial_block.5} parent=23 // pred_check_branch
        %166 = sbr.rel (%p164) target = $region32
      $region31: #{resudial_block.5} parent=23 // pred_region
        %s167 = smul.u32 8, %s10
        %p168 = scmp.lt.s32.totalorder %s167, 31
        %s169 = scalar_select %p168, %s167, 31
        %s170 = smul.addr %s169, 8
        %s171 = scalar_lea.vmem %s1, %s170
        %s172 = smul.u32 8, %s10
      $region32: #{resudial_block.5} parent=23 // pred_fallthru
        _
    $region24: #{resudial_block.5} parent=5 // pred_fallthru
      _
    %p173 = scmp.le.s32.totalorder 1, %s10
    %p174 = scmp.lt.s32.totalorder %s10, 5
    %p175 = pnand %p173, %p174
    %p176 = pneg %p175
    // Predicated region
    $region33: #{resudial_block.5} parent=5 // pred_check
      _
    $region34: #{resudial_block.5} parent=5 // pred_check_branch
      %178 = sbr.rel (%p175) target = $region36
    $region35: #{resudial_block.5} parent=5 // pred_region
      %s179 = ssub.s32 %s10, 1
      %s180 = smul.u32 8, %s15
      %p181 = scmp.lt.s32.totalorder %s180, 31
      %s182 = scalar_select %p181, %s180, 31
      %s183 = smul.addr %s182, 8
      %s184 = scalar_lea.vmem %s0, %s183
      %p185 = pneg %p36
      %p186 = pneg %p33
      %s187 = smul.u32 8, %s15
      %p188 = scmp.lt.s32.totalorder %s187, 31
      %s189 = scalar_select %p188, %s187, 31
      %s190 = smul.addr %s189, 8
      %s191 = scalar_lea.vmem %s1, %s190
      %p192 = pneg %p62
      %p193 = pneg %p59
      %p194 = pneg %p83
      %p195 = pneg %p80
      %p196 = pneg %p104
      %p197 = pneg %p101
      %p198 = pneg %p130
      %p199 = pneg %p127
      %s200 = smul.u32 8, %s15
      %p201 = scmp.lt.s32.totalorder %s200, 31
      %s202 = scalar_select %p201, %s200, 31
      %s203 = smul.addr %s202, 8
      %s204 = scalar_lea.vmem %s4, %s203
      %s205 = smul.u32 8, %s15
      %p206 = scmp.lt.s32.totalorder %s205, 31
      %s207 = scalar_select %p206, %s205, 31
      %s208 = smul.addr %s207, 8
      %s209 = scalar_lea.vmem %s0, %s208
      %s210 = smul.u32 8, %s15
      %s211 = smul.u32 8, %s15
      %p212 = scmp.lt.s32.totalorder %s211, 31
      %s213 = scalar_select %p212, %s211, 31
      %s214 = smul.addr %s213, 8
      %s215 = scalar_lea.vmem %s1, %s214
      %s216 = smul.u32 8, %s15
      %s217 = smul.u32 8, %s15
      %p218 = scmp.lt.s32.totalorder %s217, 31
      %s219 = scalar_select %p218, %s217, 31
      %s220 = smul.addr %s219, 8
      %s221 = scalar_lea.vmem %s4, %s220
      %s222 = smul.u32 8, %s15
      %v223 = vld [vmem:[%s209] sm:$0xff]
      %v224 = vld [vmem:[%s209 + $0x8] sm:$0xff]
      %v225 = vld [vmem:[%s209 + $0x10] sm:$0xff]
      %v226 = vld [vmem:[%s209 + $0x18] sm:$0xff]
      %v227 = vld [vmem:[%s209 + $0x20] sm:$0xff]
      %v228 = vld [vmem:[%s209 + $0x28] sm:$0xff]
      %v229 = vld [vmem:[%s209 + $0x30] sm:$0xff]
      %v230 = vld [vmem:[%s209 + $0x38] sm:$0xff]
      %v231 = vld [vmem:[%s2] sm:$0x1]
      %v233 = vlaneseq
      %v234 = vshrl.u32 %v233, 7
      %v235 = vsub.s32 0, %v234
      %v236 = vrot.slane %v231, %v235
      %v238 = vmul.f32 %v223, %v236
      %v239 = vmul.f32 %v224, %v236
      %v240 = vmul.f32 %v225, %v236
      %v241 = vmul.f32 %v226, %v236
      %v242 = vmul.f32 %v227, %v236
      %v243 = vmul.f32 %v228, %v236
      %v244 = vmul.f32 %v229, %v236
      %v245 = vmul.f32 %v230, %v236
      %v246 = vld [vmem:[%s3] sm:$0x1]
      %v248 = vlaneseq
      %v249 = vshrl.u32 %v248, 7
      %v250 = vsub.s32 0, %v249
      %v251 = vrot.slane %v246, %v250
      %v253 = vadd.f32 %v238, %v251
      %v254 = vadd.f32 %v239, %v251
      %v255 = vadd.f32 %v240, %v251
      %v256 = vadd.f32 %v241, %v251
      %v257 = vadd.f32 %v242, %v251
      %v258 = vadd.f32 %v243, %v251
      %v259 = vadd.f32 %v244, %v251
      %v260 = vadd.f32 %v245, %v251
      %v261 = vld [vmem:[%s215] sm:$0xff]
      %v262 = vld [vmem:[%s215 + $0x8] sm:$0xff]
      %v263 = vld [vmem:[%s215 + $0x10] sm:$0xff]
      %v264 = vld [vmem:[%s215 + $0x18] sm:$0xff]
      %v265 = vld [vmem:[%s215 + $0x20] sm:$0xff]
      %v266 = vld [vmem:[%s215 + $0x28] sm:$0xff]
      %v267 = vld [vmem:[%s215 + $0x30] sm:$0xff]
      %v268 = vld [vmem:[%s215 + $0x38] sm:$0xff]
      %v269 = vadd.f32 %v253, %v261
      %v270 = vadd.f32 %v254, %v262
      %v271 = vadd.f32 %v255, %v263
      %v272 = vadd.f32 %v256, %v264
      %v273 = vadd.f32 %v257, %v265
      %v274 = vadd.f32 %v258, %v266
      %v275 = vadd.f32 %v259, %v267
      %v276 = vadd.f32 %v260, %v268
      %v277 = vmax.f32 %v269, 0.0
      %v278 = vmax.f32 %v270, 0.0
      %v279 = vmax.f32 %v271, 0.0
      %v280 = vmax.f32 %v272, 0.0
      %v281 = vmax.f32 %v273, 0.0
      %v282 = vmax.f32 %v274, 0.0
      %v283 = vmax.f32 %v275, 0.0
      %v284 = vmax.f32 %v276, 0.0
      %285 = vst [vmem:[%s221] sm:$0xff] %v277
      %286 = vst [vmem:[%s221 + $0x8] sm:$0xff] %v278
      %287 = vst [vmem:[%s221 + $0x10] sm:$0xff] %v279
      %288 = vst [vmem:[%s221 + $0x18] sm:$0xff] %v280
      %289 = vst [vmem:[%s221 + $0x20] sm:$0xff] %v281
      %290 = vst [vmem:[%s221 + $0x28] sm:$0xff] %v282
      %291 = vst [vmem:[%s221 + $0x30] sm:$0xff] %v283
      %292 = vst [vmem:[%s221 + $0x38] sm:$0xff] %v284
      %s293 = smul.u32 8, %s15
      %p294 = scmp.lt.s32.totalorder %s293, 31
      %s295 = scalar_select %p294, %s293, 31
      %s296 = smul.addr %s295, 8
      %s297 = scalar_lea.vmem %s4, %s296
      // Predicated region
      $region37: #{resudial_block.5} parent=35 // pred_check
        %p298 = pneg %p127
      $region38: #{resudial_block.5} parent=35 // pred_check_branch
        %300 = sbr.rel (%p298) target = $region40
      $region39: #{resudial_block.5} parent=35 // pred_region
        %s301 = smul.u32 8, %s15
      $region40: #{resudial_block.5} parent=35 // pred_fallthru
        _
    $region36: #{resudial_block.5} parent=5 // pred_fallthru
      _
    %p302 = scmp.le.s32.totalorder 2, %s10
    // Predicated region
    $region41: #{resudial_block.5} parent=5 // pred_check
      %p303 = pneg %p302
    $region42: #{resudial_block.5} parent=5 // pred_check_branch
      %305 = sbr.rel (%p303) target = $region44
    $region43: #{resudial_block.5} parent=5 // pred_region
      %s306 = ssub.s32 %s10, 2
      // Predicated region
      $region45: #{resudial_block.5} parent=43 // pred_check
        %p307 = pneg %p133
      $region46: #{resudial_block.5} parent=43 // pred_check_branch
        %309 = sbr.rel (%p307) target = $region48
      $region47: #{resudial_block.5} parent=43 // pred_region
        %s310 = smul.u32 8, %s16
        %p311 = scmp.lt.s32.totalorder %s310, 31
        %s312 = scalar_select %p311, %s310, 31
        %s313 = smul.addr %s312, 8
        %s314 = scalar_lea.vmem %s4, %s313
      $region48: #{resudial_block.5} parent=43 // pred_fallthru
        _
    $region44: #{resudial_block.5} parent=5 // pred_fallthru
      _
  $region6: #{resudial_block.5} parent=0 // loop_footer
    %s14 = sadd.s32 1, %s10
  $region7: #{resudial_block.5} parent=0 // loop_footer_branch
    %9 = sbr.rel target = $region3
  $region8: #{resudial_block.5} parent=0 // loop_exit
    _

// kernel: resudial_block.4
$region0: #{resudial_block.4}
  #allocation0 [shape = 'u32[]', space=smem, size = 0x4, offset = 0x4, fixed_abs, tag = 'smem constant byte address 0x4 - core index']
  #allocation1 [shape = 'u32[144,128]{1,0:T(1,128)}', space=vmem, size = 0x12000, scoped, tag = 'internal scratch']
  %s0 = inlined_call_operand.vmem [shape: f32[512,64], index: 0, kind: input, shape index: {}]
  %s1 = inlined_call_operand.vmem [shape: f32[128,64], index: 1, kind: input, shape index: {}]
  %s2 = inlined_call_operand.vmem [shape: bf16[3,192,64], index: 2, kind: input, shape index: {}]
  %s3 = inlined_call_operand.vmem [shape: f32[1,64], index: 3, kind: input, shape index: {}]
  %s4 = inlined_call_operand.vmem [shape: f32[1,64], index: 4, kind: input, shape index: {}]
  %s5 = inlined_call_operand.vmem [shape: f32[512,64], index: 5, kind: output, shape index: {0}]
  %s6 = inlined_call_operand.vmem [shape: f32[32,128], index: 6, kind: output, shape index: {1}]
  %7 = xla_tuple %s5, %s6
  %s8 = sld [smem:[#allocation0]]
  $region61: #{resudial_block.4} parent=0
    _
  %s10 = ssub.s32 1, %s8
  %s11 = scalar_select 0, %s10, %s8
  loop: start=0, step=1, limit=6
  $region2: #{resudial_block.4} parent=0 // loop_pre_header
    _
  $region3: #{resudial_block.4} parent=0 // loop_header
    %s13 = sphi 0, %s17
    %p14 = scmp.ge.s32.totalorder %s13, 6
    %s23 = sphi 0, %s25
    %s26 = sphi 0, %s23
    %s27 = sphi 0, %s26
    %s43 = sphi 0, %s27
    %s49 = sphi 0, %s51
    %s52 = sphi 0, %s49
    %s53 = sphi 0, %s52
    %s69 = sphi 0, %s53
    %s73 = sphi 0, %s73
    %s75 = sphi 0, %s73
    %s76 = sphi 0, %s75
    %s90 = sphi 0, %s76
    %s94 = sphi 0, %s94
    %s96 = sphi 0, %s94
    %s97 = sphi 0, %s96
    %s111 = sphi 0, %s97
    %s115 = sphi 0, %s115
    %s117 = sphi 0, %s115
    %s118 = sphi 0, %s117
    %s132 = sphi 0, %s118
    %s138 = sphi 0, %s140
    %s141 = sphi 0, %s138
    %s142 = sphi 0, %s141
    %s158 = sphi 0, %s142
    %s164 = sphi 0, %s166
    %s167 = sphi 0, %s164
    %s168 = sphi 0, %s167
    %s184 = sphi 0, %s168
  $region4: #{resudial_block.4} parent=0 // loop_header_branch
    %16 = sbr.rel (%p14) target = $region8
  $region5: #{resudial_block.4} parent=0 // loop_body
    %s18 = ssub.s32 %s13, 1
    %s19 = ssub.s32 %s13, 2
    %s20 = sadd.s32 %s13, 1
    %s21 = ssub.s32 %s13, %s20
    %p22 = scmp.eq.s32.totalorder %s21, 0
    %s24 = sadd.s32 %s23, 1
    %s25 = scalar_select %p22, %s23, %s24
    %p28 = pneg %p22
    %p29 = scmp.eq.s32.totalorder %s13, 3
    %p30 = por %p28, %p29
    %p31 = scmp.ne.s32.totalorder %s23, %s26
    %p32 = scmp.eq.s32.totalorder %s13, 0
    %p33 = por %p31, %p32
    %p34 = scmp.ne.s32.totalorder %s23, %s26
    %p35 = scmp.eq.s32.totalorder %s18, 3
    %p36 = por %p34, %p35
    %p37 = scmp.ne.s32.totalorder %s26, %s27
    %p38 = scmp.eq.s32.totalorder %s18, 0
    %p39 = por %p37, %p38
    %p40 = scmp.ne.s32.totalorder %s26, %s27
    %p41 = scmp.eq.s32.totalorder %s19, 3
    %p42 = por %p40, %p41
    %p44 = scmp.ne.s32.totalorder %s27, %s43
    %p45 = scmp.eq.s32.totalorder %s19, 0
    %p46 = por %p44, %p45
    %s47 = ssub.s32 %s13, %s20
    %p48 = scmp.eq.s32.totalorder %s47, 0
    %s50 = sadd.s32 %s49, 1
    %s51 = scalar_select %p48, %s49, %s50
    %p54 = pneg %p48
    %p55 = scmp.eq.s32.totalorder %s13, 3
    %p56 = por %p54, %p55
    %p57 = scmp.ne.s32.totalorder %s49, %s52
    %p58 = scmp.eq.s32.totalorder %s13, 0
    %p59 = por %p57, %p58
    %p60 = scmp.ne.s32.totalorder %s49, %s52
    %p61 = scmp.eq.s32.totalorder %s18, 3
    %p62 = por %p60, %p61
    %p63 = scmp.ne.s32.totalorder %s52, %s53
    %p64 = scmp.eq.s32.totalorder %s18, 0
    %p65 = por %p63, %p64
    %p66 = scmp.ne.s32.totalorder %s52, %s53
    %p67 = scmp.eq.s32.totalorder %s19, 3
    %p68 = por %p66, %p67
    %p70 = scmp.ne.s32.totalorder %s53, %s69
    %p71 = scmp.eq.s32.totalorder %s19, 0
    %p72 = por %p70, %p71
    %s74 = sadd.s32 %s73, 1
    %p77 = scmp.eq.s32.totalorder %s13, 3
    %p78 = scmp.ne.s32.totalorder %s73, %s75
    %p79 = scmp.eq.s32.totalorder %s13, 0
    %p80 = por %p78, %p79
    %p81 = scmp.ne.s32.totalorder %s73, %s75
    %p82 = scmp.eq.s32.totalorder %s18, 3
    %p83 = por %p81, %p82
    %p84 = scmp.ne.s32.totalorder %s75, %s76
    %p85 = scmp.eq.s32.totalorder %s18, 0
    %p86 = por %p84, %p85
    %p87 = scmp.ne.s32.totalorder %s75, %s76
    %p88 = scmp.eq.s32.totalorder %s19, 3
    %p89 = por %p87, %p88
    %p91 = scmp.ne.s32.totalorder %s76, %s90
    %p92 = scmp.eq.s32.totalorder %s19, 0
    %p93 = por %p91, %p92
    %s95 = sadd.s32 %s94, 1
    %p98 = scmp.eq.s32.totalorder %s13, 3
    %p99 = scmp.ne.s32.totalorder %s94, %s96
    %p100 = scmp.eq.s32.totalorder %s13, 0
    %p101 = por %p99, %p100
    %p102 = scmp.ne.s32.totalorder %s94, %s96
    %p103 = scmp.eq.s32.totalorder %s18, 3
    %p104 = por %p102, %p103
    %p105 = scmp.ne.s32.totalorder %s96, %s97
    %p106 = scmp.eq.s32.totalorder %s18, 0
    %p107 = por %p105, %p106
    %p108 = scmp.ne.s32.totalorder %s96, %s97
    %p109 = scmp.eq.s32.totalorder %s19, 3
    %p110 = por %p108, %p109
    %p112 = scmp.ne.s32.totalorder %s97, %s111
    %p113 = scmp.eq.s32.totalorder %s19, 0
    %p114 = por %p112, %p113
    %s116 = sadd.s32 %s115, 1
    %p119 = scmp.eq.s32.totalorder %s13, 3
    %p120 = scmp.ne.s32.totalorder %s115, %s117
    %p121 = scmp.eq.s32.totalorder %s13, 0
    %p122 = por %p120, %p121
    %p123 = scmp.ne.s32.totalorder %s115, %s117
    %p124 = scmp.eq.s32.totalorder %s18, 3
    %p125 = por %p123, %p124
    %p126 = scmp.ne.s32.totalorder %s117, %s118
    %p127 = scmp.eq.s32.totalorder %s18, 0
    %p128 = por %p126, %p127
    %p129 = scmp.ne.s32.totalorder %s117, %s118
    %p130 = scmp.eq.s32.totalorder %s19, 3
    %p131 = por %p129, %p130
    %p133 = scmp.ne.s32.totalorder %s118, %s132
    %p134 = scmp.eq.s32.totalorder %s19, 0
    %p135 = por %p133, %p134
    %s136 = ssub.s32 %s13, %s20
    %p137 = scmp.eq.s32.totalorder %s136, 0
    %s139 = sadd.s32 %s138, 1
    %s140 = scalar_select %p137, %s138, %s139
    %p143 = pneg %p137
    %p144 = scmp.eq.s32.totalorder %s13, 3
    %p145 = por %p143, %p144
    %p146 = scmp.ne.s32.totalorder %s138, %s141
    %p147 = scmp.eq.s32.totalorder %s13, 0
    %p148 = por %p146, %p147
    %p149 = scmp.ne.s32.totalorder %s138, %s141
    %p150 = scmp.eq.s32.totalorder %s18, 3
    %p151 = por %p149, %p150
    %p152 = scmp.ne.s32.totalorder %s141, %s142
    %p153 = scmp.eq.s32.totalorder %s18, 0
    %p154 = por %p152, %p153
    %p155 = scmp.ne.s32.totalorder %s141, %s142
    %p156 = scmp.eq.s32.totalorder %s19, 3
    %p157 = por %p155, %p156
    %p159 = scmp.ne.s32.totalorder %s142, %s158
    %p160 = scmp.eq.s32.totalorder %s19, 0
    %p161 = por %p159, %p160
    %s162 = ssub.s32 %s13, %s20
    %p163 = scmp.eq.s32.totalorder %s162, 0
    %s165 = sadd.s32 %s164, 1
    %s166 = scalar_select %p163, %s164, %s165
    %p169 = pneg %p163
    %p170 = scmp.eq.s32.totalorder %s13, 3
    %p171 = por %p169, %p170
    %p172 = scmp.ne.s32.totalorder %s164, %s167
    %p173 = scmp.eq.s32.totalorder %s13, 0
    %p174 = por %p172, %p173
    %p175 = scmp.ne.s32.totalorder %s164, %s167
    %p176 = scmp.eq.s32.totalorder %s18, 3
    %p177 = por %p175, %p176
    %p178 = scmp.ne.s32.totalorder %s167, %s168
    %p179 = scmp.eq.s32.totalorder %s18, 0
    %p180 = por %p178, %p179
    %p181 = scmp.ne.s32.totalorder %s167, %s168
    %p182 = scmp.eq.s32.totalorder %s19, 3
    %p183 = por %p181, %p182
    %p185 = scmp.ne.s32.totalorder %s168, %s184
    %p186 = scmp.eq.s32.totalorder %s19, 0
    %p187 = por %p185, %p186
    %p188 = scmp.le.s32.totalorder 1, %s13
    %p189 = scmp.lt.s32.totalorder %s13, 5
    %p190 = pnand %p188, %p189
    %p191 = pneg %p190
    // Predicated region
    $region9: #{resudial_block.4} parent=5 // pred_check
      _
    $region10: #{resudial_block.4} parent=5 // pred_check_branch
      %193 = sbr.rel (%p190) target = $region12
    $region11: #{resudial_block.4} parent=5 // pred_region
      %s194 = ssub.s32 %s13, 1
      // Predicated region
      $region13: #{resudial_block.4} parent=11 // pred_check
        %p195 = pneg %p86
      $region14: #{resudial_block.4} parent=11 // pred_check_branch
        %197 = sbr.rel (%p195) target = $region16
      $region15: #{resudial_block.4} parent=11 // pred_region
        _
      $region16: #{resudial_block.4} parent=11 // pred_fallthru
        _
      // Predicated region
      $region17: #{resudial_block.4} parent=11 // pred_check
        %p198 = pneg %p107
      $region18: #{resudial_block.4} parent=11 // pred_check_branch
        %200 = sbr.rel (%p198) target = $region20
      $region19: #{resudial_block.4} parent=11 // pred_region
        _
      $region20: #{resudial_block.4} parent=11 // pred_fallthru
        _
      // Predicated region
      $region21: #{resudial_block.4} parent=11 // pred_check
        %p201 = pneg %p128
      $region22: #{resudial_block.4} parent=11 // pred_check_branch
        %203 = sbr.rel (%p201) target = $region24
      $region23: #{resudial_block.4} parent=11 // pred_region
        _
      $region24: #{resudial_block.4} parent=11 // pred_fallthru
        _
    $region12: #{resudial_block.4} parent=5 // pred_fallthru
      _
    %p204 = scmp.lt.s32.totalorder %s13, 4
    // Predicated region
    $region25: #{resudial_block.4} parent=5 // pred_check
      %p205 = pneg %p204
    $region26: #{resudial_block.4} parent=5 // pred_check_branch
      %207 = sbr.rel (%p205) target = $region28
    $region27: #{resudial_block.4} parent=5 // pred_region
      // Predicated region
      $region29: #{resudial_block.4} parent=27 // pred_check
        %p208 = pneg %p33
      $region30: #{resudial_block.4} parent=27 // pred_check_branch
        %210 = sbr.rel (%p208) target = $region32
      $region31: #{resudial_block.4} parent=27 // pred_region
        %s211 = smul.u32 16, %s13
        %p212 = scmp.lt.s32.totalorder %s211, 63
        %s213 = scalar_select %p212, %s211, 63
        %s214 = smul.addr %s213, 8
        %s215 = scalar_lea.vmem %s0, %s214
        %s216 = smul.u32 16, %s13
      $region32: #{resudial_block.4} parent=27 // pred_fallthru
        _
      // Predicated region
      $region33: #{resudial_block.4} parent=27 // pred_check
        %p217 = pneg %p59
      $region34: #{resudial_block.4} parent=27 // pred_check_branch
        %219 = sbr.rel (%p217) target = $region36
      $region35: #{resudial_block.4} parent=27 // pred_region
        %s220 = smul.u32 4, %s13
        %p221 = scmp.lt.s32.totalorder %s220, 15
        %s222 = scalar_select %p221, %s220, 15
        %s223 = smul.addr %s222, 8
        %s224 = scalar_lea.vmem %s1, %s223
        %s225 = smul.u32 4, %s13
      $region36: #{resudial_block.4} parent=27 // pred_fallthru
        _
    $region28: #{resudial_block.4} parent=5 // pred_fallthru
      _
    %p226 = scmp.le.s32.totalorder 1, %s13
    %p227 = scmp.lt.s32.totalorder %s13, 5
    %p228 = pnand %p226, %p227
    %p229 = pneg %p228
    // Predicated region
    $region37: #{resudial_block.4} parent=5 // pred_check
      _
    $region38: #{resudial_block.4} parent=5 // pred_check_branch
      %231 = sbr.rel (%p228) target = $region40
    $region39: #{resudial_block.4} parent=5 // pred_region
      %s232 = ssub.s32 %s13, 1
      %s233 = smul.u32 16, %s18
      %p234 = scmp.lt.s32.totalorder %s233, 63
      %s235 = scalar_select %p234, %s233, 63
      %s236 = smul.addr %s235, 8
      %s237 = scalar_lea.vmem %s0, %s236
      %p238 = pneg %p39
      %p239 = pneg %p36
      %s240 = smul.u32 4, %s18
      %p241 = scmp.lt.s32.totalorder %s240, 15
      %s242 = scalar_select %p241, %s240, 15
      %s243 = smul.addr %s242, 8
      %s244 = scalar_lea.vmem %s1, %s243
      %p245 = pneg %p65
      %p246 = pneg %p62
      %p247 = pneg %p86
      %p248 = pneg %p83
      %p249 = pneg %p107
      %p250 = pneg %p104
      %p251 = pneg %p128
      %p252 = pneg %p125
      %p253 = pneg %p154
      %p254 = pneg %p151
      %s255 = smul.u32 16, %s18
      %p256 = scmp.lt.s32.totalorder %s255, 63
      %s257 = scalar_select %p256, %s255, 63
      %s258 = smul.addr %s257, 8
      %s259 = scalar_lea.vmem %s5, %s258
      %p260 = pneg %p180
      %p261 = pneg %p177
      %p262 = scmp.lt.s32.totalorder %s18, 3
      %s263 = scalar_select %p262, %s18, 3
      %s264 = smul.addr %s263, 8
      %s265 = scalar_lea.vmem %s6, %s264
      %s266 = smul.u32 16, %s18
      %p267 = scmp.lt.s32.totalorder %s266, 63
      %s268 = scalar_select %p267, %s266, 63
      %s269 = smul.addr %s268, 8
      %s270 = scalar_lea.vmem %s0, %s269
      %s271 = smul.u32 16, %s18
      %s272 = smul.u32 4, %s18
      %p273 = scmp.lt.s32.totalorder %s272, 15
      %s274 = scalar_select %p273, %s272, 15
      %s275 = smul.addr %s274, 8
      %s276 = scalar_lea.vmem %s1, %s275
      %s277 = smul.u32 4, %s18
      %s278 = smul.u32 16, %s18
      %p279 = scmp.lt.s32.totalorder %s278, 63
      %s280 = scalar_select %p279, %s278, 63
      %s281 = smul.addr %s280, 8
      %s282 = scalar_lea.vmem %s5, %s281
      %s283 = smul.u32 16, %s18
      %p284 = scmp.lt.s32.totalorder %s18, 3
      %s285 = scalar_select %p284, %s18, 3
      %s286 = smul.addr %s285, 8
      %s287 = scalar_lea.vmem %s6, %s286
      %v289 = vld [vmem:[%s270] sm:$0xff]
      %v290 = vld [vmem:[%s270 + $0x8] sm:$0xff]
      %v291 = vld [vmem:[%s270 + $0x10] sm:$0xff]
      %v292 = vld [vmem:[%s270 + $0x18] sm:$0xff]
      %v293 = vld [vmem:[%s270 + $0x20] sm:$0xff]
      %v294 = vld [vmem:[%s270 + $0x28] sm:$0xff]
      %v295 = vld [vmem:[%s270 + $0x30] sm:$0xff]
      %v296 = vld [vmem:[%s270 + $0x38] sm:$0xff]
      %v297 = vld [vmem:[%s270 + $0x40] sm:$0xff]
      %v298 = vld [vmem:[%s270 + $0x48] sm:$0xff]
      %v299 = vld [vmem:[%s270 + $0x50] sm:$0xff]
      %v300 = vld [vmem:[%s270 + $0x58] sm:$0xff]
      %v301 = vld [vmem:[%s270 + $0x60] sm:$0xff]
      %v302 = vld [vmem:[%s270 + $0x68] sm:$0xff]
      %v303 = vld [vmem:[%s270 + $0x70] sm:$0xff]
      %v304 = vld [vmem:[%s270 + $0x78] sm:$0xff]
      %v305 = vld [vmem:[%s3] sm:$0x1]
      %v307 = vlaneseq
      %v308 = vshrl.u32 %v307, 7
      %v309 = vsub.s32 0, %v308
      %v310 = vrot.slane %v305, %v309
      %v312 = vmul.f32 %v289, %v310
      %v313 = vmul.f32 %v290, %v310
      %v314 = vmul.f32 %v291, %v310
      %v315 = vmul.f32 %v292, %v310
      %v316 = vmul.f32 %v293, %v310
      %v317 = vmul.f32 %v294, %v310
      %v318 = vmul.f32 %v295, %v310
      %v319 = vmul.f32 %v296, %v310
      %v320 = vmul.f32 %v297, %v310
      %v321 = vmul.f32 %v298, %v310
      %v322 = vmul.f32 %v299, %v310
      %v323 = vmul.f32 %v300, %v310
      %v324 = vmul.f32 %v301, %v310
      %v325 = vmul.f32 %v302, %v310
      %v326 = vmul.f32 %v303, %v310
      %v327 = vmul.f32 %v304, %v310
      %v328 = vld [vmem:[%s4] sm:$0x1]
      %v330 = vlaneseq
      %v331 = vshrl.u32 %v330, 7
      %v332 = vsub.s32 0, %v331
      %v333 = vrot.slane %v328, %v332
      %v335 = vadd.f32 %v312, %v333
      %v336 = vadd.f32 %v313, %v333
      %v337 = vadd.f32 %v314, %v333
      %v338 = vadd.f32 %v315, %v333
      %v339 = vadd.f32 %v316, %v333
      %v340 = vadd.f32 %v317, %v333
      %v341 = vadd.f32 %v318, %v333
      %v342 = vadd.f32 %v319, %v333
      %v343 = vadd.f32 %v320, %v333
      %v344 = vadd.f32 %v321, %v333
      %v345 = vadd.f32 %v322, %v333
      %v346 = vadd.f32 %v323, %v333
      %v347 = vadd.f32 %v324, %v333
      %v348 = vadd.f32 %v325, %v333
      %v349 = vadd.f32 %v326, %v333
      %v350 = vadd.f32 %v327, %v333
      %v351 = vmax.f32 %v335, 0.0
      %v352 = vmax.f32 %v336, 0.0
      %v353 = vmax.f32 %v337, 0.0
      %v354 = vmax.f32 %v338, 0.0
      %v355 = vmax.f32 %v339, 0.0
      %v356 = vmax.f32 %v340, 0.0
      %v357 = vmax.f32 %v341, 0.0
      %v358 = vmax.f32 %v342, 0.0
      %v359 = vmax.f32 %v343, 0.0
      %v360 = vmax.f32 %v344, 0.0
      %v361 = vmax.f32 %v345, 0.0
      %v362 = vmax.f32 %v346, 0.0
      %v363 = vmax.f32 %v347, 0.0
      %v364 = vmax.f32 %v348, 0.0
      %v365 = vmax.f32 %v349, 0.0
      %v366 = vmax.f32 %v350, 0.0
      %v367 = vld [vmem:[%s276] sm:$0xff]
      %v368 = vld [vmem:[%s276 + $0x8] sm:$0xff]
      %v369 = vld [vmem:[%s276 + $0x10] sm:$0xff]
      %v370 = vld [vmem:[%s276 + $0x18] sm:$0xff]
      %v371 = vlaneseq
      %v372 = vshrl.u32 %v371, 7
      %v373 = vadd.s32 %v372, 8
      %v374 = vadd.s32 %v372, 16
      %v375 = vadd.s32 %v372, 24
      %v376 = vadd.s32 %v372, 32
      %v377 = vadd.s32 %v372, 40
      %v378 = vadd.s32 %v372, 48
      %v379 = vadd.s32 %v372, 56
      %v380 = vadd.s32 %v372, 64
      %v381 = vadd.s32 %v372, 72
      %v382 = vadd.s32 %v372, 80
      %v383 = vadd.s32 %v372, 88
      %v384 = vadd.s32 %v372, 96
      %v385 = vadd.s32 %v372, 104
      %v386 = vadd.s32 %v372, 112
      %v387 = vadd.s32 %v372, 120
      %vm388 = vcmp.lt.s32.totalorder %v372, 0
      %v389 = vsub.s32 0, %v372
      %v390 = vsel %vm388, %v389, %v372
      %v391 = vshrl.u32 %v390, 4
      %v392 = vand.u32 %v390, 15
      %v393 = vsub.s32 0, %v392
      %v394 = vsel %vm388, %v393, %v392
      %vm395 = vcmp.lt.s32.totalorder %v373, 0
      %v396 = vsub.s32 0, %v373
      %v397 = vsel %vm395, %v396, %v373
      %v398 = vshrl.u32 %v397, 4
      %v399 = vand.u32 %v397, 15
      %v400 = vsub.s32 0, %v399
      %v401 = vsel %vm395, %v400, %v399
      %vm402 = vcmp.lt.s32.totalorder %v374, 0
      %v403 = vsub.s32 0, %v374
      %v404 = vsel %vm402, %v403, %v374
      %v405 = vshrl.u32 %v404, 4
      %v406 = vand.u32 %v404, 15
      %v407 = vsub.s32 0, %v406
      %v408 = vsel %vm402, %v407, %v406
      %vm409 = vcmp.lt.s32.totalorder %v375, 0
      %v410 = vsub.s32 0, %v375
      %v411 = vsel %vm409, %v410, %v375
      %v412 = vshrl.u32 %v411, 4
      %v413 = vand.u32 %v411, 15
      %v414 = vsub.s32 0, %v413
      %v415 = vsel %vm409, %v414, %v413
      %vm416 = vcmp.lt.s32.totalorder %v376, 0
      %v417 = vsub.s32 0, %v376
      %v418 = vsel %vm416, %v417, %v376
      %v419 = vshrl.u32 %v418, 4
      %v420 = vand.u32 %v418, 15
      %v421 = vsub.s32 0, %v420
      %v422 = vsel %vm416, %v421, %v420
      %vm423 = vcmp.lt.s32.totalorder %v377, 0
      %v424 = vsub.s32 0, %v377
      %v425 = vsel %vm423, %v424, %v377
      %v426 = vshrl.u32 %v425, 4
      %v427 = vand.u32 %v425, 15
      %v428 = vsub.s32 0, %v427
      %v429 = vsel %vm423, %v428, %v427
      %vm430 = vcmp.lt.s32.totalorder %v378, 0
      %v431 = vsub.s32 0, %v378
      %v432 = vsel %vm430, %v431, %v378
      %v433 = vshrl.u32 %v432, 4
      %v434 = vand.u32 %v432, 15
      %v435 = vsub.s32 0, %v434
      %v436 = vsel %vm430, %v435, %v434
      %vm437 = vcmp.lt.s32.totalorder %v379, 0
      %v438 = vsub.s32 0, %v379
      %v439 = vsel %vm437, %v438, %v379
      %v440 = vshrl.u32 %v439, 4
      %v441 = vand.u32 %v439, 15
      %v442 = vsub.s32 0, %v441
      %v443 = vsel %vm437, %v442, %v441
      %vm444 = vcmp.lt.s32.totalorder %v380, 0
      %v445 = vsub.s32 0, %v380
      %v446 = vsel %vm444, %v445, %v380
      %v447 = vshrl.u32 %v446, 4
      %v448 = vand.u32 %v446, 15
      %v449 = vsub.s32 0, %v448
      %v450 = vsel %vm444, %v449, %v448
      %vm451 = vcmp.lt.s32.totalorder %v381, 0
      %v452 = vsub.s32 0, %v381
      %v453 = vsel %vm451, %v452, %v381
      %v454 = vshrl.u32 %v453, 4
      %v455 = vand.u32 %v453, 15
      %v456 = vsub.s32 0, %v455
      %v457 = vsel %vm451, %v456, %v455
      %vm458 = vcmp.lt.s32.totalorder %v382, 0
      %v459 = vsub.s32 0, %v382
      %v460 = vsel %vm458, %v459, %v382
      %v461 = vshrl.u32 %v460, 4
      %v462 = vand.u32 %v460, 15
      %v463 = vsub.s32 0, %v462
      %v464 = vsel %vm458, %v463, %v462
      %vm465 = vcmp.lt.s32.totalorder %v383, 0
      %v466 = vsub.s32 0, %v383
      %v467 = vsel %vm465, %v466, %v383
      %v468 = vshrl.u32 %v467, 4
      %v469 = vand.u32 %v467, 15
      %v470 = vsub.s32 0, %v469
      %v471 = vsel %vm465, %v470, %v469
      %vm472 = vcmp.lt.s32.totalorder %v384, 0
      %v473 = vsub.s32 0, %v384
      %v474 = vsel %vm472, %v473, %v384
      %v475 = vshrl.u32 %v474, 4
      %v476 = vand.u32 %v474, 15
      %v477 = vsub.s32 0, %v476
      %v478 = vsel %vm472, %v477, %v476
      %vm479 = vcmp.lt.s32.totalorder %v385, 0
      %v480 = vsub.s32 0, %v385
      %v481 = vsel %vm479, %v480, %v385
      %v482 = vshrl.u32 %v481, 4
      %v483 = vand.u32 %v481, 15
      %v484 = vsub.s32 0, %v483
      %v485 = vsel %vm479, %v484, %v483
      %vm486 = vcmp.lt.s32.totalorder %v386, 0
      %v487 = vsub.s32 0, %v386
      %v488 = vsel %vm486, %v487, %v386
      %v489 = vshrl.u32 %v488, 4
      %v490 = vand.u32 %v488, 15
      %v491 = vsub.s32 0, %v490
      %v492 = vsel %vm486, %v491, %v490
      %vm493 = vcmp.lt.s32.totalorder %v387, 0
      %v494 = vsub.s32 0, %v387
      %v495 = vsel %vm493, %v494, %v387
      %v496 = vshrl.u32 %v495, 4
      %v497 = vand.u32 %v495, 15
      %v498 = vsub.s32 0, %v497
      %v499 = vsel %vm493, %v498, %v497
      %vm500 = vcmp.ne.s32.totalorder %v394, 0
      %vm501 = vcmp.ne.s32.totalorder %v401, 0
      %vm502 = vcmp.ne.s32.totalorder %v408, 0
      %vm503 = vcmp.ne.s32.totalorder %v415, 0
      %vm504 = vcmp.ne.s32.totalorder %v422, 0
      %vm505 = vcmp.ne.s32.totalorder %v429, 0
      %vm506 = vcmp.ne.s32.totalorder %v436, 0
      %vm507 = vcmp.ne.s32.totalorder %v443, 0
      %vm508 = vcmp.ne.s32.totalorder %v450, 0
      %vm509 = vcmp.ne.s32.totalorder %v457, 0
      %vm510 = vcmp.ne.s32.totalorder %v464, 0
      %vm511 = vcmp.ne.s32.totalorder %v471, 0
      %vm512 = vcmp.ne.s32.totalorder %v478, 0
      %vm513 = vcmp.ne.s32.totalorder %v485, 0
      %vm514 = vcmp.ne.s32.totalorder %v492, 0
      %vm515 = vcmp.ne.s32.totalorder %v499, 0
      %vm516 = vcmp.lt.s32.totalorder %v394, 0
      %vm517 = vcmp.lt.s32.totalorder %v401, 0
      %vm518 = vcmp.lt.s32.totalorder %v408, 0
      %vm519 = vcmp.lt.s32.totalorder %v415, 0
      %vm520 = vcmp.lt.s32.totalorder %v422, 0
      %vm521 = vcmp.lt.s32.totalorder %v429, 0
      %vm522 = vcmp.lt.s32.totalorder %v436, 0
      %vm523 = vcmp.lt.s32.totalorder %v443, 0
      %vm524 = vcmp.lt.s32.totalorder %v450, 0
      %vm525 = vcmp.lt.s32.totalorder %v457, 0
      %vm526 = vcmp.lt.s32.totalorder %v464, 0
      %vm527 = vcmp.lt.s32.totalorder %v471, 0
      %vm528 = vcmp.lt.s32.totalorder %v478, 0
      %vm529 = vcmp.lt.s32.totalorder %v485, 0
      %vm530 = vcmp.lt.s32.totalorder %v492, 0
      %vm531 = vcmp.lt.s32.totalorder %v499, 0
      %vm532 = vmand %vm516, %vm500
      %vm533 = vmand %vm517, %vm501
      %vm534 = vmand %vm518, %vm502
      %vm535 = vmand %vm519, %vm503
      %vm536 = vmand %vm520, %vm504
      %vm537 = vmand %vm521, %vm505
      %vm538 = vmand %vm522, %vm506
      %vm539 = vmand %vm523, %vm507
      %vm540 = vmand %vm524, %vm508
      %vm541 = vmand %vm525, %vm509
      %vm542 = vmand %vm526, %vm510
      %vm543 = vmand %vm527, %vm511
      %vm544 = vmand %vm528, %vm512
      %vm545 = vmand %vm529, %vm513
      %vm546 = vmand %vm530, %vm514
      %vm547 = vmand %vm531, %vm515
      %v548 = vadd.s32 %v394, 16
      %v549 = vadd.s32 %v401, 16
      %v550 = vadd.s32 %v408, 16
      %v551 = vadd.s32 %v415, 16
      %v552 = vadd.s32 %v422, 16
      %v553 = vadd.s32 %v429, 16
      %v554 = vadd.s32 %v436, 16
      %v555 = vadd.s32 %v443, 16
      %v556 = vadd.s32 %v450, 16
      %v557 = vadd.s32 %v457, 16
      %v558 = vadd.s32 %v464, 16
      %v559 = vadd.s32 %v471, 16
      %v560 = vadd.s32 %v478, 16
      %v561 = vadd.s32 %v485, 16
      %v562 = vadd.s32 %v492, 16
      %v563 = vadd.s32 %v499, 16
      %v564 = vsel %vm532, %v548, %v394
      %v565 = vsel %vm533, %v549, %v401
      %v566 = vsel %vm534, %v550, %v408
      %v567 = vsel %vm535, %v551, %v415
      %v568 = vsel %vm536, %v552, %v422
      %v569 = vsel %vm537, %v553, %v429
      %v570 = vsel %vm538, %v554, %v436
      %v571 = vsel %vm539, %v555, %v443
      %v572 = vsel %vm540, %v556, %v450
      %v573 = vsel %vm541, %v557, %v457
      %v574 = vsel %vm542, %v558, %v464
      %v575 = vsel %vm543, %v559, %v471
      %v576 = vsel %vm544, %v560, %v478
      %v577 = vsel %vm545, %v561, %v485
      %v578 = vsel %vm546, %v562, %v492
      %v579 = vsel %vm547, %v563, %v499
      %vm580 = vcmp.ge.s32.totalorder %v564, 1
      %vm581 = vcmp.ge.s32.totalorder %v565, 1
      %vm582 = vcmp.ge.s32.totalorder %v566, 1
      %vm583 = vcmp.ge.s32.totalorder %v567, 1
      %vm584 = vcmp.ge.s32.totalorder %v568, 1
      %vm585 = vcmp.ge.s32.totalorder %v569, 1
      %vm586 = vcmp.ge.s32.totalorder %v570, 1
      %vm587 = vcmp.ge.s32.totalorder %v571, 1
      %vm588 = vcmp.ge.s32.totalorder %v572, 1
      %vm589 = vcmp.ge.s32.totalorder %v573, 1
      %vm590 = vcmp.ge.s32.totalorder %v574, 1
      %vm591 = vcmp.ge.s32.totalorder %v575, 1
      %vm592 = vcmp.ge.s32.totalorder %v576, 1
      %vm593 = vcmp.ge.s32.totalorder %v577, 1
      %vm594 = vcmp.ge.s32.totalorder %v578, 1
      %vm595 = vcmp.ge.s32.totalorder %v579, 1
      %vm596 = vcmp.lt.s32.totalorder %v564, 15
      %vm597 = vcmp.lt.s32.totalorder %v565, 15
      %vm598 = vcmp.lt.s32.totalorder %v566, 15
      %vm599 = vcmp.lt.s32.totalorder %v567, 15
      %vm600 = vcmp.lt.s32.totalorder %v568, 15
      %vm601 = vcmp.lt.s32.totalorder %v569, 15
      %vm602 = vcmp.lt.s32.totalorder %v570, 15
      %vm603 = vcmp.lt.s32.totalorder %v571, 15
      %vm604 = vcmp.lt.s32.totalorder %v572, 15
      %vm605 = vcmp.lt.s32.totalorder %v573, 15
      %vm606 = vcmp.lt.s32.totalorder %v574, 15
      %vm607 = vcmp.lt.s32.totalorder %v575, 15
      %vm608 = vcmp.lt.s32.totalorder %v576, 15
      %vm609 = vcmp.lt.s32.totalorder %v577, 15
      %vm610 = vcmp.lt.s32.totalorder %v578, 15
      %vm611 = vcmp.lt.s32.totalorder %v579, 15
      %v612 = vrot.slane %v367, 7
      %v613 = vrot.slane %v368, 7
      %v614 = vrot.slane %v351, 7
      %v615 = vrot.slane %v352, 7
      %v616 = vrot.slane %v353, 7
      %v617 = vrot.slane %v354, 7
      %v618 = vrot.slane %v355, 7
      %v619 = vrot.slane %v356, 7
      %v620 = vrot.slane %v357, 7
      %v621 = vrot.slane %v358, 7
      %v622 = vrot.slane %v359, 7
      %v623 = vrot.slane %v360, 7
      %v624 = vrot.slane %v361, 7
      %v625 = vrot.slane %v362, 7
      %v626 = vrot.slane %v363, 7
      %v627 = vrot.slane %v364, 7
      %vm628 = vcmp.lt.s32.totalorder %v372, 1
      %v629 = vsel %vm628, %v626, %v627
      %v630 = vsel %vm628, %v625, %v626
      %v631 = vsel %vm628, %v624, %v625
      %v632 = vsel %vm628, %v623, %v624
      %v633 = vsel %vm628, %v622, %v623
      %v634 = vsel %vm628, %v621, %v622
      %v635 = vsel %vm628, %v620, %v621
      %v636 = vsel %vm628, %v619, %v620
      %v637 = vsel %vm628, %v618, %v619
      %v638 = vsel %vm628, %v617, %v618
      %v639 = vsel %vm628, %v616, %v617
      %v640 = vsel %vm628, %v615, %v616
      %v641 = vsel %vm628, %v614, %v615
      %v642 = vsel %vm628, %v613, %v614
      %v643 = vsel %vm628, %v612, %v613
      %v644 = vsel %vm628, %v627, %v612
      %v645 = vsel %vm580, 1, 0
      %v646 = vsel %vm581, 1, 0
      %v647 = vsel %vm582, 1, 0
      %v648 = vsel %vm583, 1, 0
      %v649 = vsel %vm584, 1, 0
      %v650 = vsel %vm585, 1, 0
      %v651 = vsel %vm586, 1, 0
      %v652 = vsel %vm587, 1, 0
      %v653 = vsel %vm588, 1, 0
      %v654 = vsel %vm589, 1, 0
      %v655 = vsel %vm590, 1, 0
      %v656 = vsel %vm591, 1, 0
      %v657 = vsel %vm592, 1, 0
      %v658 = vsel %vm593, 1, 0
      %v659 = vsel %vm594, 1, 0
      %v660 = vsel %vm595, 1, 0
      %vm661 = vcmp.eq.s32.totalorder %v645, 1
      %vm662 = vcmp.eq.s32.totalorder %v646, 1
      %vm663 = vcmp.eq.s32.totalorder %v647, 1
      %vm664 = vcmp.eq.s32.totalorder %v648, 1
      %vm665 = vcmp.eq.s32.totalorder %v649, 1
      %vm666 = vcmp.eq.s32.totalorder %v650, 1
      %vm667 = vcmp.eq.s32.totalorder %v651, 1
      %vm668 = vcmp.eq.s32.totalorder %v652, 1
      %vm669 = vcmp.eq.s32.totalorder %v653, 1
      %vm670 = vcmp.eq.s32.totalorder %v654, 1
      %vm671 = vcmp.eq.s32.totalorder %v655, 1
      %vm672 = vcmp.eq.s32.totalorder %v656, 1
      %vm673 = vcmp.eq.s32.totalorder %v657, 1
      %vm674 = vcmp.eq.s32.totalorder %v658, 1
      %vm675 = vcmp.eq.s32.totalorder %v659, 1
      %vm676 = vcmp.eq.s32.totalorder %v660, 1
      %v677 = vsel %vm661, %v644, 0.0
      %v678 = vsel %vm662, %v643, 0.0
      %v679 = vsel %vm663, %v642, 0.0
      %v680 = vsel %vm664, %v641, 0.0
      %v681 = vsel %vm665, %v640, 0.0
      %v682 = vsel %vm666, %v639, 0.0
      %v683 = vsel %vm667, %v638, 0.0
      %v684 = vsel %vm668, %v637, 0.0
      %v685 = vsel %vm669, %v636, 0.0
      %v686 = vsel %vm670, %v635, 0.0
      %v687 = vsel %vm671, %v634, 0.0
      %v688 = vsel %vm672, %v633, 0.0
      %v689 = vsel %vm673, %v632, 0.0
      %v690 = vsel %vm674, %v631, 0.0
      %v691 = vsel %vm675, %v630, 0.0
      %v692 = vsel %vm676, %v629, 0.0
      %v693 = vpack.c.bf16 %v678, %v677
      %v694 = vpack.c.bf16 %v680, %v679
      %v695 = vpack.c.bf16 %v682, %v681
      %v696 = vpack.c.bf16 %v684, %v683
      %v697 = vpack.c.bf16 %v686, %v685
      %v698 = vpack.c.bf16 %v688, %v687
      %v699 = vpack.c.bf16 %v690, %v689
      %v700 = vpack.c.bf16 %v692, %v691
      %v701 = vpack.c.bf16 %v368, %v367
      %v702 = vpack.c.bf16 %v352, %v351
      %v703 = vpack.c.bf16 %v354, %v353
      %v704 = vpack.c.bf16 %v356, %v355
      %v705 = vpack.c.bf16 %v358, %v357
      %v706 = vpack.c.bf16 %v360, %v359
      %v707 = vpack.c.bf16 %v362, %v361
      %v708 = vpack.c.bf16 %v364, %v363
      %v709 = vrot.slane %v367, 1
      %v710 = vrot.slane %v368, 1
      %v711 = vrot.slane %v351, 1
      %v712 = vrot.slane %v352, 1
      %v713 = vrot.slane %v353, 1
      %v714 = vrot.slane %v354, 1
      %v715 = vrot.slane %v355, 1
      %v716 = vrot.slane %v356, 1
      %v717 = vrot.slane %v357, 1
      %v718 = vrot.slane %v358, 1
      %v719 = vrot.slane %v359, 1
      %v720 = vrot.slane %v360, 1
      %v721 = vrot.slane %v361, 1
      %v722 = vrot.slane %v362, 1
      %v723 = vrot.slane %v363, 1
      %v724 = vrot.slane %v364, 1
      %vm725 = vcmp.lt.s32.totalorder %v372, 7
      %v726 = vsel %vm725, %v723, %v724
      %v727 = vsel %vm725, %v722, %v723
      %v728 = vsel %vm725, %v721, %v722
      %v729 = vsel %vm725, %v720, %v721
      %v730 = vsel %vm725, %v719, %v720
      %v731 = vsel %vm725, %v718, %v719
      %v732 = vsel %vm725, %v717, %v718
      %v733 = vsel %vm725, %v716, %v717
      %v734 = vsel %vm725, %v715, %v716
      %v735 = vsel %vm725, %v714, %v715
      %v736 = vsel %vm725, %v713, %v714
      %v737 = vsel %vm725, %v712, %v713
      %v738 = vsel %vm725, %v711, %v712
      %v739 = vsel %vm725, %v710, %v711
      %v740 = vsel %vm725, %v709, %v710
      %v741 = vsel %vm725, %v724, %v709
      %v742 = vsel %vm596, 1, 0
      %v743 = vsel %vm597, 1, 0
      %v744 = vsel %vm598, 1, 0
      %v745 = vsel %vm599, 1, 0
      %v746 = vsel %vm600, 1, 0
      %v747 = vsel %vm601, 1, 0
      %v748 = vsel %vm602, 1, 0
      %v749 = vsel %vm603, 1, 0
      %v750 = vsel %vm604, 1, 0
      %v751 = vsel %vm605, 1, 0
      %v752 = vsel %vm606, 1, 0
      %v753 = vsel %vm607, 1, 0
      %v754 = vsel %vm608, 1, 0
      %v755 = vsel %vm609, 1, 0
      %v756 = vsel %vm610, 1, 0
      %v757 = vsel %vm611, 1, 0
      %vm758 = vcmp.eq.s32.totalorder %v742, 1
      %vm759 = vcmp.eq.s32.totalorder %v743, 1
      %vm760 = vcmp.eq.s32.totalorder %v744, 1
      %vm761 = vcmp.eq.s32.totalorder %v745, 1
      %vm762 = vcmp.eq.s32.totalorder %v746, 1
      %vm763 = vcmp.eq.s32.totalorder %v747, 1
      %vm764 = vcmp.eq.s32.totalorder %v748, 1
      %vm765 = vcmp.eq.s32.totalorder %v749, 1
      %vm766 = vcmp.eq.s32.totalorder %v750, 1
      %vm767 = vcmp.eq.s32.totalorder %v751, 1
      %vm768 = vcmp.eq.s32.totalorder %v752, 1
      %vm769 = vcmp.eq.s32.totalorder %v753, 1
      %vm770 = vcmp.eq.s32.totalorder %v754, 1
      %vm771 = vcmp.eq.s32.totalorder %v755, 1
      %vm772 = vcmp.eq.s32.totalorder %v756, 1
      %vm773 = vcmp.eq.s32.totalorder %v757, 1
      %v774 = vsel %vm758, %v740, 0.0
      %v775 = vsel %vm759, %v739, 0.0
      %v776 = vsel %vm760, %v738, 0.0
      %v777 = vsel %vm761, %v737, 0.0
      %v778 = vsel %vm762, %v736, 0.0
      %v779 = vsel %vm763, %v735, 0.0
      %v780 = vsel %vm764, %v734, 0.0
      %v781 = vsel %vm765, %v733, 0.0
      %v782 = vsel %vm766, %v732, 0.0
      %v783 = vsel %vm767, %v731, 0.0
      %v784 = vsel %vm768, %v730, 0.0
      %v785 = vsel %vm769, %v729, 0.0
      %v786 = vsel %vm770, %v728, 0.0
      %v787 = vsel %vm771, %v727, 0.0
      %v788 = vsel %vm772, %v726, 0.0
      %v789 = vsel %vm773, %v741, 0.0
      %v790 = vpack.c.bf16 %v775, %v774
      %v791 = vpack.c.bf16 %v777, %v776
      %v792 = vpack.c.bf16 %v779, %v778
      %v793 = vpack.c.bf16 %v781, %v780
      %v794 = vpack.c.bf16 %v783, %v782
      %v795 = vpack.c.bf16 %v785, %v784
      %v796 = vpack.c.bf16 %v787, %v786
      %v797 = vpack.c.bf16 %v789, %v788
      %806 = vrot.lane.b32.xlu0 %v701, 64
      %v807 = vpop.permute.xlu0 %806
      %808 = vrot.lane.b32.xlu0 %v702, 64
      %v809 = vpop.permute.xlu0 %808
      %810 = vrot.lane.b32.xlu0 %v703, 64
      %v811 = vpop.permute.xlu0 %810
      %812 = vrot.lane.b32.xlu0 %v704, 64
      %v813 = vpop.permute.xlu0 %812
      %814 = vrot.lane.b32.xlu0 %v705, 64
      %v815 = vpop.permute.xlu0 %814
      %816 = vrot.lane.b32.xlu0 %v706, 64
      %v817 = vpop.permute.xlu0 %816
      %818 = vrot.lane.b32.xlu0 %v707, 64
      %v819 = vpop.permute.xlu0 %818
      %820 = vrot.lane.b32.xlu0 %v708, 64
      %v821 = vpop.permute.xlu0 %820
      %vm822 = vcmask 523264
      %v825 = vsel %vm822, %v693, %v807
      %v829 = vsel %vm822, %v694, %v809
      %v833 = vsel %vm822, %v695, %v811
      %v837 = vsel %vm822, %v696, %v813
      %v841 = vsel %vm822, %v697, %v815
      %v845 = vsel %vm822, %v698, %v817
      %v849 = vsel %vm822, %v699, %v819
      %v853 = vsel %vm822, %v700, %v821
      %v855 = vld [vmem:[%s2] sm:$0xf]
      %v856 = vld [vmem:[%s2 + $0x4] sm:$0xf]
      %v857 = vld [vmem:[%s2 + $0x8] sm:$0xf]
      %v858 = vld [vmem:[%s2 + $0xc] sm:$0xf]
      %v859 = vld [vmem:[%s2 + $0x10] sm:$0xf]
      %v860 = vld [vmem:[%s2 + $0x14] sm:$0xf]
      %v861 = vld [vmem:[%s2 + $0x18] sm:$0xf]
      %v862 = vld [vmem:[%s2 + $0x1c] sm:$0xf]
      %v863 = vld [vmem:[%s2 + $0x20] sm:$0xf]
      %v864 = vld [vmem:[%s2 + $0x24] sm:$0xf]
      %v865 = vld [vmem:[%s2 + $0x28] sm:$0xf]
      %v866 = vld [vmem:[%s2 + $0x2c] sm:$0xf]
      %v867 = vld [vmem:[%s2 + $0x30] sm:$0xf]
      %v868 = vld [vmem:[%s2 + $0x34] sm:$0xf]
      %v869 = vld [vmem:[%s2 + $0x38] sm:$0xf]
      %v870 = vld [vmem:[%s2 + $0x3c] sm:$0xf]
      %v871 = vld [vmem:[%s2 + $0x40] sm:$0xf]
      %v872 = vld [vmem:[%s2 + $0x44] sm:$0xf]
      %v873 = vld [vmem:[%s2 + $0x48] sm:$0xf]
      %v874 = vld [vmem:[%s2 + $0x4c] sm:$0xf]
      %v875 = vld [vmem:[%s2 + $0x50] sm:$0xf]
      %v876 = vld [vmem:[%s2 + $0x54] sm:$0xf]
      %v877 = vld [vmem:[%s2 + $0x58] sm:$0xf]
      %v878 = vld [vmem:[%s2 + $0x5c] sm:$0xf]
      %v879 = vrot.slane %v365, 7
      %v880 = vrot.slane %v366, 7
      %v881 = vsel %vm628, %v879, %v880
      %v882 = vsel %vm628, %v627, %v879
      %v883 = vsel %vm628, %v880, %v614
      %v884 = vsel %vm661, %v883, 0.0
      %v885 = vsel %vm662, %v641, 0.0
      %v886 = vsel %vm663, %v640, 0.0
      %v887 = vsel %vm664, %v639, 0.0
      %v888 = vsel %vm665, %v638, 0.0
      %v889 = vsel %vm666, %v637, 0.0
      %v890 = vsel %vm667, %v636, 0.0
      %v891 = vsel %vm668, %v635, 0.0
      %v892 = vsel %vm669, %v634, 0.0
      %v893 = vsel %vm670, %v633, 0.0
      %v894 = vsel %vm671, %v632, 0.0
      %v895 = vsel %vm672, %v631, 0.0
      %v896 = vsel %vm673, %v630, 0.0
      %v897 = vsel %vm674, %v629, 0.0
      %v898 = vsel %vm675, %v882, 0.0
      %v899 = vsel %vm676, %v881, 0.0
      %v900 = vpack.c.bf16 %v885, %v884
      %v901 = vpack.c.bf16 %v887, %v886
      %v902 = vpack.c.bf16 %v889, %v888
      %v903 = vpack.c.bf16 %v891, %v890
      %v904 = vpack.c.bf16 %v893, %v892
      %v905 = vpack.c.bf16 %v895, %v894
      %v906 = vpack.c.bf16 %v897, %v896
      %v907 = vpack.c.bf16 %v899, %v898
      %v908 = vpack.c.bf16 %v366, %v365
      %v909 = vrot.slane %v365, 1
      %v910 = vrot.slane %v366, 1
      %v911 = vsel %vm725, %v909, %v910
      %v912 = vsel %vm725, %v724, %v909
      %v913 = vsel %vm725, %v910, %v711
      %v914 = vsel %vm758, %v738, 0.0
      %v915 = vsel %vm759, %v737, 0.0
      %v916 = vsel %vm760, %v736, 0.0
      %v917 = vsel %vm761, %v735, 0.0
      %v918 = vsel %vm762, %v734, 0.0
      %v919 = vsel %vm763, %v733, 0.0
      %v920 = vsel %vm764, %v732, 0.0
      %v921 = vsel %vm765, %v731, 0.0
      %v922 = vsel %vm766, %v730, 0.0
      %v923 = vsel %vm767, %v729, 0.0
      %v924 = vsel %vm768, %v728, 0.0
      %v925 = vsel %vm769, %v727, 0.0
      %v926 = vsel %vm770, %v726, 0.0
      %v927 = vsel %vm771, %v912, 0.0
      %v928 = vsel %vm772, %v911, 0.0
      %v929 = vsel %vm773, %v913, 0.0
      %v930 = vpack.c.bf16 %v915, %v914
      %v931 = vpack.c.bf16 %v917, %v916
      %v932 = vpack.c.bf16 %v919, %v918
      %v933 = vpack.c.bf16 %v921, %v920
      %v934 = vpack.c.bf16 %v923, %v922
      %v935 = vpack.c.bf16 %v925, %v924
      %v936 = vpack.c.bf16 %v927, %v926
      %v937 = vpack.c.bf16 %v929, %v928
      %939 = vrot.lane.b32.xlu0 %v908, 64
      %v940 = vpop.permute.xlu0 %939
      %v942 = vsel %vm822, %v900, %v809
      %v945 = vsel %vm822, %v901, %v811
      %v948 = vsel %vm822, %v902, %v813
      %v951 = vsel %vm822, %v903, %v815
      %v954 = vsel %vm822, %v904, %v817
      %v957 = vsel %vm822, %v905, %v819
      %v960 = vsel %vm822, %v906, %v821
      %v964 = vsel %vm822, %v907, %v940
      %s966 = scalar_lea.vmem %s2, 96
      %v967 = vld [vmem:[%s966] sm:$0xf]
      %v968 = vld [vmem:[%s966 + $0x4] sm:$0xf]
      %v969 = vld [vmem:[%s966 + $0x8] sm:$0xf]
      %v970 = vld [vmem:[%s966 + $0xc] sm:$0xf]
      %v971 = vld [vmem:[%s966 + $0x10] sm:$0xf]
      %v972 = vld [vmem:[%s966 + $0x14] sm:$0xf]
      %v973 = vld [vmem:[%s966 + $0x18] sm:$0xf]
      %v974 = vld [vmem:[%s966 + $0x1c] sm:$0xf]
      %v975 = vld [vmem:[%s966 + $0x20] sm:$0xf]
      %v976 = vld [vmem:[%s966 + $0x24] sm:$0xf]
      %v977 = vld [vmem:[%s966 + $0x28] sm:$0xf]
      %v978 = vld [vmem:[%s966 + $0x2c] sm:$0xf]
      %v979 = vld [vmem:[%s966 + $0x30] sm:$0xf]
      %v980 = vld [vmem:[%s966 + $0x34] sm:$0xf]
      %v981 = vld [vmem:[%s966 + $0x38] sm:$0xf]
      %v982 = vld [vmem:[%s966 + $0x3c] sm:$0xf]
      %v983 = vld [vmem:[%s966 + $0x40] sm:$0xf]
      %v984 = vld [vmem:[%s966 + $0x44] sm:$0xf]
      %v985 = vld [vmem:[%s966 + $0x48] sm:$0xf]
      %v986 = vld [vmem:[%s966 + $0x4c] sm:$0xf]
      %v987 = vld [vmem:[%s966 + $0x50] sm:$0xf]
      %v988 = vld [vmem:[%s966 + $0x54] sm:$0xf]
      %v989 = vld [vmem:[%s966 + $0x58] sm:$0xf]
      %v990 = vld [vmem:[%s966 + $0x5c] sm:$0xf]
      %v1015 = vunpack.c.l.b16 %v967
      %v1016 = vunpack.c.l.b16 %v968
      %v1017 = vunpack.c.l.b16 %v969
      %v1018 = vunpack.c.l.b16 %v970
      %v1019 = vunpack.c.l.b16 %v971
      %v1020 = vunpack.c.l.b16 %v972
      %v1021 = vunpack.c.l.b16 %v973
      %v1022 = vunpack.c.l.b16 %v974
      %v1023 = vunpack.c.l.b16 %v975
      %v1024 = vunpack.c.l.b16 %v976
      %v1025 = vunpack.c.l.b16 %v977
      %v1026 = vunpack.c.l.b16 %v978
      %v1027 = vunpack.c.l.b16 %v979
      %v1028 = vunpack.c.l.b16 %v980
      %v1029 = vunpack.c.l.b16 %v981
      %v1030 = vunpack.c.l.b16 %v982
      %v1031 = vunpack.c.l.b16 %v983
      %v1032 = vunpack.c.l.b16 %v984
      %v1033 = vunpack.c.l.b16 %v985
      %v1034 = vunpack.c.l.b16 %v986
      %v1035 = vunpack.c.l.b16 %v987
      %v1036 = vunpack.c.l.b16 %v988
      %v1037 = vunpack.c.l.b16 %v989
      %v1038 = vunpack.c.l.b16 %v990
      %v1039 = vpack.c.b16 %v1016, %v1015
      %v1040 = vpack.c.b16 %v1018, %v1017
      %v1041 = vpack.c.b16 %v1020, %v1019
      %v1042 = vpack.c.b16 %v1022, %v1021
      %v1043 = vpack.c.b16 %v1024, %v1023
      %v1044 = vpack.c.b16 %v1026, %v1025
      %v1045 = vpack.c.b16 %v1028, %v1027
      %v1046 = vpack.c.b16 %v1030, %v1029
      %v1047 = vpack.c.b16 %v1032, %v1031
      %v1048 = vpack.c.b16 %v1034, %v1033
      %v1049 = vpack.c.b16 %v1036, %v1035
      %v1050 = vpack.c.b16 %v1038, %v1037
      %v1064 = vsel %vm822, %v930, 0
      %v1067 = vsel %vm822, %v931, 0
      %v1070 = vsel %vm822, %v932, 0
      %v1073 = vsel %vm822, %v933, 0
      %v1076 = vsel %vm822, %v934, 0
      %v1079 = vsel %vm822, %v935, 0
      %v1082 = vsel %vm822, %v936, 0
      %v1085 = vsel %vm822, %v937, 0
      %1087 = vmatprep.subr.bf16.mxu0 0
      %1088 = vmatpush1.bf16.msra.mxu0 %v1046
      %1089 = vmatprep.subr.bf16.mxu0 0
      %1090 = vmatpush1.bf16.msra.mxu0 %v1045
      %1091 = vmatprep.subr.bf16.mxu0 0
      %1092 = vmatpush1.bf16.msra.mxu0 %v1044
      %1093 = vmatprep.subr.bf16.mxu0 0
      %1094 = vmatpush1.bf16.msra.mxu0 %v1043
      %1095 = vmatprep.subr.bf16.mxu0 0
      %1096 = vmatpush1.bf16.msra.mxu0 %v1042
      %1097 = vmatprep.subr.bf16.mxu0 0
      %1098 = vmatpush1.bf16.msra.mxu0 %v1041
      %1099 = vmatprep.subr.bf16.mxu0 0
      %1100 = vmatpush1.bf16.msra.mxu0 %v1040
      %1101 = vmatprep.subr.bf16.mxu0 0
      %1102 = vmatpush1.bf16.msra.mxu0 %v1039
      %1103 = vmatprep.subr.bf16.mxu0 0
      %1104 = vmatpush2.bf16.msra.mxu0 0
      %1105 = vmatprep.subr.bf16.mxu0 0
      %1106 = vmatpush2.bf16.msra.mxu0 0
      %1107 = vmatprep.subr.bf16.mxu0 0
      %1108 = vmatpush2.bf16.msra.mxu0 0
      %1109 = vmatprep.subr.bf16.mxu0 0
      %1110 = vmatpush2.bf16.msra.mxu0 0
      %1111 = vmatprep.subr.bf16.mxu0 0
      %1112 = vmatpush2.bf16.msra.mxu0 %v1050
      %1113 = vmatprep.subr.bf16.mxu0 0
      %1114 = vmatpush2.bf16.msra.mxu0 %v1049
      %1115 = vmatprep.subr.bf16.mxu0 0
      %1116 = vmatpush2.bf16.msra.mxu0 %v1048
      %1117 = vmatprep.subr.bf16.mxu0 0
      %1118 = vmatpush2.bf16.msra.mxu0 %v1047
      %1119 = vmatprep.mubr.bf16.mxu0 %v1064
      %1120 = vmatmul.mubr.bf16.gmra.mxu0 %v942
      %v1121 = vpop.f32.mrf.mxu0
      %v1122 = vadd.f32 0.0, %v1121
      %v1123 = vpop.f32.mrf.mxu0
      %v1124 = vpop.f32.mrf.mxu0
      %v1125 = vadd.f32 0.0, %v1124
      %v1126 = vpop.f32.mrf.mxu0
      %1127 = vmatprep.mubr.bf16.mxu0 %v1067
      %1128 = vmatmul.mubr.bf16.gmra.mxu0 %v945
      %v1129 = vpop.f32.mrf.mxu0
      %v1130 = vadd.f32 0.0, %v1129
      %v1131 = vpop.f32.mrf.mxu0
      %v1132 = vpop.f32.mrf.mxu0
      %v1133 = vadd.f32 0.0, %v1132
      %v1134 = vpop.f32.mrf.mxu0
      %1135 = vmatprep.mubr.bf16.mxu0 %v1070
      %1136 = vmatmul.mubr.bf16.gmra.mxu0 %v948
      %v1137 = vpop.f32.mrf.mxu0
      %v1138 = vadd.f32 0.0, %v1137
      %v1139 = vpop.f32.mrf.mxu0
      %v1140 = vpop.f32.mrf.mxu0
      %v1141 = vadd.f32 0.0, %v1140
      %v1142 = vpop.f32.mrf.mxu0
      %1143 = vmatprep.mubr.bf16.mxu0 %v1073
      %1144 = vmatmul.mubr.bf16.gmra.mxu0 %v951
      %v1145 = vpop.f32.mrf.mxu0
      %v1146 = vadd.f32 0.0, %v1145
      %v1147 = vpop.f32.mrf.mxu0
      %v1148 = vpop.f32.mrf.mxu0
      %v1149 = vadd.f32 0.0, %v1148
      %v1150 = vpop.f32.mrf.mxu0
      %1151 = vmatprep.mubr.bf16.mxu0 %v1076
      %1152 = vmatmul.mubr.bf16.gmra.mxu0 %v954
      %v1153 = vpop.f32.mrf.mxu0
      %v1154 = vadd.f32 0.0, %v1153
      %v1155 = vpop.f32.mrf.mxu0
      %v1156 = vpop.f32.mrf.mxu0
      %v1157 = vadd.f32 0.0, %v1156
      %v1158 = vpop.f32.mrf.mxu0
      %1159 = vmatprep.mubr.bf16.mxu0 %v1079
      %1160 = vmatmul.mubr.bf16.gmra.mxu0 %v957
      %v1161 = vpop.f32.mrf.mxu0
      %v1162 = vadd.f32 0.0, %v1161
      %v1163 = vpop.f32.mrf.mxu0
      %v1164 = vpop.f32.mrf.mxu0
      %v1165 = vadd.f32 0.0, %v1164
      %v1166 = vpop.f32.mrf.mxu0
      %1167 = vmatprep.mubr.bf16.mxu0 %v1082
      %1168 = vmatmul.mubr.bf16.gmra.mxu0 %v960
      %v1169 = vpop.f32.mrf.mxu0
      %v1170 = vadd.f32 0.0, %v1169
      %v1171 = vpop.f32.mrf.mxu0
      %v1172 = vpop.f32.mrf.mxu0
      %v1173 = vadd.f32 0.0, %v1172
      %v1174 = vpop.f32.mrf.mxu0
      %1175 = vmatprep.mubr.bf16.mxu0 %v1085
      %1176 = vmatmul.mubr.bf16.gmra.mxu0 %v964
      %v1177 = vpop.f32.mrf.mxu0
      %v1178 = vadd.f32 0.0, %v1177
      %v1179 = vpop.f32.mrf.mxu0
      %v1180 = vpop.f32.mrf.mxu0
      %v1181 = vadd.f32 0.0, %v1180
      %v1182 = vpop.f32.mrf.mxu0
      %1183 = vdwg.mxu0
      %v1208 = vunpack.c.l.b16 %v855
      %v1209 = vunpack.c.l.b16 %v856
      %v1210 = vunpack.c.l.b16 %v857
      %v1211 = vunpack.c.l.b16 %v858
      %v1212 = vunpack.c.l.b16 %v859
      %v1213 = vunpack.c.l.b16 %v860
      %v1214 = vunpack.c.l.b16 %v861
      %v1215 = vunpack.c.l.b16 %v862
      %v1216 = vunpack.c.l.b16 %v863
      %v1217 = vunpack.c.l.b16 %v864
      %v1218 = vunpack.c.l.b16 %v865
      %v1219 = vunpack.c.l.b16 %v866
      %v1220 = vunpack.c.l.b16 %v867
      %v1221 = vunpack.c.l.b16 %v868
      %v1222 = vunpack.c.l.b16 %v869
      %v1223 = vunpack.c.l.b16 %v870
      %v1224 = vunpack.c.l.b16 %v871
      %v1225 = vunpack.c.l.b16 %v872
      %v1226 = vunpack.c.l.b16 %v873
      %v1227 = vunpack.c.l.b16 %v874
      %v1228 = vunpack.c.l.b16 %v875
      %v1229 = vunpack.c.l.b16 %v876
      %v1230 = vunpack.c.l.b16 %v877
      %v1231 = vunpack.c.l.b16 %v878
      %v1232 = vpack.c.b16 %v1209, %v1208
      %v1233 = vpack.c.b16 %v1211, %v1210
      %v1234 = vpack.c.b16 %v1213, %v1212
      %v1235 = vpack.c.b16 %v1215, %v1214
      %v1236 = vpack.c.b16 %v1217, %v1216
      %v1237 = vpack.c.b16 %v1219, %v1218
      %v1238 = vpack.c.b16 %v1221, %v1220
      %v1239 = vpack.c.b16 %v1223, %v1222
      %v1240 = vpack.c.b16 %v1225, %v1224
      %v1241 = vpack.c.b16 %v1227, %v1226
      %v1242 = vpack.c.b16 %v1229, %v1228
      %v1243 = vpack.c.b16 %v1231, %v1230
      %v1257 = vsel %vm822, %v790, 0
      %v1260 = vsel %vm822, %v791, 0
      %v1263 = vsel %vm822, %v792, 0
      %v1266 = vsel %vm822, %v793, 0
      %v1269 = vsel %vm822, %v794, 0
      %v1272 = vsel %vm822, %v795, 0
      %v1275 = vsel %vm822, %v796, 0
      %v1278 = vsel %vm822, %v797, 0
      %1280 = vmatprep.subr.bf16.mxu0 0
      %1281 = vmatpush1.bf16.msra.mxu0 %v1239
      %1282 = vmatprep.subr.bf16.mxu0 0
      %1283 = vmatpush1.bf16.msra.mxu0 %v1238
      %1284 = vmatprep.subr.bf16.mxu0 0
      %1285 = vmatpush1.bf16.msra.mxu0 %v1237
      %1286 = vmatprep.subr.bf16.mxu0 0
      %1287 = vmatpush1.bf16.msra.mxu0 %v1236
      %1288 = vmatprep.subr.bf16.mxu0 0
      %1289 = vmatpush1.bf16.msra.mxu0 %v1235
      %1290 = vmatprep.subr.bf16.mxu0 0
      %1291 = vmatpush1.bf16.msra.mxu0 %v1234
      %1292 = vmatprep.subr.bf16.mxu0 0
      %1293 = vmatpush1.bf16.msra.mxu0 %v1233
      %1294 = vmatprep.subr.bf16.mxu0 0
      %1295 = vmatpush1.bf16.msra.mxu0 %v1232
      %1296 = vmatprep.subr.bf16.mxu0 0
      %1297 = vmatpush2.bf16.msra.mxu0 0
      %1298 = vmatprep.subr.bf16.mxu0 0
      %1299 = vmatpush2.bf16.msra.mxu0 0
      %1300 = vmatprep.subr.bf16.mxu0 0
      %1301 = vmatpush2.bf16.msra.mxu0 0
      %1302 = vmatprep.subr.bf16.mxu0 0
      %1303 = vmatpush2.bf16.msra.mxu0 0
      %1304 = vmatprep.subr.bf16.mxu0 0
      %1305 = vmatpush2.bf16.msra.mxu0 %v1243
      %1306 = vmatprep.subr.bf16.mxu0 0
      %1307 = vmatpush2.bf16.msra.mxu0 %v1242
      %1308 = vmatprep.subr.bf16.mxu0 0
      %1309 = vmatpush2.bf16.msra.mxu0 %v1241
      %1310 = vmatprep.subr.bf16.mxu0 0
      %1311 = vmatpush2.bf16.msra.mxu0 %v1240
      %1312 = vmatprep.mubr.bf16.mxu0 %v1257
      %1313 = vmatmul.mubr.bf16.gmra.mxu0 %v825
      %v1314 = vpop.f32.mrf.mxu0
      %v1315 = vadd.f32 %v1122, %v1314
      %v1316 = vpop.f32.mrf.mxu0
      %v1317 = vpop.f32.mrf.mxu0
      %v1318 = vadd.f32 %v1125, %v1317
      %v1319 = vpop.f32.mrf.mxu0
      %1320 = vmatprep.mubr.bf16.mxu0 %v1260
      %1321 = vmatmul.mubr.bf16.gmra.mxu0 %v829
      %v1322 = vpop.f32.mrf.mxu0
      %v1323 = vadd.f32 %v1130, %v1322
      %v1324 = vpop.f32.mrf.mxu0
      %v1325 = vpop.f32.mrf.mxu0
      %v1326 = vadd.f32 %v1133, %v1325
      %v1327 = vpop.f32.mrf.mxu0
      %1328 = vmatprep.mubr.bf16.mxu0 %v1263
      %1329 = vmatmul.mubr.bf16.gmra.mxu0 %v833
      %v1330 = vpop.f32.mrf.mxu0
      %v1331 = vadd.f32 %v1138, %v1330
      %v1332 = vpop.f32.mrf.mxu0
      %v1333 = vpop.f32.mrf.mxu0
      %v1334 = vadd.f32 %v1141, %v1333
      %v1335 = vpop.f32.mrf.mxu0
      %1336 = vmatprep.mubr.bf16.mxu0 %v1266
      %1337 = vmatmul.mubr.bf16.gmra.mxu0 %v837
      %v1338 = vpop.f32.mrf.mxu0
      %v1339 = vadd.f32 %v1146, %v1338
      %v1340 = vpop.f32.mrf.mxu0
      %v1341 = vpop.f32.mrf.mxu0
      %v1342 = vadd.f32 %v1149, %v1341
      %v1343 = vpop.f32.mrf.mxu0
      %1344 = vmatprep.mubr.bf16.mxu0 %v1269
      %1345 = vmatmul.mubr.bf16.gmra.mxu0 %v841
      %v1346 = vpop.f32.mrf.mxu0
      %v1347 = vadd.f32 %v1154, %v1346
      %v1348 = vpop.f32.mrf.mxu0
      %v1349 = vpop.f32.mrf.mxu0
      %v1350 = vadd.f32 %v1157, %v1349
      %v1351 = vpop.f32.mrf.mxu0
      %1352 = vmatprep.mubr.bf16.mxu0 %v1272
      %1353 = vmatmul.mubr.bf16.gmra.mxu0 %v845
      %v1354 = vpop.f32.mrf.mxu0
      %v1355 = vadd.f32 %v1162, %v1354
      %v1356 = vpop.f32.mrf.mxu0
      %v1357 = vpop.f32.mrf.mxu0
      %v1358 = vadd.f32 %v1165, %v1357
      %v1359 = vpop.f32.mrf.mxu0
      %1360 = vmatprep.mubr.bf16.mxu0 %v1275
      %1361 = vmatmul.mubr.bf16.gmra.mxu0 %v849
      %v1362 = vpop.f32.mrf.mxu0
      %v1363 = vadd.f32 %v1170, %v1362
      %v1364 = vpop.f32.mrf.mxu0
      %v1365 = vpop.f32.mrf.mxu0
      %v1366 = vadd.f32 %v1173, %v1365
      %v1367 = vpop.f32.mrf.mxu0
      %1368 = vmatprep.mubr.bf16.mxu0 %v1278
      %1369 = vmatmul.mubr.bf16.gmra.mxu0 %v853
      %v1370 = vpop.f32.mrf.mxu0
      %v1371 = vadd.f32 %v1178, %v1370
      %v1372 = vpop.f32.mrf.mxu0
      %v1373 = vpop.f32.mrf.mxu0
      %v1374 = vadd.f32 %v1181, %v1373
      %v1375 = vpop.f32.mrf.mxu0
      %1376 = vdwg.mxu0
      %v1377 = vrot.slane %v369, 7
      %v1378 = vrot.slane %v370, 7
      %v1379 = vsel %vm628, %v1377, %v1378
      %v1380 = vsel %vm628, %v880, %v1377
      %v1381 = vsel %vm628, %v1378, %v616
      %v1382 = vsel %vm661, %v1381, 0.0
      %v1383 = vsel %vm662, %v639, 0.0
      %v1384 = vsel %vm663, %v638, 0.0
      %v1385 = vsel %vm664, %v637, 0.0
      %v1386 = vsel %vm665, %v636, 0.0
      %v1387 = vsel %vm666, %v635, 0.0
      %v1388 = vsel %vm667, %v634, 0.0
      %v1389 = vsel %vm668, %v633, 0.0
      %v1390 = vsel %vm669, %v632, 0.0
      %v1391 = vsel %vm670, %v631, 0.0
      %v1392 = vsel %vm671, %v630, 0.0
      %v1393 = vsel %vm672, %v629, 0.0
      %v1394 = vsel %vm673, %v882, 0.0
      %v1395 = vsel %vm674, %v881, 0.0
      %v1396 = vsel %vm675, %v1380, 0.0
      %v1397 = vsel %vm676, %v1379, 0.0
      %v1398 = vpack.c.bf16 %v1383, %v1382
      %v1399 = vpack.c.bf16 %v1385, %v1384
      %v1400 = vpack.c.bf16 %v1387, %v1386
      %v1401 = vpack.c.bf16 %v1389, %v1388
      %v1402 = vpack.c.bf16 %v1391, %v1390
      %v1403 = vpack.c.bf16 %v1393, %v1392
      %v1404 = vpack.c.bf16 %v1395, %v1394
      %v1405 = vpack.c.bf16 %v1397, %v1396
      %v1406 = vpack.c.bf16 %v370, %v369
      %v1407 = vrot.slane %v369, 1
      %v1408 = vrot.slane %v370, 1
      %v1409 = vsel %vm725, %v1407, %v1408
      %v1410 = vsel %vm725, %v910, %v1407
      %v1411 = vsel %vm725, %v1408, %v713
      %v1412 = vsel %vm758, %v736, 0.0
      %v1413 = vsel %vm759, %v735, 0.0
      %v1414 = vsel %vm760, %v734, 0.0
      %v1415 = vsel %vm761, %v733, 0.0
      %v1416 = vsel %vm762, %v732, 0.0
      %v1417 = vsel %vm763, %v731, 0.0
      %v1418 = vsel %vm764, %v730, 0.0
      %v1419 = vsel %vm765, %v729, 0.0
      %v1420 = vsel %vm766, %v728, 0.0
      %v1421 = vsel %vm767, %v727, 0.0
      %v1422 = vsel %vm768, %v726, 0.0
      %v1423 = vsel %vm769, %v912, 0.0
      %v1424 = vsel %vm770, %v911, 0.0
      %v1425 = vsel %vm771, %v1410, 0.0
      %v1426 = vsel %vm772, %v1409, 0.0
      %v1427 = vsel %vm773, %v1411, 0.0
      %v1428 = vpack.c.bf16 %v1413, %v1412
      %v1429 = vpack.c.bf16 %v1415, %v1414
      %v1430 = vpack.c.bf16 %v1417, %v1416
      %v1431 = vpack.c.bf16 %v1419, %v1418
      %v1432 = vpack.c.bf16 %v1421, %v1420
      %v1433 = vpack.c.bf16 %v1423, %v1422
      %v1434 = vpack.c.bf16 %v1425, %v1424
      %v1435 = vpack.c.bf16 %v1427, %v1426
      %1437 = vrot.lane.b32.xlu0 %v1406, 64
      %v1438 = vpop.permute.xlu0 %1437
      %v1440 = vsel %vm822, %v1398, %v811
      %v1443 = vsel %vm822, %v1399, %v813
      %v1446 = vsel %vm822, %v1400, %v815
      %v1449 = vsel %vm822, %v1401, %v817
      %v1452 = vsel %vm822, %v1402, %v819
      %v1455 = vsel %vm822, %v1403, %v821
      %v1458 = vsel %vm822, %v1404, %v940
      %v1462 = vsel %vm822, %v1405, %v1438
      %s1464 = scalar_lea.vmem %s2, 192
      %v1465 = vld [vmem:[%s1464] sm:$0xf]
      %v1466 = vld [vmem:[%s1464 + $0x4] sm:$0xf]
      %v1467 = vld [vmem:[%s1464 + $0x8] sm:$0xf]
      %v1468 = vld [vmem:[%s1464 + $0xc] sm:$0xf]
      %v1469 = vld [vmem:[%s1464 + $0x10] sm:$0xf]
      %v1470 = vld [vmem:[%s1464 + $0x14] sm:$0xf]
      %v1471 = vld [vmem:[%s1464 + $0x18] sm:$0xf]
      %v1472 = vld [vmem:[%s1464 + $0x1c] sm:$0xf]
      %v1473 = vld [vmem:[%s1464 + $0x20] sm:$0xf]
      %v1474 = vld [vmem:[%s1464 + $0x24] sm:$0xf]
      %v1475 = vld [vmem:[%s1464 + $0x28] sm:$0xf]
      %v1476 = vld [vmem:[%s1464 + $0x2c] sm:$0xf]
      %v1477 = vld [vmem:[%s1464 + $0x30] sm:$0xf]
      %v1478 = vld [vmem:[%s1464 + $0x34] sm:$0xf]
      %v1479 = vld [vmem:[%s1464 + $0x38] sm:$0xf]
      %v1480 = vld [vmem:[%s1464 + $0x3c] sm:$0xf]
      %v1481 = vld [vmem:[%s1464 + $0x40] sm:$0xf]
      %v1482 = vld [vmem:[%s1464 + $0x44] sm:$0xf]
      %v1483 = vld [vmem:[%s1464 + $0x48] sm:$0xf]
      %v1484 = vld [vmem:[%s1464 + $0x4c] sm:$0xf]
      %v1485 = vld [vmem:[%s1464 + $0x50] sm:$0xf]
      %v1486 = vld [vmem:[%s1464 + $0x54] sm:$0xf]
      %v1487 = vld [vmem:[%s1464 + $0x58] sm:$0xf]
      %v1488 = vld [vmem:[%s1464 + $0x5c] sm:$0xf]
      %v1513 = vunpack.c.l.b16 %v1465
      %v1514 = vunpack.c.l.b16 %v1466
      %v1515 = vunpack.c.l.b16 %v1467
      %v1516 = vunpack.c.l.b16 %v1468
      %v1517 = vunpack.c.l.b16 %v1469
      %v1518 = vunpack.c.l.b16 %v1470
      %v1519 = vunpack.c.l.b16 %v1471
      %v1520 = vunpack.c.l.b16 %v1472
      %v1521 = vunpack.c.l.b16 %v1473
      %v1522 = vunpack.c.l.b16 %v1474
      %v1523 = vunpack.c.l.b16 %v1475
      %v1524 = vunpack.c.l.b16 %v1476
      %v1525 = vunpack.c.l.b16 %v1477
      %v1526 = vunpack.c.l.b16 %v1478
      %v1527 = vunpack.c.l.b16 %v1479
      %v1528 = vunpack.c.l.b16 %v1480
      %v1529 = vunpack.c.l.b16 %v1481
      %v1530 = vunpack.c.l.b16 %v1482
      %v1531 = vunpack.c.l.b16 %v1483
      %v1532 = vunpack.c.l.b16 %v1484
      %v1533 = vunpack.c.l.b16 %v1485
      %v1534 = vunpack.c.l.b16 %v1486
      %v1535 = vunpack.c.l.b16 %v1487
      %v1536 = vunpack.c.l.b16 %v1488
      %v1537 = vpack.c.b16 %v1514, %v1513
      %v1538 = vpack.c.b16 %v1516, %v1515
      %v1539 = vpack.c.b16 %v1518, %v1517
      %v1540 = vpack.c.b16 %v1520, %v1519
      %v1541 = vpack.c.b16 %v1522, %v1521
      %v1542 = vpack.c.b16 %v1524, %v1523
      %v1543 = vpack.c.b16 %v1526, %v1525
      %v1544 = vpack.c.b16 %v1528, %v1527
      %v1545 = vpack.c.b16 %v1530, %v1529
      %v1546 = vpack.c.b16 %v1532, %v1531
      %v1547 = vpack.c.b16 %v1534, %v1533
      %v1548 = vpack.c.b16 %v1536, %v1535
      %v1562 = vsel %vm822, %v1428, 0
      %v1565 = vsel %vm822, %v1429, 0
      %v1568 = vsel %vm822, %v1430, 0
      %v1571 = vsel %vm822, %v1431, 0
      %v1574 = vsel %vm822, %v1432, 0
      %v1577 = vsel %vm822, %v1433, 0
      %v1580 = vsel %vm822, %v1434, 0
      %v1583 = vsel %vm822, %v1435, 0
      %1585 = vmatprep.subr.bf16.mxu0 0
      %1586 = vmatpush1.bf16.msra.mxu0 %v1544
      %1587 = vmatprep.subr.bf16.mxu0 0
      %1588 = vmatpush1.bf16.msra.mxu0 %v1543
      %1589 = vmatprep.subr.bf16.mxu0 0
      %1590 = vmatpush1.bf16.msra.mxu0 %v1542
      %1591 = vmatprep.subr.bf16.mxu0 0
      %1592 = vmatpush1.bf16.msra.mxu0 %v1541
      %1593 = vmatprep.subr.bf16.mxu0 0
      %1594 = vmatpush1.bf16.msra.mxu0 %v1540
      %1595 = vmatprep.subr.bf16.mxu0 0
      %1596 = vmatpush1.bf16.msra.mxu0 %v1539
      %1597 = vmatprep.subr.bf16.mxu0 0
      %1598 = vmatpush1.bf16.msra.mxu0 %v1538
      %1599 = vmatprep.subr.bf16.mxu0 0
      %1600 = vmatpush1.bf16.msra.mxu0 %v1537
      %1601 = vmatprep.subr.bf16.mxu0 0
      %1602 = vmatpush2.bf16.msra.mxu0 0
      %1603 = vmatprep.subr.bf16.mxu0 0
      %1604 = vmatpush2.bf16.msra.mxu0 0
      %1605 = vmatprep.subr.bf16.mxu0 0
      %1606 = vmatpush2.bf16.msra.mxu0 0
      %1607 = vmatprep.subr.bf16.mxu0 0
      %1608 = vmatpush2.bf16.msra.mxu0 0
      %1609 = vmatprep.subr.bf16.mxu0 0
      %1610 = vmatpush2.bf16.msra.mxu0 %v1548
      %1611 = vmatprep.subr.bf16.mxu0 0
      %1612 = vmatpush2.bf16.msra.mxu0 %v1547
      %1613 = vmatprep.subr.bf16.mxu0 0
      %1614 = vmatpush2.bf16.msra.mxu0 %v1546
      %1615 = vmatprep.subr.bf16.mxu0 0
      %1616 = vmatpush2.bf16.msra.mxu0 %v1545
      %1617 = vmatprep.mubr.bf16.mxu0 %v1562
      %1618 = vmatmul.mubr.bf16.gmra.mxu0 %v1440
      %v1619 = vpop.f32.mrf.mxu0
      %v1620 = vadd.f32 0.0, %v1619
      %v1621 = vpop.f32.mrf.mxu0
      %v1622 = vpop.f32.mrf.mxu0
      %v1623 = vadd.f32 0.0, %v1622
      %v1624 = vpop.f32.mrf.mxu0
      %1625 = vmatprep.mubr.bf16.mxu0 %v1565
      %1626 = vmatmul.mubr.bf16.gmra.mxu0 %v1443
      %v1627 = vpop.f32.mrf.mxu0
      %v1628 = vadd.f32 0.0, %v1627
      %v1629 = vpop.f32.mrf.mxu0
      %v1630 = vpop.f32.mrf.mxu0
      %v1631 = vadd.f32 0.0, %v1630
      %v1632 = vpop.f32.mrf.mxu0
      %1633 = vmatprep.mubr.bf16.mxu0 %v1568
      %1634 = vmatmul.mubr.bf16.gmra.mxu0 %v1446
      %v1635 = vpop.f32.mrf.mxu0
      %v1636 = vadd.f32 0.0, %v1635
      %v1637 = vpop.f32.mrf.mxu0
      %v1638 = vpop.f32.mrf.mxu0
      %v1639 = vadd.f32 0.0, %v1638
      %v1640 = vpop.f32.mrf.mxu0
      %1641 = vmatprep.mubr.bf16.mxu0 %v1571
      %1642 = vmatmul.mubr.bf16.gmra.mxu0 %v1449
      %v1643 = vpop.f32.mrf.mxu0
      %v1644 = vadd.f32 0.0, %v1643
      %v1645 = vpop.f32.mrf.mxu0
      %v1646 = vpop.f32.mrf.mxu0
      %v1647 = vadd.f32 0.0, %v1646
      %v1648 = vpop.f32.mrf.mxu0
      %1649 = vmatprep.mubr.bf16.mxu0 %v1574
      %1650 = vmatmul.mubr.bf16.gmra.mxu0 %v1452
      %v1651 = vpop.f32.mrf.mxu0
      %v1652 = vadd.f32 0.0, %v1651
      %v1653 = vpop.f32.mrf.mxu0
      %v1654 = vpop.f32.mrf.mxu0
      %v1655 = vadd.f32 0.0, %v1654
      %v1656 = vpop.f32.mrf.mxu0
      %1657 = vmatprep.mubr.bf16.mxu0 %v1577
      %1658 = vmatmul.mubr.bf16.gmra.mxu0 %v1455
      %v1659 = vpop.f32.mrf.mxu0
      %v1660 = vadd.f32 0.0, %v1659
      %v1661 = vpop.f32.mrf.mxu0
      %v1662 = vpop.f32.mrf.mxu0
      %v1663 = vadd.f32 0.0, %v1662
      %v1664 = vpop.f32.mrf.mxu0
      %1665 = vmatprep.mubr.bf16.mxu0 %v1580
      %1666 = vmatmul.mubr.bf16.gmra.mxu0 %v1458
      %v1667 = vpop.f32.mrf.mxu0
      %v1668 = vadd.f32 0.0, %v1667
      %v1669 = vpop.f32.mrf.mxu0
      %v1670 = vpop.f32.mrf.mxu0
      %v1671 = vadd.f32 0.0, %v1670
      %v1672 = vpop.f32.mrf.mxu0
      %1673 = vmatprep.mubr.bf16.mxu0 %v1583
      %1674 = vmatmul.mubr.bf16.gmra.mxu0 %v1462
      %v1675 = vpop.f32.mrf.mxu0
      %v1676 = vadd.f32 0.0, %v1675
      %v1677 = vpop.f32.mrf.mxu0
      %v1678 = vpop.f32.mrf.mxu0
      %v1679 = vadd.f32 0.0, %v1678
      %v1680 = vpop.f32.mrf.mxu0
      %1681 = vdwg.mxu0
      %v1682 = vadd.f32 %v1315, %v1620
      %v1683 = vadd.f32 %v1318, %v1623
      %v1684 = vadd.f32 %v1323, %v1628
      %v1685 = vadd.f32 %v1326, %v1631
      %v1686 = vadd.f32 %v1331, %v1636
      %v1687 = vadd.f32 %v1334, %v1639
      %v1688 = vadd.f32 %v1339, %v1644
      %v1689 = vadd.f32 %v1342, %v1647
      %v1690 = vadd.f32 %v1347, %v1652
      %v1691 = vadd.f32 %v1350, %v1655
      %v1692 = vadd.f32 %v1355, %v1660
      %v1693 = vadd.f32 %v1358, %v1663
      %v1694 = vadd.f32 %v1363, %v1668
      %v1695 = vadd.f32 %v1366, %v1671
      %v1696 = vadd.f32 %v1371, %v1676
      %v1697 = vadd.f32 %v1374, %v1679
      %1698 = vst.msk [vmem:[%s282] sm:$0xff] %vm822, %v1682
      %1699 = vst.msk [vmem:[%s282 + $0x8] sm:$0xff] %vm822, %v1683
      %1700 = vst.msk [vmem:[%s282 + $0x10] sm:$0xff] %vm822, %v1684
      %1701 = vst.msk [vmem:[%s282 + $0x18] sm:$0xff] %vm822, %v1685
      %1702 = vst.msk [vmem:[%s282 + $0x20] sm:$0xff] %vm822, %v1686
      %1703 = vst.msk [vmem:[%s282 + $0x28] sm:$0xff] %vm822, %v1687
      %1704 = vst.msk [vmem:[%s282 + $0x30] sm:$0xff] %vm822, %v1688
      %1705 = vst.msk [vmem:[%s282 + $0x38] sm:$0xff] %vm822, %v1689
      %1706 = vst.msk [vmem:[%s282 + $0x40] sm:$0xff] %vm822, %v1690
      %1707 = vst.msk [vmem:[%s282 + $0x48] sm:$0xff] %vm822, %v1691
      %1708 = vst.msk [vmem:[%s282 + $0x50] sm:$0xff] %vm822, %v1692
      %1709 = vst.msk [vmem:[%s282 + $0x58] sm:$0xff] %vm822, %v1693
      %1710 = vst.msk [vmem:[%s282 + $0x60] sm:$0xff] %vm822, %v1694
      %1711 = vst.msk [vmem:[%s282 + $0x68] sm:$0xff] %vm822, %v1695
      %1712 = vst.msk [vmem:[%s282 + $0x70] sm:$0xff] %vm822, %v1696
      %1713 = vst.msk [vmem:[%s282 + $0x78] sm:$0xff] %vm822, %v1697
      %v1714 = vmul.f32 %v1682, %v1682
      %v1715 = vmul.f32 %v1683, %v1683
      %v1716 = vmul.f32 %v1684, %v1684
      %v1717 = vmul.f32 %v1685, %v1685
      %v1718 = vmul.f32 %v1686, %v1686
      %v1719 = vmul.f32 %v1687, %v1687
      %v1720 = vmul.f32 %v1688, %v1688
      %v1721 = vmul.f32 %v1689, %v1689
      %v1722 = vmul.f32 %v1690, %v1690
      %v1723 = vmul.f32 %v1691, %v1691
      %v1724 = vmul.f32 %v1692, %v1692
      %v1725 = vmul.f32 %v1693, %v1693
      %v1726 = vmul.f32 %v1694, %v1694
      %v1727 = vmul.f32 %v1695, %v1695
      %v1728 = vmul.f32 %v1696, %v1696
      %v1729 = vmul.f32 %v1697, %v1697
      %1746 = vrot.lane.b32.xlu0 %v1714, 64
      %v1747 = vpop.permute.xlu0 %1746
      %1748 = vrot.lane.b32.xlu0 %v1715, 64
      %v1749 = vpop.permute.xlu0 %1748
      %1750 = vrot.lane.b32.xlu0 %v1716, 64
      %v1751 = vpop.permute.xlu0 %1750
      %1752 = vrot.lane.b32.xlu0 %v1717, 64
      %v1753 = vpop.permute.xlu0 %1752
      %1754 = vrot.lane.b32.xlu0 %v1718, 64
      %v1755 = vpop.permute.xlu0 %1754
      %1756 = vrot.lane.b32.xlu0 %v1719, 64
      %v1757 = vpop.permute.xlu0 %1756
      %1758 = vrot.lane.b32.xlu0 %v1720, 64
      %v1759 = vpop.permute.xlu0 %1758
      %1760 = vrot.lane.b32.xlu0 %v1721, 64
      %v1761 = vpop.permute.xlu0 %1760
      %1762 = vrot.lane.b32.xlu0 %v1722, 64
      %v1763 = vpop.permute.xlu0 %1762
      %1764 = vrot.lane.b32.xlu0 %v1723, 64
      %v1765 = vpop.permute.xlu0 %1764
      %1766 = vrot.lane.b32.xlu0 %v1724, 64
      %v1767 = vpop.permute.xlu0 %1766
      %1768 = vrot.lane.b32.xlu0 %v1725, 64
      %v1769 = vpop.permute.xlu0 %1768
      %1770 = vrot.lane.b32.xlu0 %v1726, 64
      %v1771 = vpop.permute.xlu0 %1770
      %1772 = vrot.lane.b32.xlu0 %v1727, 64
      %v1773 = vpop.permute.xlu0 %1772
      %1774 = vrot.lane.b32.xlu0 %v1728, 64
      %v1775 = vpop.permute.xlu0 %1774
      %1776 = vrot.lane.b32.xlu0 %v1729, 64
      %v1777 = vpop.permute.xlu0 %1776
      %v1794 = vsel %vm822, %v1682, %v1747
      %v1795 = vsel %vm822, %v1683, %v1749
      %v1796 = vsel %vm822, %v1684, %v1751
      %v1797 = vsel %vm822, %v1685, %v1753
      %v1798 = vsel %vm822, %v1686, %v1755
      %v1799 = vsel %vm822, %v1687, %v1757
      %v1800 = vsel %vm822, %v1688, %v1759
      %v1801 = vsel %vm822, %v1689, %v1761
      %v1802 = vsel %vm822, %v1690, %v1763
      %v1803 = vsel %vm822, %v1691, %v1765
      %v1804 = vsel %vm822, %v1692, %v1767
      %v1805 = vsel %vm822, %v1693, %v1769
      %v1806 = vsel %vm822, %v1694, %v1771
      %v1807 = vsel %vm822, %v1695, %v1773
      %v1808 = vsel %vm822, %v1696, %v1775
      %v1809 = vsel %vm822, %v1697, %v1777
      %1810 = vmatprep.subr.mxu0 0.0
      %1811 = vmatpush1.msra.mxu0 %v1809
      %1812 = vmatprep.subr.mxu0 0.0
      %1813 = vmatpush1.msra.mxu0 %v1808
      %1814 = vmatprep.subr.mxu0 0.0
      %1815 = vmatpush1.msra.mxu0 %v1807
      %1816 = vmatprep.subr.mxu0 0.0
      %1817 = vmatpush1.msra.mxu0 %v1806
      %1818 = vmatprep.subr.mxu0 0.0
      %1819 = vmatpush1.msra.mxu0 %v1805
      %1820 = vmatprep.subr.mxu0 0.0
      %1821 = vmatpush1.msra.mxu0 %v1804
      %1822 = vmatprep.subr.mxu0 0.0
      %1823 = vmatpush1.msra.mxu0 %v1803
      %1824 = vmatprep.subr.mxu0 0.0
      %1825 = vmatpush1.msra.mxu0 %v1802
      %1826 = vmatprep.subr.mxu0 0.0
      %1827 = vmatpush1.msra.mxu0 %v1801
      %1828 = vmatprep.subr.mxu0 0.0
      %1829 = vmatpush1.msra.mxu0 %v1800
      %1830 = vmatprep.subr.mxu0 0.0
      %1831 = vmatpush1.msra.mxu0 %v1799
      %1832 = vmatprep.subr.mxu0 0.0
      %1833 = vmatpush1.msra.mxu0 %v1798
      %1834 = vmatprep.subr.mxu0 0.0
      %1835 = vmatpush1.msra.mxu0 %v1797
      %1836 = vmatprep.subr.mxu0 0.0
      %1837 = vmatpush1.msra.mxu0 %v1796
      %1838 = vmatprep.subr.mxu0 0.0
      %1839 = vmatpush1.msra.mxu0 %v1795
      %1840 = vmatprep.subr.mxu0 0.0
      %1841 = vmatpush1.msra.mxu0 %v1794
      %1842 = vmatprep.subr.mxu0 0.0
      %1843 = vmatpush2.msra.mxu0 0.0
      %1844 = vmatprep.subr.mxu0 0.0
      %1845 = vmatpush2.msra.mxu0 0.0
      %1846 = vmatprep.subr.mxu0 0.0
      %1847 = vmatpush2.msra.mxu0 0.0
      %1848 = vmatprep.subr.mxu0 0.0
      %1849 = vmatpush2.msra.mxu0 0.0
      %1850 = vmatprep.subr.mxu0 0.0
      %1851 = vmatpush2.msra.mxu0 0.0
      %1852 = vmatprep.subr.mxu0 0.0
      %1853 = vmatpush2.msra.mxu0 0.0
      %1854 = vmatprep.subr.mxu0 0.0
      %1855 = vmatpush2.msra.mxu0 0.0
      %1856 = vmatprep.subr.mxu0 0.0
      %1857 = vmatpush2.msra.mxu0 0.0
      %1858 = vmatprep.subr.mxu0 0.0
      %1859 = vmatpush2.msra.mxu0 0.0
      %1860 = vmatprep.subr.mxu0 0.0
      %1861 = vmatpush2.msra.mxu0 0.0
      %1862 = vmatprep.subr.mxu0 0.0
      %1863 = vmatpush2.msra.mxu0 0.0
      %1864 = vmatprep.subr.mxu0 0.0
      %1865 = vmatpush2.msra.mxu0 0.0
      %1866 = vmatprep.subr.mxu0 0.0
      %1867 = vmatpush2.msra.mxu0 0.0
      %1868 = vmatprep.subr.mxu0 0.0
      %1869 = vmatpush2.msra.mxu0 0.0
      %1870 = vmatprep.subr.mxu0 0.0
      %1871 = vmatpush2.msra.mxu0 0.0
      %1872 = vmatprep.subr.mxu0 0.0
      %1873 = vmatpush2.msra.mxu0 0.0
      %1874 = vmatprep.mubr.f32.mxu0 0.0
      %1875 = vmatmul.mubr.f32.gmra.mxu0 1.0
      %v1876 = vpop.f32.mrf.mxu0
      %v1877 = vadd.f32 0.0, %v1876
      %v1878 = vpop.f32.mrf.mxu0
      %1879 = vdwg.mxu0
      %1880 = vst [vmem:[%s287] sm:$0xff] %v1877
      %s1881 = smul.u32 16, %s18
      %p1882 = scmp.lt.s32.totalorder %s1881, 63
      %s1883 = scalar_select %p1882, %s1881, 63
      %s1884 = smul.addr %s1883, 8
      %s1885 = scalar_lea.vmem %s5, %s1884
      %p1886 = scmp.lt.s32.totalorder %s18, 3
      %s1887 = scalar_select %p1886, %s18, 3
      %s1888 = smul.addr %s1887, 8
      %s1889 = scalar_lea.vmem %s6, %s1888
      // Predicated region
      $region41: #{resudial_block.4} parent=39 // pred_check
        %p1890 = pneg %p151
      $region42: #{resudial_block.4} parent=39 // pred_check_branch
        %1892 = sbr.rel (%p1890) target = $region44
      $region43: #{resudial_block.4} parent=39 // pred_region
        %s1893 = smul.u32 16, %s18
      $region44: #{resudial_block.4} parent=39 // pred_fallthru
        _
      // Predicated region
      $region45: #{resudial_block.4} parent=39 // pred_check
        %p1894 = pneg %p177
      $region46: #{resudial_block.4} parent=39 // pred_check_branch
        %1896 = sbr.rel (%p1894) target = $region48
      $region47: #{resudial_block.4} parent=39 // pred_region
        _
      $region48: #{resudial_block.4} parent=39 // pred_fallthru
        _
    $region40: #{resudial_block.4} parent=5 // pred_fallthru
      _
    %p1897 = scmp.le.s32.totalorder 2, %s13
    // Predicated region
    $region49: #{resudial_block.4} parent=5 // pred_check
      %p1898 = pneg %p1897
    $region50: #{resudial_block.4} parent=5 // pred_check_branch
      %1900 = sbr.rel (%p1898) target = $region52
    $region51: #{resudial_block.4} parent=5 // pred_region
      %s1901 = ssub.s32 %s13, 2
      // Predicated region
      $region53: #{resudial_block.4} parent=51 // pred_check
        %p1902 = pneg %p157
      $region54: #{resudial_block.4} parent=51 // pred_check_branch
        %1904 = sbr.rel (%p1902) target = $region56
      $region55: #{resudial_block.4} parent=51 // pred_region
        %s1905 = smul.u32 16, %s19
        %p1906 = scmp.lt.s32.totalorder %s1905, 63
        %s1907 = scalar_select %p1906, %s1905, 63
        %s1908 = smul.addr %s1907, 8
        %s1909 = scalar_lea.vmem %s5, %s1908
      $region56: #{resudial_block.4} parent=51 // pred_fallthru
        _
      // Predicated region
      $region57: #{resudial_block.4} parent=51 // pred_check
        %p1910 = pneg %p183
      $region58: #{resudial_block.4} parent=51 // pred_check_branch
        %1912 = sbr.rel (%p1910) target = $region60
      $region59: #{resudial_block.4} parent=51 // pred_region
        %p1913 = scmp.lt.s32.totalorder %s19, 3
        %s1914 = scalar_select %p1913, %s19, 3
        %s1915 = smul.addr %s1914, 8
        %s1916 = scalar_lea.vmem %s6, %s1915
      $region60: #{resudial_block.4} parent=51 // pred_fallthru
        _
    $region52: #{resudial_block.4} parent=5 // pred_fallthru
      _
  $region6: #{resudial_block.4} parent=0 // loop_footer
    %s17 = sadd.s32 1, %s13
  $region7: #{resudial_block.4} parent=0 // loop_footer_branch
    %12 = sbr.rel target = $region3
  $region8: #{resudial_block.4} parent=0 // loop_exit
    _

// kernel: resudial_block.3
$region0: #{resudial_block.3}
  #allocation0 [shape = 'u32[]', space=smem, size = 0x4, offset = 0x4, fixed_abs, tag = 'smem constant byte address 0x4 - core index']
  #allocation1 [shape = 'u32[144,128]{1,0:T(1,128)}', space=vmem, size = 0x12000, scoped, tag = 'internal scratch']
  %s0 = inlined_call_operand.vmem [shape: f32[512,64], index: 0, kind: input, shape index: {}]
  %s1 = inlined_call_operand.vmem [shape: f32[128,64], index: 1, kind: input, shape index: {}]
  %s2 = inlined_call_operand.vmem [shape: bf16[3,192,64], index: 2, kind: input, shape index: {}]
  %s3 = inlined_call_operand.vmem [shape: f32[1,64], index: 3, kind: input, shape index: {}]
  %s4 = inlined_call_operand.vmem [shape: f32[1,64], index: 4, kind: input, shape index: {}]
  %s5 = inlined_call_operand.vmem [shape: f32[512,64], index: 5, kind: output, shape index: {0}]
  %s6 = inlined_call_operand.vmem [shape: f32[32,128], index: 6, kind: output, shape index: {1}]
  %7 = xla_tuple %s5, %s6
  %s8 = sld [smem:[#allocation0]]
  $region61: #{resudial_block.3} parent=0
    _
  %s10 = ssub.s32 1, %s8
  %s11 = scalar_select 0, %s10, %s8
  loop: start=0, step=1, limit=6
  $region2: #{resudial_block.3} parent=0 // loop_pre_header
    _
  $region3: #{resudial_block.3} parent=0 // loop_header
    %s13 = sphi 0, %s17
    %p14 = scmp.ge.s32.totalorder %s13, 6
    %s23 = sphi 0, %s25
    %s26 = sphi 0, %s23
    %s27 = sphi 0, %s26
    %s43 = sphi 0, %s27
    %s49 = sphi 0, %s51
    %s52 = sphi 0, %s49
    %s53 = sphi 0, %s52
    %s69 = sphi 0, %s53
    %s73 = sphi 0, %s73
    %s75 = sphi 0, %s73
    %s76 = sphi 0, %s75
    %s90 = sphi 0, %s76
    %s94 = sphi 0, %s94
    %s96 = sphi 0, %s94
    %s97 = sphi 0, %s96
    %s111 = sphi 0, %s97
    %s115 = sphi 0, %s115
    %s117 = sphi 0, %s115
    %s118 = sphi 0, %s117
    %s132 = sphi 0, %s118
    %s138 = sphi 0, %s140
    %s141 = sphi 0, %s138
    %s142 = sphi 0, %s141
    %s158 = sphi 0, %s142
    %s164 = sphi 0, %s166
    %s167 = sphi 0, %s164
    %s168 = sphi 0, %s167
    %s184 = sphi 0, %s168
  $region4: #{resudial_block.3} parent=0 // loop_header_branch
    %16 = sbr.rel (%p14) target = $region8
  $region5: #{resudial_block.3} parent=0 // loop_body
    %s18 = ssub.s32 %s13, 1
    %s19 = ssub.s32 %s13, 2
    %s20 = sadd.s32 %s13, 1
    %s21 = ssub.s32 %s13, %s20
    %p22 = scmp.eq.s32.totalorder %s21, 0
    %s24 = sadd.s32 %s23, 1
    %s25 = scalar_select %p22, %s23, %s24
    %p28 = pneg %p22
    %p29 = scmp.eq.s32.totalorder %s13, 3
    %p30 = por %p28, %p29
    %p31 = scmp.ne.s32.totalorder %s23, %s26
    %p32 = scmp.eq.s32.totalorder %s13, 0
    %p33 = por %p31, %p32
    %p34 = scmp.ne.s32.totalorder %s23, %s26
    %p35 = scmp.eq.s32.totalorder %s18, 3
    %p36 = por %p34, %p35
    %p37 = scmp.ne.s32.totalorder %s26, %s27
    %p38 = scmp.eq.s32.totalorder %s18, 0
    %p39 = por %p37, %p38
    %p40 = scmp.ne.s32.totalorder %s26, %s27
    %p41 = scmp.eq.s32.totalorder %s19, 3
    %p42 = por %p40, %p41
    %p44 = scmp.ne.s32.totalorder %s27, %s43
    %p45 = scmp.eq.s32.totalorder %s19, 0
    %p46 = por %p44, %p45
    %s47 = ssub.s32 %s13, %s20
    %p48 = scmp.eq.s32.totalorder %s47, 0
    %s50 = sadd.s32 %s49, 1
    %s51 = scalar_select %p48, %s49, %s50
    %p54 = pneg %p48
    %p55 = scmp.eq.s32.totalorder %s13, 3
    %p56 = por %p54, %p55
    %p57 = scmp.ne.s32.totalorder %s49, %s52
    %p58 = scmp.eq.s32.totalorder %s13, 0
    %p59 = por %p57, %p58
    %p60 = scmp.ne.s32.totalorder %s49, %s52
    %p61 = scmp.eq.s32.totalorder %s18, 3
    %p62 = por %p60, %p61
    %p63 = scmp.ne.s32.totalorder %s52, %s53
    %p64 = scmp.eq.s32.totalorder %s18, 0
    %p65 = por %p63, %p64
    %p66 = scmp.ne.s32.totalorder %s52, %s53
    %p67 = scmp.eq.s32.totalorder %s19, 3
    %p68 = por %p66, %p67
    %p70 = scmp.ne.s32.totalorder %s53, %s69
    %p71 = scmp.eq.s32.totalorder %s19, 0
    %p72 = por %p70, %p71
    %s74 = sadd.s32 %s73, 1
    %p77 = scmp.eq.s32.totalorder %s13, 3
    %p78 = scmp.ne.s32.totalorder %s73, %s75
    %p79 = scmp.eq.s32.totalorder %s13, 0
    %p80 = por %p78, %p79
    %p81 = scmp.ne.s32.totalorder %s73, %s75
    %p82 = scmp.eq.s32.totalorder %s18, 3
    %p83 = por %p81, %p82
    %p84 = scmp.ne.s32.totalorder %s75, %s76
    %p85 = scmp.eq.s32.totalorder %s18, 0
    %p86 = por %p84, %p85
    %p87 = scmp.ne.s32.totalorder %s75, %s76
    %p88 = scmp.eq.s32.totalorder %s19, 3
    %p89 = por %p87, %p88
    %p91 = scmp.ne.s32.totalorder %s76, %s90
    %p92 = scmp.eq.s32.totalorder %s19, 0
    %p93 = por %p91, %p92
    %s95 = sadd.s32 %s94, 1
    %p98 = scmp.eq.s32.totalorder %s13, 3
    %p99 = scmp.ne.s32.totalorder %s94, %s96
    %p100 = scmp.eq.s32.totalorder %s13, 0
    %p101 = por %p99, %p100
    %p102 = scmp.ne.s32.totalorder %s94, %s96
    %p103 = scmp.eq.s32.totalorder %s18, 3
    %p104 = por %p102, %p103
    %p105 = scmp.ne.s32.totalorder %s96, %s97
    %p106 = scmp.eq.s32.totalorder %s18, 0
    %p107 = por %p105, %p106
    %p108 = scmp.ne.s32.totalorder %s96, %s97
    %p109 = scmp.eq.s32.totalorder %s19, 3
    %p110 = por %p108, %p109
    %p112 = scmp.ne.s32.totalorder %s97, %s111
    %p113 = scmp.eq.s32.totalorder %s19, 0
    %p114 = por %p112, %p113
    %s116 = sadd.s32 %s115, 1
    %p119 = scmp.eq.s32.totalorder %s13, 3
    %p120 = scmp.ne.s32.totalorder %s115, %s117
    %p121 = scmp.eq.s32.totalorder %s13, 0
    %p122 = por %p120, %p121
    %p123 = scmp.ne.s32.totalorder %s115, %s117
    %p124 = scmp.eq.s32.totalorder %s18, 3
    %p125 = por %p123, %p124
    %p126 = scmp.ne.s32.totalorder %s117, %s118
    %p127 = scmp.eq.s32.totalorder %s18, 0
    %p128 = por %p126, %p127
    %p129 = scmp.ne.s32.totalorder %s117, %s118
    %p130 = scmp.eq.s32.totalorder %s19, 3
    %p131 = por %p129, %p130
    %p133 = scmp.ne.s32.totalorder %s118, %s132
    %p134 = scmp.eq.s32.totalorder %s19, 0
    %p135 = por %p133, %p134
    %s136 = ssub.s32 %s13, %s20
    %p137 = scmp.eq.s32.totalorder %s136, 0
    %s139 = sadd.s32 %s138, 1
    %s140 = scalar_select %p137, %s138, %s139
    %p143 = pneg %p137
    %p144 = scmp.eq.s32.totalorder %s13, 3
    %p145 = por %p143, %p144
    %p146 = scmp.ne.s32.totalorder %s138, %s141
    %p147 = scmp.eq.s32.totalorder %s13, 0
    %p148 = por %p146, %p147
    %p149 = scmp.ne.s32.totalorder %s138, %s141
    %p150 = scmp.eq.s32.totalorder %s18, 3
    %p151 = por %p149, %p150
    %p152 = scmp.ne.s32.totalorder %s141, %s142
    %p153 = scmp.eq.s32.totalorder %s18, 0
    %p154 = por %p152, %p153
    %p155 = scmp.ne.s32.totalorder %s141, %s142
    %p156 = scmp.eq.s32.totalorder %s19, 3
    %p157 = por %p155, %p156
    %p159 = scmp.ne.s32.totalorder %s142, %s158
    %p160 = scmp.eq.s32.totalorder %s19, 0
    %p161 = por %p159, %p160
    %s162 = ssub.s32 %s13, %s20
    %p163 = scmp.eq.s32.totalorder %s162, 0
    %s165 = sadd.s32 %s164, 1
    %s166 = scalar_select %p163, %s164, %s165
    %p169 = pneg %p163
    %p170 = scmp.eq.s32.totalorder %s13, 3
    %p171 = por %p169, %p170
    %p172 = scmp.ne.s32.totalorder %s164, %s167
    %p173 = scmp.eq.s32.totalorder %s13, 0
    %p174 = por %p172, %p173
    %p175 = scmp.ne.s32.totalorder %s164, %s167
    %p176 = scmp.eq.s32.totalorder %s18, 3
    %p177 = por %p175, %p176
    %p178 = scmp.ne.s32.totalorder %s167, %s168
    %p179 = scmp.eq.s32.totalorder %s18, 0
    %p180 = por %p178, %p179
    %p181 = scmp.ne.s32.totalorder %s167, %s168
    %p182 = scmp.eq.s32.totalorder %s19, 3
    %p183 = por %p181, %p182
    %p185 = scmp.ne.s32.totalorder %s168, %s184
    %p186 = scmp.eq.s32.totalorder %s19, 0
    %p187 = por %p185, %p186
    %p188 = scmp.le.s32.totalorder 1, %s13
    %p189 = scmp.lt.s32.totalorder %s13, 5
    %p190 = pnand %p188, %p189
    %p191 = pneg %p190
    // Predicated region
    $region9: #{resudial_block.3} parent=5 // pred_check
      _
    $region10: #{resudial_block.3} parent=5 // pred_check_branch
      %193 = sbr.rel (%p190) target = $region12
    $region11: #{resudial_block.3} parent=5 // pred_region
      %s194 = ssub.s32 %s13, 1
      // Predicated region
      $region13: #{resudial_block.3} parent=11 // pred_check
        %p195 = pneg %p86
      $region14: #{resudial_block.3} parent=11 // pred_check_branch
        %197 = sbr.rel (%p195) target = $region16
      $region15: #{resudial_block.3} parent=11 // pred_region
        _
      $region16: #{resudial_block.3} parent=11 // pred_fallthru
        _
      // Predicated region
      $region17: #{resudial_block.3} parent=11 // pred_check
        %p198 = pneg %p107
      $region18: #{resudial_block.3} parent=11 // pred_check_branch
        %200 = sbr.rel (%p198) target = $region20
      $region19: #{resudial_block.3} parent=11 // pred_region
        _
      $region20: #{resudial_block.3} parent=11 // pred_fallthru
        _
      // Predicated region
      $region21: #{resudial_block.3} parent=11 // pred_check
        %p201 = pneg %p128
      $region22: #{resudial_block.3} parent=11 // pred_check_branch
        %203 = sbr.rel (%p201) target = $region24
      $region23: #{resudial_block.3} parent=11 // pred_region
        _
      $region24: #{resudial_block.3} parent=11 // pred_fallthru
        _
    $region12: #{resudial_block.3} parent=5 // pred_fallthru
      _
    %p204 = scmp.lt.s32.totalorder %s13, 4
    // Predicated region
    $region25: #{resudial_block.3} parent=5 // pred_check
      %p205 = pneg %p204
    $region26: #{resudial_block.3} parent=5 // pred_check_branch
      %207 = sbr.rel (%p205) target = $region28
    $region27: #{resudial_block.3} parent=5 // pred_region
      // Predicated region
      $region29: #{resudial_block.3} parent=27 // pred_check
        %p208 = pneg %p33
      $region30: #{resudial_block.3} parent=27 // pred_check_branch
        %210 = sbr.rel (%p208) target = $region32
      $region31: #{resudial_block.3} parent=27 // pred_region
        %s211 = smul.u32 16, %s13
        %p212 = scmp.lt.s32.totalorder %s211, 63
        %s213 = scalar_select %p212, %s211, 63
        %s214 = smul.addr %s213, 8
        %s215 = scalar_lea.vmem %s0, %s214
        %s216 = smul.u32 16, %s13
      $region32: #{resudial_block.3} parent=27 // pred_fallthru
        _
      // Predicated region
      $region33: #{resudial_block.3} parent=27 // pred_check
        %p217 = pneg %p59
      $region34: #{resudial_block.3} parent=27 // pred_check_branch
        %219 = sbr.rel (%p217) target = $region36
      $region35: #{resudial_block.3} parent=27 // pred_region
        %s220 = smul.u32 4, %s13
        %p221 = scmp.lt.s32.totalorder %s220, 15
        %s222 = scalar_select %p221, %s220, 15
        %s223 = smul.addr %s222, 8
        %s224 = scalar_lea.vmem %s1, %s223
        %s225 = smul.u32 4, %s13
      $region36: #{resudial_block.3} parent=27 // pred_fallthru
        _
    $region28: #{resudial_block.3} parent=5 // pred_fallthru
      _
    %p226 = scmp.le.s32.totalorder 1, %s13
    %p227 = scmp.lt.s32.totalorder %s13, 5
    %p228 = pnand %p226, %p227
    %p229 = pneg %p228
    // Predicated region
    $region37: #{resudial_block.3} parent=5 // pred_check
      _
    $region38: #{resudial_block.3} parent=5 // pred_check_branch
      %231 = sbr.rel (%p228) target = $region40
    $region39: #{resudial_block.3} parent=5 // pred_region
      %s232 = ssub.s32 %s13, 1
      %s233 = smul.u32 16, %s18
      %p234 = scmp.lt.s32.totalorder %s233, 63
      %s235 = scalar_select %p234, %s233, 63
      %s236 = smul.addr %s235, 8
      %s237 = scalar_lea.vmem %s0, %s236
      %p238 = pneg %p39
      %p239 = pneg %p36
      %s240 = smul.u32 4, %s18
      %p241 = scmp.lt.s32.totalorder %s240, 15
      %s242 = scalar_select %p241, %s240, 15
      %s243 = smul.addr %s242, 8
      %s244 = scalar_lea.vmem %s1, %s243
      %p245 = pneg %p65
      %p246 = pneg %p62
      %p247 = pneg %p86
      %p248 = pneg %p83
      %p249 = pneg %p107
      %p250 = pneg %p104
      %p251 = pneg %p128
      %p252 = pneg %p125
      %p253 = pneg %p154
      %p254 = pneg %p151
      %s255 = smul.u32 16, %s18
      %p256 = scmp.lt.s32.totalorder %s255, 63
      %s257 = scalar_select %p256, %s255, 63
      %s258 = smul.addr %s257, 8
      %s259 = scalar_lea.vmem %s5, %s258
      %p260 = pneg %p180
      %p261 = pneg %p177
      %p262 = scmp.lt.s32.totalorder %s18, 3
      %s263 = scalar_select %p262, %s18, 3
      %s264 = smul.addr %s263, 8
      %s265 = scalar_lea.vmem %s6, %s264
      %s266 = smul.u32 16, %s18
      %p267 = scmp.lt.s32.totalorder %s266, 63
      %s268 = scalar_select %p267, %s266, 63
      %s269 = smul.addr %s268, 8
      %s270 = scalar_lea.vmem %s0, %s269
      %s271 = smul.u32 16, %s18
      %s272 = smul.u32 4, %s18
      %p273 = scmp.lt.s32.totalorder %s272, 15
      %s274 = scalar_select %p273, %s272, 15
      %s275 = smul.addr %s274, 8
      %s276 = scalar_lea.vmem %s1, %s275
      %s277 = smul.u32 4, %s18
      %s278 = smul.u32 16, %s18
      %p279 = scmp.lt.s32.totalorder %s278, 63
      %s280 = scalar_select %p279, %s278, 63
      %s281 = smul.addr %s280, 8
      %s282 = scalar_lea.vmem %s5, %s281
      %s283 = smul.u32 16, %s18
      %p284 = scmp.lt.s32.totalorder %s18, 3
      %s285 = scalar_select %p284, %s18, 3
      %s286 = smul.addr %s285, 8
      %s287 = scalar_lea.vmem %s6, %s286
      %v289 = vld [vmem:[%s270] sm:$0xff]
      %v290 = vld [vmem:[%s270 + $0x8] sm:$0xff]
      %v291 = vld [vmem:[%s270 + $0x10] sm:$0xff]
      %v292 = vld [vmem:[%s270 + $0x18] sm:$0xff]
      %v293 = vld [vmem:[%s270 + $0x20] sm:$0xff]
      %v294 = vld [vmem:[%s270 + $0x28] sm:$0xff]
      %v295 = vld [vmem:[%s270 + $0x30] sm:$0xff]
      %v296 = vld [vmem:[%s270 + $0x38] sm:$0xff]
      %v297 = vld [vmem:[%s270 + $0x40] sm:$0xff]
      %v298 = vld [vmem:[%s270 + $0x48] sm:$0xff]
      %v299 = vld [vmem:[%s270 + $0x50] sm:$0xff]
      %v300 = vld [vmem:[%s270 + $0x58] sm:$0xff]
      %v301 = vld [vmem:[%s270 + $0x60] sm:$0xff]
      %v302 = vld [vmem:[%s270 + $0x68] sm:$0xff]
      %v303 = vld [vmem:[%s270 + $0x70] sm:$0xff]
      %v304 = vld [vmem:[%s270 + $0x78] sm:$0xff]
      %v305 = vld [vmem:[%s276] sm:$0xff]
      %v306 = vld [vmem:[%s276 + $0x8] sm:$0xff]
      %v307 = vld [vmem:[%s276 + $0x10] sm:$0xff]
      %v308 = vld [vmem:[%s276 + $0x18] sm:$0xff]
      %v309 = vlaneseq
      %v310 = vshrl.u32 %v309, 7
      %v311 = vadd.s32 %v310, 8
      %v312 = vadd.s32 %v310, 16
      %v313 = vadd.s32 %v310, 24
      %v314 = vadd.s32 %v310, 32
      %v315 = vadd.s32 %v310, 40
      %v316 = vadd.s32 %v310, 48
      %v317 = vadd.s32 %v310, 56
      %v318 = vadd.s32 %v310, 64
      %v319 = vadd.s32 %v310, 72
      %v320 = vadd.s32 %v310, 80
      %v321 = vadd.s32 %v310, 88
      %v322 = vadd.s32 %v310, 96
      %v323 = vadd.s32 %v310, 104
      %v324 = vadd.s32 %v310, 112
      %v325 = vadd.s32 %v310, 120
      %vm326 = vcmp.lt.s32.totalorder %v310, 0
      %v327 = vsub.s32 0, %v310
      %v328 = vsel %vm326, %v327, %v310
      %v329 = vshrl.u32 %v328, 4
      %v330 = vand.u32 %v328, 15
      %v331 = vsub.s32 0, %v330
      %v332 = vsel %vm326, %v331, %v330
      %vm333 = vcmp.lt.s32.totalorder %v311, 0
      %v334 = vsub.s32 0, %v311
      %v335 = vsel %vm333, %v334, %v311
      %v336 = vshrl.u32 %v335, 4
      %v337 = vand.u32 %v335, 15
      %v338 = vsub.s32 0, %v337
      %v339 = vsel %vm333, %v338, %v337
      %vm340 = vcmp.lt.s32.totalorder %v312, 0
      %v341 = vsub.s32 0, %v312
      %v342 = vsel %vm340, %v341, %v312
      %v343 = vshrl.u32 %v342, 4
      %v344 = vand.u32 %v342, 15
      %v345 = vsub.s32 0, %v344
      %v346 = vsel %vm340, %v345, %v344
      %vm347 = vcmp.lt.s32.totalorder %v313, 0
      %v348 = vsub.s32 0, %v313
      %v349 = vsel %vm347, %v348, %v313
      %v350 = vshrl.u32 %v349, 4
      %v351 = vand.u32 %v349, 15
      %v352 = vsub.s32 0, %v351
      %v353 = vsel %vm347, %v352, %v351
      %vm354 = vcmp.lt.s32.totalorder %v314, 0
      %v355 = vsub.s32 0, %v314
      %v356 = vsel %vm354, %v355, %v314
      %v357 = vshrl.u32 %v356, 4
      %v358 = vand.u32 %v356, 15
      %v359 = vsub.s32 0, %v358
      %v360 = vsel %vm354, %v359, %v358
      %vm361 = vcmp.lt.s32.totalorder %v315, 0
      %v362 = vsub.s32 0, %v315
      %v363 = vsel %vm361, %v362, %v315
      %v364 = vshrl.u32 %v363, 4
      %v365 = vand.u32 %v363, 15
      %v366 = vsub.s32 0, %v365
      %v367 = vsel %vm361, %v366, %v365
      %vm368 = vcmp.lt.s32.totalorder %v316, 0
      %v369 = vsub.s32 0, %v316
      %v370 = vsel %vm368, %v369, %v316
      %v371 = vshrl.u32 %v370, 4
      %v372 = vand.u32 %v370, 15
      %v373 = vsub.s32 0, %v372
      %v374 = vsel %vm368, %v373, %v372
      %vm375 = vcmp.lt.s32.totalorder %v317, 0
      %v376 = vsub.s32 0, %v317
      %v377 = vsel %vm375, %v376, %v317
      %v378 = vshrl.u32 %v377, 4
      %v379 = vand.u32 %v377, 15
      %v380 = vsub.s32 0, %v379
      %v381 = vsel %vm375, %v380, %v379
      %vm382 = vcmp.lt.s32.totalorder %v318, 0
      %v383 = vsub.s32 0, %v318
      %v384 = vsel %vm382, %v383, %v318
      %v385 = vshrl.u32 %v384, 4
      %v386 = vand.u32 %v384, 15
      %v387 = vsub.s32 0, %v386
      %v388 = vsel %vm382, %v387, %v386
      %vm389 = vcmp.lt.s32.totalorder %v319, 0
      %v390 = vsub.s32 0, %v319
      %v391 = vsel %vm389, %v390, %v319
      %v392 = vshrl.u32 %v391, 4
      %v393 = vand.u32 %v391, 15
      %v394 = vsub.s32 0, %v393
      %v395 = vsel %vm389, %v394, %v393
      %vm396 = vcmp.lt.s32.totalorder %v320, 0
      %v397 = vsub.s32 0, %v320
      %v398 = vsel %vm396, %v397, %v320
      %v399 = vshrl.u32 %v398, 4
      %v400 = vand.u32 %v398, 15
      %v401 = vsub.s32 0, %v400
      %v402 = vsel %vm396, %v401, %v400
      %vm403 = vcmp.lt.s32.totalorder %v321, 0
      %v404 = vsub.s32 0, %v321
      %v405 = vsel %vm403, %v404, %v321
      %v406 = vshrl.u32 %v405, 4
      %v407 = vand.u32 %v405, 15
      %v408 = vsub.s32 0, %v407
      %v409 = vsel %vm403, %v408, %v407
      %vm410 = vcmp.lt.s32.totalorder %v322, 0
      %v411 = vsub.s32 0, %v322
      %v412 = vsel %vm410, %v411, %v322
      %v413 = vshrl.u32 %v412, 4
      %v414 = vand.u32 %v412, 15
      %v415 = vsub.s32 0, %v414
      %v416 = vsel %vm410, %v415, %v414
      %vm417 = vcmp.lt.s32.totalorder %v323, 0
      %v418 = vsub.s32 0, %v323
      %v419 = vsel %vm417, %v418, %v323
      %v420 = vshrl.u32 %v419, 4
      %v421 = vand.u32 %v419, 15
      %v422 = vsub.s32 0, %v421
      %v423 = vsel %vm417, %v422, %v421
      %vm424 = vcmp.lt.s32.totalorder %v324, 0
      %v425 = vsub.s32 0, %v324
      %v426 = vsel %vm424, %v425, %v324
      %v427 = vshrl.u32 %v426, 4
      %v428 = vand.u32 %v426, 15
      %v429 = vsub.s32 0, %v428
      %v430 = vsel %vm424, %v429, %v428
      %vm431 = vcmp.lt.s32.totalorder %v325, 0
      %v432 = vsub.s32 0, %v325
      %v433 = vsel %vm431, %v432, %v325
      %v434 = vshrl.u32 %v433, 4
      %v435 = vand.u32 %v433, 15
      %v436 = vsub.s32 0, %v435
      %v437 = vsel %vm431, %v436, %v435
      %vm438 = vcmp.ne.s32.totalorder %v332, 0
      %vm439 = vcmp.ne.s32.totalorder %v339, 0
      %vm440 = vcmp.ne.s32.totalorder %v346, 0
      %vm441 = vcmp.ne.s32.totalorder %v353, 0
      %vm442 = vcmp.ne.s32.totalorder %v360, 0
      %vm443 = vcmp.ne.s32.totalorder %v367, 0
      %vm444 = vcmp.ne.s32.totalorder %v374, 0
      %vm445 = vcmp.ne.s32.totalorder %v381, 0
      %vm446 = vcmp.ne.s32.totalorder %v388, 0
      %vm447 = vcmp.ne.s32.totalorder %v395, 0
      %vm448 = vcmp.ne.s32.totalorder %v402, 0
      %vm449 = vcmp.ne.s32.totalorder %v409, 0
      %vm450 = vcmp.ne.s32.totalorder %v416, 0
      %vm451 = vcmp.ne.s32.totalorder %v423, 0
      %vm452 = vcmp.ne.s32.totalorder %v430, 0
      %vm453 = vcmp.ne.s32.totalorder %v437, 0
      %vm454 = vcmp.lt.s32.totalorder %v332, 0
      %vm455 = vcmp.lt.s32.totalorder %v339, 0
      %vm456 = vcmp.lt.s32.totalorder %v346, 0
      %vm457 = vcmp.lt.s32.totalorder %v353, 0
      %vm458 = vcmp.lt.s32.totalorder %v360, 0
      %vm459 = vcmp.lt.s32.totalorder %v367, 0
      %vm460 = vcmp.lt.s32.totalorder %v374, 0
      %vm461 = vcmp.lt.s32.totalorder %v381, 0
      %vm462 = vcmp.lt.s32.totalorder %v388, 0
      %vm463 = vcmp.lt.s32.totalorder %v395, 0
      %vm464 = vcmp.lt.s32.totalorder %v402, 0
      %vm465 = vcmp.lt.s32.totalorder %v409, 0
      %vm466 = vcmp.lt.s32.totalorder %v416, 0
      %vm467 = vcmp.lt.s32.totalorder %v423, 0
      %vm468 = vcmp.lt.s32.totalorder %v430, 0
      %vm469 = vcmp.lt.s32.totalorder %v437, 0
      %vm470 = vmand %vm454, %vm438
      %vm471 = vmand %vm455, %vm439
      %vm472 = vmand %vm456, %vm440
      %vm473 = vmand %vm457, %vm441
      %vm474 = vmand %vm458, %vm442
      %vm475 = vmand %vm459, %vm443
      %vm476 = vmand %vm460, %vm444
      %vm477 = vmand %vm461, %vm445
      %vm478 = vmand %vm462, %vm446
      %vm479 = vmand %vm463, %vm447
      %vm480 = vmand %vm464, %vm448
      %vm481 = vmand %vm465, %vm449
      %vm482 = vmand %vm466, %vm450
      %vm483 = vmand %vm467, %vm451
      %vm484 = vmand %vm468, %vm452
      %vm485 = vmand %vm469, %vm453
      %v486 = vadd.s32 %v332, 16
      %v487 = vadd.s32 %v339, 16
      %v488 = vadd.s32 %v346, 16
      %v489 = vadd.s32 %v353, 16
      %v490 = vadd.s32 %v360, 16
      %v491 = vadd.s32 %v367, 16
      %v492 = vadd.s32 %v374, 16
      %v493 = vadd.s32 %v381, 16
      %v494 = vadd.s32 %v388, 16
      %v495 = vadd.s32 %v395, 16
      %v496 = vadd.s32 %v402, 16
      %v497 = vadd.s32 %v409, 16
      %v498 = vadd.s32 %v416, 16
      %v499 = vadd.s32 %v423, 16
      %v500 = vadd.s32 %v430, 16
      %v501 = vadd.s32 %v437, 16
      %v502 = vsel %vm470, %v486, %v332
      %v503 = vsel %vm471, %v487, %v339
      %v504 = vsel %vm472, %v488, %v346
      %v505 = vsel %vm473, %v489, %v353
      %v506 = vsel %vm474, %v490, %v360
      %v507 = vsel %vm475, %v491, %v367
      %v508 = vsel %vm476, %v492, %v374
      %v509 = vsel %vm477, %v493, %v381
      %v510 = vsel %vm478, %v494, %v388
      %v511 = vsel %vm479, %v495, %v395
      %v512 = vsel %vm480, %v496, %v402
      %v513 = vsel %vm481, %v497, %v409
      %v514 = vsel %vm482, %v498, %v416
      %v515 = vsel %vm483, %v499, %v423
      %v516 = vsel %vm484, %v500, %v430
      %v517 = vsel %vm485, %v501, %v437
      %vm518 = vcmp.ge.s32.totalorder %v502, 1
      %vm519 = vcmp.ge.s32.totalorder %v503, 1
      %vm520 = vcmp.ge.s32.totalorder %v504, 1
      %vm521 = vcmp.ge.s32.totalorder %v505, 1
      %vm522 = vcmp.ge.s32.totalorder %v506, 1
      %vm523 = vcmp.ge.s32.totalorder %v507, 1
      %vm524 = vcmp.ge.s32.totalorder %v508, 1
      %vm525 = vcmp.ge.s32.totalorder %v509, 1
      %vm526 = vcmp.ge.s32.totalorder %v510, 1
      %vm527 = vcmp.ge.s32.totalorder %v511, 1
      %vm528 = vcmp.ge.s32.totalorder %v512, 1
      %vm529 = vcmp.ge.s32.totalorder %v513, 1
      %vm530 = vcmp.ge.s32.totalorder %v514, 1
      %vm531 = vcmp.ge.s32.totalorder %v515, 1
      %vm532 = vcmp.ge.s32.totalorder %v516, 1
      %vm533 = vcmp.ge.s32.totalorder %v517, 1
      %vm534 = vcmp.lt.s32.totalorder %v502, 15
      %vm535 = vcmp.lt.s32.totalorder %v503, 15
      %vm536 = vcmp.lt.s32.totalorder %v504, 15
      %vm537 = vcmp.lt.s32.totalorder %v505, 15
      %vm538 = vcmp.lt.s32.totalorder %v506, 15
      %vm539 = vcmp.lt.s32.totalorder %v507, 15
      %vm540 = vcmp.lt.s32.totalorder %v508, 15
      %vm541 = vcmp.lt.s32.totalorder %v509, 15
      %vm542 = vcmp.lt.s32.totalorder %v510, 15
      %vm543 = vcmp.lt.s32.totalorder %v511, 15
      %vm544 = vcmp.lt.s32.totalorder %v512, 15
      %vm545 = vcmp.lt.s32.totalorder %v513, 15
      %vm546 = vcmp.lt.s32.totalorder %v514, 15
      %vm547 = vcmp.lt.s32.totalorder %v515, 15
      %vm548 = vcmp.lt.s32.totalorder %v516, 15
      %vm549 = vcmp.lt.s32.totalorder %v517, 15
      %v550 = vrot.slane %v305, 7
      %v551 = vrot.slane %v306, 7
      %v552 = vrot.slane %v289, 7
      %v553 = vrot.slane %v290, 7
      %v554 = vrot.slane %v291, 7
      %v555 = vrot.slane %v292, 7
      %v556 = vrot.slane %v293, 7
      %v557 = vrot.slane %v294, 7
      %v558 = vrot.slane %v295, 7
      %v559 = vrot.slane %v296, 7
      %v560 = vrot.slane %v297, 7
      %v561 = vrot.slane %v298, 7
      %v562 = vrot.slane %v299, 7
      %v563 = vrot.slane %v300, 7
      %v564 = vrot.slane %v301, 7
      %v565 = vrot.slane %v302, 7
      %vm566 = vcmp.lt.s32.totalorder %v310, 1
      %v567 = vsel %vm566, %v564, %v565
      %v568 = vsel %vm566, %v563, %v564
      %v569 = vsel %vm566, %v562, %v563
      %v570 = vsel %vm566, %v561, %v562
      %v571 = vsel %vm566, %v560, %v561
      %v572 = vsel %vm566, %v559, %v560
      %v573 = vsel %vm566, %v558, %v559
      %v574 = vsel %vm566, %v557, %v558
      %v575 = vsel %vm566, %v556, %v557
      %v576 = vsel %vm566, %v555, %v556
      %v577 = vsel %vm566, %v554, %v555
      %v578 = vsel %vm566, %v553, %v554
      %v579 = vsel %vm566, %v552, %v553
      %v580 = vsel %vm566, %v551, %v552
      %v581 = vsel %vm566, %v550, %v551
      %v582 = vsel %vm566, %v565, %v550
      %v583 = vsel %vm518, 1, 0
      %v584 = vsel %vm519, 1, 0
      %v585 = vsel %vm520, 1, 0
      %v586 = vsel %vm521, 1, 0
      %v587 = vsel %vm522, 1, 0
      %v588 = vsel %vm523, 1, 0
      %v589 = vsel %vm524, 1, 0
      %v590 = vsel %vm525, 1, 0
      %v591 = vsel %vm526, 1, 0
      %v592 = vsel %vm527, 1, 0
      %v593 = vsel %vm528, 1, 0
      %v594 = vsel %vm529, 1, 0
      %v595 = vsel %vm530, 1, 0
      %v596 = vsel %vm531, 1, 0
      %v597 = vsel %vm532, 1, 0
      %v598 = vsel %vm533, 1, 0
      %vm599 = vcmp.eq.s32.totalorder %v583, 1
      %vm600 = vcmp.eq.s32.totalorder %v584, 1
      %vm601 = vcmp.eq.s32.totalorder %v585, 1
      %vm602 = vcmp.eq.s32.totalorder %v586, 1
      %vm603 = vcmp.eq.s32.totalorder %v587, 1
      %vm604 = vcmp.eq.s32.totalorder %v588, 1
      %vm605 = vcmp.eq.s32.totalorder %v589, 1
      %vm606 = vcmp.eq.s32.totalorder %v590, 1
      %vm607 = vcmp.eq.s32.totalorder %v591, 1
      %vm608 = vcmp.eq.s32.totalorder %v592, 1
      %vm609 = vcmp.eq.s32.totalorder %v593, 1
      %vm610 = vcmp.eq.s32.totalorder %v594, 1
      %vm611 = vcmp.eq.s32.totalorder %v595, 1
      %vm612 = vcmp.eq.s32.totalorder %v596, 1
      %vm613 = vcmp.eq.s32.totalorder %v597, 1
      %vm614 = vcmp.eq.s32.totalorder %v598, 1
      %v615 = vsel %vm599, %v582, 0.0
      %v616 = vsel %vm600, %v581, 0.0
      %v617 = vsel %vm601, %v580, 0.0
      %v618 = vsel %vm602, %v579, 0.0
      %v619 = vsel %vm603, %v578, 0.0
      %v620 = vsel %vm604, %v577, 0.0
      %v621 = vsel %vm605, %v576, 0.0
      %v622 = vsel %vm606, %v575, 0.0
      %v623 = vsel %vm607, %v574, 0.0
      %v624 = vsel %vm608, %v573, 0.0
      %v625 = vsel %vm609, %v572, 0.0
      %v626 = vsel %vm610, %v571, 0.0
      %v627 = vsel %vm611, %v570, 0.0
      %v628 = vsel %vm612, %v569, 0.0
      %v629 = vsel %vm613, %v568, 0.0
      %v630 = vsel %vm614, %v567, 0.0
      %v631 = vpack.c.bf16 %v616, %v615
      %v632 = vpack.c.bf16 %v618, %v617
      %v633 = vpack.c.bf16 %v620, %v619
      %v634 = vpack.c.bf16 %v622, %v621
      %v635 = vpack.c.bf16 %v624, %v623
      %v636 = vpack.c.bf16 %v626, %v625
      %v637 = vpack.c.bf16 %v628, %v627
      %v638 = vpack.c.bf16 %v630, %v629
      %v639 = vpack.c.bf16 %v306, %v305
      %v640 = vpack.c.bf16 %v290, %v289
      %v641 = vpack.c.bf16 %v292, %v291
      %v642 = vpack.c.bf16 %v294, %v293
      %v643 = vpack.c.bf16 %v296, %v295
      %v644 = vpack.c.bf16 %v298, %v297
      %v645 = vpack.c.bf16 %v300, %v299
      %v646 = vpack.c.bf16 %v302, %v301
      %v647 = vrot.slane %v305, 1
      %v648 = vrot.slane %v306, 1
      %v649 = vrot.slane %v289, 1
      %v650 = vrot.slane %v290, 1
      %v651 = vrot.slane %v291, 1
      %v652 = vrot.slane %v292, 1
      %v653 = vrot.slane %v293, 1
      %v654 = vrot.slane %v294, 1
      %v655 = vrot.slane %v295, 1
      %v656 = vrot.slane %v296, 1
      %v657 = vrot.slane %v297, 1
      %v658 = vrot.slane %v298, 1
      %v659 = vrot.slane %v299, 1
      %v660 = vrot.slane %v300, 1
      %v661 = vrot.slane %v301, 1
      %v662 = vrot.slane %v302, 1
      %vm663 = vcmp.lt.s32.totalorder %v310, 7
      %v664 = vsel %vm663, %v661, %v662
      %v665 = vsel %vm663, %v660, %v661
      %v666 = vsel %vm663, %v659, %v660
      %v667 = vsel %vm663, %v658, %v659
      %v668 = vsel %vm663, %v657, %v658
      %v669 = vsel %vm663, %v656, %v657
      %v670 = vsel %vm663, %v655, %v656
      %v671 = vsel %vm663, %v654, %v655
      %v672 = vsel %vm663, %v653, %v654
      %v673 = vsel %vm663, %v652, %v653
      %v674 = vsel %vm663, %v651, %v652
      %v675 = vsel %vm663, %v650, %v651
      %v676 = vsel %vm663, %v649, %v650
      %v677 = vsel %vm663, %v648, %v649
      %v678 = vsel %vm663, %v647, %v648
      %v679 = vsel %vm663, %v662, %v647
      %v680 = vsel %vm534, 1, 0
      %v681 = vsel %vm535, 1, 0
      %v682 = vsel %vm536, 1, 0
      %v683 = vsel %vm537, 1, 0
      %v684 = vsel %vm538, 1, 0
      %v685 = vsel %vm539, 1, 0
      %v686 = vsel %vm540, 1, 0
      %v687 = vsel %vm541, 1, 0
      %v688 = vsel %vm542, 1, 0
      %v689 = vsel %vm543, 1, 0
      %v690 = vsel %vm544, 1, 0
      %v691 = vsel %vm545, 1, 0
      %v692 = vsel %vm546, 1, 0
      %v693 = vsel %vm547, 1, 0
      %v694 = vsel %vm548, 1, 0
      %v695 = vsel %vm549, 1, 0
      %vm696 = vcmp.eq.s32.totalorder %v680, 1
      %vm697 = vcmp.eq.s32.totalorder %v681, 1
      %vm698 = vcmp.eq.s32.totalorder %v682, 1
      %vm699 = vcmp.eq.s32.totalorder %v683, 1
      %vm700 = vcmp.eq.s32.totalorder %v684, 1
      %vm701 = vcmp.eq.s32.totalorder %v685, 1
      %vm702 = vcmp.eq.s32.totalorder %v686, 1
      %vm703 = vcmp.eq.s32.totalorder %v687, 1
      %vm704 = vcmp.eq.s32.totalorder %v688, 1
      %vm705 = vcmp.eq.s32.totalorder %v689, 1
      %vm706 = vcmp.eq.s32.totalorder %v690, 1
      %vm707 = vcmp.eq.s32.totalorder %v691, 1
      %vm708 = vcmp.eq.s32.totalorder %v692, 1
      %vm709 = vcmp.eq.s32.totalorder %v693, 1
      %vm710 = vcmp.eq.s32.totalorder %v694, 1
      %vm711 = vcmp.eq.s32.totalorder %v695, 1
      %v712 = vsel %vm696, %v678, 0.0
      %v713 = vsel %vm697, %v677, 0.0
      %v714 = vsel %vm698, %v676, 0.0
      %v715 = vsel %vm699, %v675, 0.0
      %v716 = vsel %vm700, %v674, 0.0
      %v717 = vsel %vm701, %v673, 0.0
      %v718 = vsel %vm702, %v672, 0.0
      %v719 = vsel %vm703, %v671, 0.0
      %v720 = vsel %vm704, %v670, 0.0
      %v721 = vsel %vm705, %v669, 0.0
      %v722 = vsel %vm706, %v668, 0.0
      %v723 = vsel %vm707, %v667, 0.0
      %v724 = vsel %vm708, %v666, 0.0
      %v725 = vsel %vm709, %v665, 0.0
      %v726 = vsel %vm710, %v664, 0.0
      %v727 = vsel %vm711, %v679, 0.0
      %v728 = vpack.c.bf16 %v713, %v712
      %v729 = vpack.c.bf16 %v715, %v714
      %v730 = vpack.c.bf16 %v717, %v716
      %v731 = vpack.c.bf16 %v719, %v718
      %v732 = vpack.c.bf16 %v721, %v720
      %v733 = vpack.c.bf16 %v723, %v722
      %v734 = vpack.c.bf16 %v725, %v724
      %v735 = vpack.c.bf16 %v727, %v726
      %744 = vrot.lane.b32.xlu0 %v639, 64
      %v745 = vpop.permute.xlu0 %744
      %746 = vrot.lane.b32.xlu0 %v640, 64
      %v747 = vpop.permute.xlu0 %746
      %748 = vrot.lane.b32.xlu0 %v641, 64
      %v749 = vpop.permute.xlu0 %748
      %750 = vrot.lane.b32.xlu0 %v642, 64
      %v751 = vpop.permute.xlu0 %750
      %752 = vrot.lane.b32.xlu0 %v643, 64
      %v753 = vpop.permute.xlu0 %752
      %754 = vrot.lane.b32.xlu0 %v644, 64
      %v755 = vpop.permute.xlu0 %754
      %756 = vrot.lane.b32.xlu0 %v645, 64
      %v757 = vpop.permute.xlu0 %756
      %758 = vrot.lane.b32.xlu0 %v646, 64
      %v759 = vpop.permute.xlu0 %758
      %vm760 = vcmask 523264
      %v763 = vsel %vm760, %v631, %v745
      %v767 = vsel %vm760, %v632, %v747
      %v771 = vsel %vm760, %v633, %v749
      %v775 = vsel %vm760, %v634, %v751
      %v779 = vsel %vm760, %v635, %v753
      %v783 = vsel %vm760, %v636, %v755
      %v787 = vsel %vm760, %v637, %v757
      %v791 = vsel %vm760, %v638, %v759
      %v793 = vld [vmem:[%s2] sm:$0xf]
      %v794 = vld [vmem:[%s2 + $0x4] sm:$0xf]
      %v795 = vld [vmem:[%s2 + $0x8] sm:$0xf]
      %v796 = vld [vmem:[%s2 + $0xc] sm:$0xf]
      %v797 = vld [vmem:[%s2 + $0x10] sm:$0xf]
      %v798 = vld [vmem:[%s2 + $0x14] sm:$0xf]
      %v799 = vld [vmem:[%s2 + $0x18] sm:$0xf]
      %v800 = vld [vmem:[%s2 + $0x1c] sm:$0xf]
      %v801 = vld [vmem:[%s2 + $0x20] sm:$0xf]
      %v802 = vld [vmem:[%s2 + $0x24] sm:$0xf]
      %v803 = vld [vmem:[%s2 + $0x28] sm:$0xf]
      %v804 = vld [vmem:[%s2 + $0x2c] sm:$0xf]
      %v805 = vld [vmem:[%s2 + $0x30] sm:$0xf]
      %v806 = vld [vmem:[%s2 + $0x34] sm:$0xf]
      %v807 = vld [vmem:[%s2 + $0x38] sm:$0xf]
      %v808 = vld [vmem:[%s2 + $0x3c] sm:$0xf]
      %v809 = vld [vmem:[%s2 + $0x40] sm:$0xf]
      %v810 = vld [vmem:[%s2 + $0x44] sm:$0xf]
      %v811 = vld [vmem:[%s2 + $0x48] sm:$0xf]
      %v812 = vld [vmem:[%s2 + $0x4c] sm:$0xf]
      %v813 = vld [vmem:[%s2 + $0x50] sm:$0xf]
      %v814 = vld [vmem:[%s2 + $0x54] sm:$0xf]
      %v815 = vld [vmem:[%s2 + $0x58] sm:$0xf]
      %v816 = vld [vmem:[%s2 + $0x5c] sm:$0xf]
      %v817 = vrot.slane %v303, 7
      %v818 = vrot.slane %v304, 7
      %v819 = vsel %vm566, %v817, %v818
      %v820 = vsel %vm566, %v565, %v817
      %v821 = vsel %vm566, %v818, %v552
      %v822 = vsel %vm599, %v821, 0.0
      %v823 = vsel %vm600, %v579, 0.0
      %v824 = vsel %vm601, %v578, 0.0
      %v825 = vsel %vm602, %v577, 0.0
      %v826 = vsel %vm603, %v576, 0.0
      %v827 = vsel %vm604, %v575, 0.0
      %v828 = vsel %vm605, %v574, 0.0
      %v829 = vsel %vm606, %v573, 0.0
      %v830 = vsel %vm607, %v572, 0.0
      %v831 = vsel %vm608, %v571, 0.0
      %v832 = vsel %vm609, %v570, 0.0
      %v833 = vsel %vm610, %v569, 0.0
      %v834 = vsel %vm611, %v568, 0.0
      %v835 = vsel %vm612, %v567, 0.0
      %v836 = vsel %vm613, %v820, 0.0
      %v837 = vsel %vm614, %v819, 0.0
      %v838 = vpack.c.bf16 %v823, %v822
      %v839 = vpack.c.bf16 %v825, %v824
      %v840 = vpack.c.bf16 %v827, %v826
      %v841 = vpack.c.bf16 %v829, %v828
      %v842 = vpack.c.bf16 %v831, %v830
      %v843 = vpack.c.bf16 %v833, %v832
      %v844 = vpack.c.bf16 %v835, %v834
      %v845 = vpack.c.bf16 %v837, %v836
      %v846 = vpack.c.bf16 %v304, %v303
      %v847 = vrot.slane %v303, 1
      %v848 = vrot.slane %v304, 1
      %v849 = vsel %vm663, %v847, %v848
      %v850 = vsel %vm663, %v662, %v847
      %v851 = vsel %vm663, %v848, %v649
      %v852 = vsel %vm696, %v676, 0.0
      %v853 = vsel %vm697, %v675, 0.0
      %v854 = vsel %vm698, %v674, 0.0
      %v855 = vsel %vm699, %v673, 0.0
      %v856 = vsel %vm700, %v672, 0.0
      %v857 = vsel %vm701, %v671, 0.0
      %v858 = vsel %vm702, %v670, 0.0
      %v859 = vsel %vm703, %v669, 0.0
      %v860 = vsel %vm704, %v668, 0.0
      %v861 = vsel %vm705, %v667, 0.0
      %v862 = vsel %vm706, %v666, 0.0
      %v863 = vsel %vm707, %v665, 0.0
      %v864 = vsel %vm708, %v664, 0.0
      %v865 = vsel %vm709, %v850, 0.0
      %v866 = vsel %vm710, %v849, 0.0
      %v867 = vsel %vm711, %v851, 0.0
      %v868 = vpack.c.bf16 %v853, %v852
      %v869 = vpack.c.bf16 %v855, %v854
      %v870 = vpack.c.bf16 %v857, %v856
      %v871 = vpack.c.bf16 %v859, %v858
      %v872 = vpack.c.bf16 %v861, %v860
      %v873 = vpack.c.bf16 %v863, %v862
      %v874 = vpack.c.bf16 %v865, %v864
      %v875 = vpack.c.bf16 %v867, %v866
      %877 = vrot.lane.b32.xlu0 %v846, 64
      %v878 = vpop.permute.xlu0 %877
      %v880 = vsel %vm760, %v838, %v747
      %v883 = vsel %vm760, %v839, %v749
      %v886 = vsel %vm760, %v840, %v751
      %v889 = vsel %vm760, %v841, %v753
      %v892 = vsel %vm760, %v842, %v755
      %v895 = vsel %vm760, %v843, %v757
      %v898 = vsel %vm760, %v844, %v759
      %v902 = vsel %vm760, %v845, %v878
      %s904 = scalar_lea.vmem %s2, 96
      %v905 = vld [vmem:[%s904] sm:$0xf]
      %v906 = vld [vmem:[%s904 + $0x4] sm:$0xf]
      %v907 = vld [vmem:[%s904 + $0x8] sm:$0xf]
      %v908 = vld [vmem:[%s904 + $0xc] sm:$0xf]
      %v909 = vld [vmem:[%s904 + $0x10] sm:$0xf]
      %v910 = vld [vmem:[%s904 + $0x14] sm:$0xf]
      %v911 = vld [vmem:[%s904 + $0x18] sm:$0xf]
      %v912 = vld [vmem:[%s904 + $0x1c] sm:$0xf]
      %v913 = vld [vmem:[%s904 + $0x20] sm:$0xf]
      %v914 = vld [vmem:[%s904 + $0x24] sm:$0xf]
      %v915 = vld [vmem:[%s904 + $0x28] sm:$0xf]
      %v916 = vld [vmem:[%s904 + $0x2c] sm:$0xf]
      %v917 = vld [vmem:[%s904 + $0x30] sm:$0xf]
      %v918 = vld [vmem:[%s904 + $0x34] sm:$0xf]
      %v919 = vld [vmem:[%s904 + $0x38] sm:$0xf]
      %v920 = vld [vmem:[%s904 + $0x3c] sm:$0xf]
      %v921 = vld [vmem:[%s904 + $0x40] sm:$0xf]
      %v922 = vld [vmem:[%s904 + $0x44] sm:$0xf]
      %v923 = vld [vmem:[%s904 + $0x48] sm:$0xf]
      %v924 = vld [vmem:[%s904 + $0x4c] sm:$0xf]
      %v925 = vld [vmem:[%s904 + $0x50] sm:$0xf]
      %v926 = vld [vmem:[%s904 + $0x54] sm:$0xf]
      %v927 = vld [vmem:[%s904 + $0x58] sm:$0xf]
      %v928 = vld [vmem:[%s904 + $0x5c] sm:$0xf]
      %v953 = vunpack.c.l.b16 %v905
      %v954 = vunpack.c.l.b16 %v906
      %v955 = vunpack.c.l.b16 %v907
      %v956 = vunpack.c.l.b16 %v908
      %v957 = vunpack.c.l.b16 %v909
      %v958 = vunpack.c.l.b16 %v910
      %v959 = vunpack.c.l.b16 %v911
      %v960 = vunpack.c.l.b16 %v912
      %v961 = vunpack.c.l.b16 %v913
      %v962 = vunpack.c.l.b16 %v914
      %v963 = vunpack.c.l.b16 %v915
      %v964 = vunpack.c.l.b16 %v916
      %v965 = vunpack.c.l.b16 %v917
      %v966 = vunpack.c.l.b16 %v918
      %v967 = vunpack.c.l.b16 %v919
      %v968 = vunpack.c.l.b16 %v920
      %v969 = vunpack.c.l.b16 %v921
      %v970 = vunpack.c.l.b16 %v922
      %v971 = vunpack.c.l.b16 %v923
      %v972 = vunpack.c.l.b16 %v924
      %v973 = vunpack.c.l.b16 %v925
      %v974 = vunpack.c.l.b16 %v926
      %v975 = vunpack.c.l.b16 %v927
      %v976 = vunpack.c.l.b16 %v928
      %v977 = vpack.c.b16 %v954, %v953
      %v978 = vpack.c.b16 %v956, %v955
      %v979 = vpack.c.b16 %v958, %v957
      %v980 = vpack.c.b16 %v960, %v959
      %v981 = vpack.c.b16 %v962, %v961
      %v982 = vpack.c.b16 %v964, %v963
      %v983 = vpack.c.b16 %v966, %v965
      %v984 = vpack.c.b16 %v968, %v967
      %v985 = vpack.c.b16 %v970, %v969
      %v986 = vpack.c.b16 %v972, %v971
      %v987 = vpack.c.b16 %v974, %v973
      %v988 = vpack.c.b16 %v976, %v975
      %v1002 = vsel %vm760, %v868, 0
      %v1005 = vsel %vm760, %v869, 0
      %v1008 = vsel %vm760, %v870, 0
      %v1011 = vsel %vm760, %v871, 0
      %v1014 = vsel %vm760, %v872, 0
      %v1017 = vsel %vm760, %v873, 0
      %v1020 = vsel %vm760, %v874, 0
      %v1023 = vsel %vm760, %v875, 0
      %1025 = vmatprep.subr.bf16.mxu0 0
      %1026 = vmatpush1.bf16.msra.mxu0 %v984
      %1027 = vmatprep.subr.bf16.mxu0 0
      %1028 = vmatpush1.bf16.msra.mxu0 %v983
      %1029 = vmatprep.subr.bf16.mxu0 0
      %1030 = vmatpush1.bf16.msra.mxu0 %v982
      %1031 = vmatprep.subr.bf16.mxu0 0
      %1032 = vmatpush1.bf16.msra.mxu0 %v981
      %1033 = vmatprep.subr.bf16.mxu0 0
      %1034 = vmatpush1.bf16.msra.mxu0 %v980
      %1035 = vmatprep.subr.bf16.mxu0 0
      %1036 = vmatpush1.bf16.msra.mxu0 %v979
      %1037 = vmatprep.subr.bf16.mxu0 0
      %1038 = vmatpush1.bf16.msra.mxu0 %v978
      %1039 = vmatprep.subr.bf16.mxu0 0
      %1040 = vmatpush1.bf16.msra.mxu0 %v977
      %1041 = vmatprep.subr.bf16.mxu0 0
      %1042 = vmatpush2.bf16.msra.mxu0 0
      %1043 = vmatprep.subr.bf16.mxu0 0
      %1044 = vmatpush2.bf16.msra.mxu0 0
      %1045 = vmatprep.subr.bf16.mxu0 0
      %1046 = vmatpush2.bf16.msra.mxu0 0
      %1047 = vmatprep.subr.bf16.mxu0 0
      %1048 = vmatpush2.bf16.msra.mxu0 0
      %1049 = vmatprep.subr.bf16.mxu0 0
      %1050 = vmatpush2.bf16.msra.mxu0 %v988
      %1051 = vmatprep.subr.bf16.mxu0 0
      %1052 = vmatpush2.bf16.msra.mxu0 %v987
      %1053 = vmatprep.subr.bf16.mxu0 0
      %1054 = vmatpush2.bf16.msra.mxu0 %v986
      %1055 = vmatprep.subr.bf16.mxu0 0
      %1056 = vmatpush2.bf16.msra.mxu0 %v985
      %1057 = vmatprep.mubr.bf16.mxu0 %v1002
      %1058 = vmatmul.mubr.bf16.gmra.mxu0 %v880
      %v1059 = vpop.f32.mrf.mxu0
      %v1060 = vadd.f32 0.0, %v1059
      %v1061 = vpop.f32.mrf.mxu0
      %v1062 = vpop.f32.mrf.mxu0
      %v1063 = vadd.f32 0.0, %v1062
      %v1064 = vpop.f32.mrf.mxu0
      %1065 = vmatprep.mubr.bf16.mxu0 %v1005
      %1066 = vmatmul.mubr.bf16.gmra.mxu0 %v883
      %v1067 = vpop.f32.mrf.mxu0
      %v1068 = vadd.f32 0.0, %v1067
      %v1069 = vpop.f32.mrf.mxu0
      %v1070 = vpop.f32.mrf.mxu0
      %v1071 = vadd.f32 0.0, %v1070
      %v1072 = vpop.f32.mrf.mxu0
      %1073 = vmatprep.mubr.bf16.mxu0 %v1008
      %1074 = vmatmul.mubr.bf16.gmra.mxu0 %v886
      %v1075 = vpop.f32.mrf.mxu0
      %v1076 = vadd.f32 0.0, %v1075
      %v1077 = vpop.f32.mrf.mxu0
      %v1078 = vpop.f32.mrf.mxu0
      %v1079 = vadd.f32 0.0, %v1078
      %v1080 = vpop.f32.mrf.mxu0
      %1081 = vmatprep.mubr.bf16.mxu0 %v1011
      %1082 = vmatmul.mubr.bf16.gmra.mxu0 %v889
      %v1083 = vpop.f32.mrf.mxu0
      %v1084 = vadd.f32 0.0, %v1083
      %v1085 = vpop.f32.mrf.mxu0
      %v1086 = vpop.f32.mrf.mxu0
      %v1087 = vadd.f32 0.0, %v1086
      %v1088 = vpop.f32.mrf.mxu0
      %1089 = vmatprep.mubr.bf16.mxu0 %v1014
      %1090 = vmatmul.mubr.bf16.gmra.mxu0 %v892
      %v1091 = vpop.f32.mrf.mxu0
      %v1092 = vadd.f32 0.0, %v1091
      %v1093 = vpop.f32.mrf.mxu0
      %v1094 = vpop.f32.mrf.mxu0
      %v1095 = vadd.f32 0.0, %v1094
      %v1096 = vpop.f32.mrf.mxu0
      %1097 = vmatprep.mubr.bf16.mxu0 %v1017
      %1098 = vmatmul.mubr.bf16.gmra.mxu0 %v895
      %v1099 = vpop.f32.mrf.mxu0
      %v1100 = vadd.f32 0.0, %v1099
      %v1101 = vpop.f32.mrf.mxu0
      %v1102 = vpop.f32.mrf.mxu0
      %v1103 = vadd.f32 0.0, %v1102
      %v1104 = vpop.f32.mrf.mxu0
      %1105 = vmatprep.mubr.bf16.mxu0 %v1020
      %1106 = vmatmul.mubr.bf16.gmra.mxu0 %v898
      %v1107 = vpop.f32.mrf.mxu0
      %v1108 = vadd.f32 0.0, %v1107
      %v1109 = vpop.f32.mrf.mxu0
      %v1110 = vpop.f32.mrf.mxu0
      %v1111 = vadd.f32 0.0, %v1110
      %v1112 = vpop.f32.mrf.mxu0
      %1113 = vmatprep.mubr.bf16.mxu0 %v1023
      %1114 = vmatmul.mubr.bf16.gmra.mxu0 %v902
      %v1115 = vpop.f32.mrf.mxu0
      %v1116 = vadd.f32 0.0, %v1115
      %v1117 = vpop.f32.mrf.mxu0
      %v1118 = vpop.f32.mrf.mxu0
      %v1119 = vadd.f32 0.0, %v1118
      %v1120 = vpop.f32.mrf.mxu0
      %1121 = vdwg.mxu0
      %v1146 = vunpack.c.l.b16 %v793
      %v1147 = vunpack.c.l.b16 %v794
      %v1148 = vunpack.c.l.b16 %v795
      %v1149 = vunpack.c.l.b16 %v796
      %v1150 = vunpack.c.l.b16 %v797
      %v1151 = vunpack.c.l.b16 %v798
      %v1152 = vunpack.c.l.b16 %v799
      %v1153 = vunpack.c.l.b16 %v800
      %v1154 = vunpack.c.l.b16 %v801
      %v1155 = vunpack.c.l.b16 %v802
      %v1156 = vunpack.c.l.b16 %v803
      %v1157 = vunpack.c.l.b16 %v804
      %v1158 = vunpack.c.l.b16 %v805
      %v1159 = vunpack.c.l.b16 %v806
      %v1160 = vunpack.c.l.b16 %v807
      %v1161 = vunpack.c.l.b16 %v808
      %v1162 = vunpack.c.l.b16 %v809
      %v1163 = vunpack.c.l.b16 %v810
      %v1164 = vunpack.c.l.b16 %v811
      %v1165 = vunpack.c.l.b16 %v812
      %v1166 = vunpack.c.l.b16 %v813
      %v1167 = vunpack.c.l.b16 %v814
      %v1168 = vunpack.c.l.b16 %v815
      %v1169 = vunpack.c.l.b16 %v816
      %v1170 = vpack.c.b16 %v1147, %v1146
      %v1171 = vpack.c.b16 %v1149, %v1148
      %v1172 = vpack.c.b16 %v1151, %v1150
      %v1173 = vpack.c.b16 %v1153, %v1152
      %v1174 = vpack.c.b16 %v1155, %v1154
      %v1175 = vpack.c.b16 %v1157, %v1156
      %v1176 = vpack.c.b16 %v1159, %v1158
      %v1177 = vpack.c.b16 %v1161, %v1160
      %v1178 = vpack.c.b16 %v1163, %v1162
      %v1179 = vpack.c.b16 %v1165, %v1164
      %v1180 = vpack.c.b16 %v1167, %v1166
      %v1181 = vpack.c.b16 %v1169, %v1168
      %v1195 = vsel %vm760, %v728, 0
      %v1198 = vsel %vm760, %v729, 0
      %v1201 = vsel %vm760, %v730, 0
      %v1204 = vsel %vm760, %v731, 0
      %v1207 = vsel %vm760, %v732, 0
      %v1210 = vsel %vm760, %v733, 0
      %v1213 = vsel %vm760, %v734, 0
      %v1216 = vsel %vm760, %v735, 0
      %1218 = vmatprep.subr.bf16.mxu0 0
      %1219 = vmatpush1.bf16.msra.mxu0 %v1177
      %1220 = vmatprep.subr.bf16.mxu0 0
      %1221 = vmatpush1.bf16.msra.mxu0 %v1176
      %1222 = vmatprep.subr.bf16.mxu0 0
      %1223 = vmatpush1.bf16.msra.mxu0 %v1175
      %1224 = vmatprep.subr.bf16.mxu0 0
      %1225 = vmatpush1.bf16.msra.mxu0 %v1174
      %1226 = vmatprep.subr.bf16.mxu0 0
      %1227 = vmatpush1.bf16.msra.mxu0 %v1173
      %1228 = vmatprep.subr.bf16.mxu0 0
      %1229 = vmatpush1.bf16.msra.mxu0 %v1172
      %1230 = vmatprep.subr.bf16.mxu0 0
      %1231 = vmatpush1.bf16.msra.mxu0 %v1171
      %1232 = vmatprep.subr.bf16.mxu0 0
      %1233 = vmatpush1.bf16.msra.mxu0 %v1170
      %1234 = vmatprep.subr.bf16.mxu0 0
      %1235 = vmatpush2.bf16.msra.mxu0 0
      %1236 = vmatprep.subr.bf16.mxu0 0
      %1237 = vmatpush2.bf16.msra.mxu0 0
      %1238 = vmatprep.subr.bf16.mxu0 0
      %1239 = vmatpush2.bf16.msra.mxu0 0
      %1240 = vmatprep.subr.bf16.mxu0 0
      %1241 = vmatpush2.bf16.msra.mxu0 0
      %1242 = vmatprep.subr.bf16.mxu0 0
      %1243 = vmatpush2.bf16.msra.mxu0 %v1181
      %1244 = vmatprep.subr.bf16.mxu0 0
      %1245 = vmatpush2.bf16.msra.mxu0 %v1180
      %1246 = vmatprep.subr.bf16.mxu0 0
      %1247 = vmatpush2.bf16.msra.mxu0 %v1179
      %1248 = vmatprep.subr.bf16.mxu0 0
      %1249 = vmatpush2.bf16.msra.mxu0 %v1178
      %1250 = vmatprep.mubr.bf16.mxu0 %v1195
      %1251 = vmatmul.mubr.bf16.gmra.mxu0 %v763
      %v1252 = vpop.f32.mrf.mxu0
      %v1253 = vadd.f32 %v1060, %v1252
      %v1254 = vpop.f32.mrf.mxu0
      %v1255 = vpop.f32.mrf.mxu0
      %v1256 = vadd.f32 %v1063, %v1255
      %v1257 = vpop.f32.mrf.mxu0
      %1258 = vmatprep.mubr.bf16.mxu0 %v1198
      %1259 = vmatmul.mubr.bf16.gmra.mxu0 %v767
      %v1260 = vpop.f32.mrf.mxu0
      %v1261 = vadd.f32 %v1068, %v1260
      %v1262 = vpop.f32.mrf.mxu0
      %v1263 = vpop.f32.mrf.mxu0
      %v1264 = vadd.f32 %v1071, %v1263
      %v1265 = vpop.f32.mrf.mxu0
      %1266 = vmatprep.mubr.bf16.mxu0 %v1201
      %1267 = vmatmul.mubr.bf16.gmra.mxu0 %v771
      %v1268 = vpop.f32.mrf.mxu0
      %v1269 = vadd.f32 %v1076, %v1268
      %v1270 = vpop.f32.mrf.mxu0
      %v1271 = vpop.f32.mrf.mxu0
      %v1272 = vadd.f32 %v1079, %v1271
      %v1273 = vpop.f32.mrf.mxu0
      %1274 = vmatprep.mubr.bf16.mxu0 %v1204
      %1275 = vmatmul.mubr.bf16.gmra.mxu0 %v775
      %v1276 = vpop.f32.mrf.mxu0
      %v1277 = vadd.f32 %v1084, %v1276
      %v1278 = vpop.f32.mrf.mxu0
      %v1279 = vpop.f32.mrf.mxu0
      %v1280 = vadd.f32 %v1087, %v1279
      %v1281 = vpop.f32.mrf.mxu0
      %1282 = vmatprep.mubr.bf16.mxu0 %v1207
      %1283 = vmatmul.mubr.bf16.gmra.mxu0 %v779
      %v1284 = vpop.f32.mrf.mxu0
      %v1285 = vadd.f32 %v1092, %v1284
      %v1286 = vpop.f32.mrf.mxu0
      %v1287 = vpop.f32.mrf.mxu0
      %v1288 = vadd.f32 %v1095, %v1287
      %v1289 = vpop.f32.mrf.mxu0
      %1290 = vmatprep.mubr.bf16.mxu0 %v1210
      %1291 = vmatmul.mubr.bf16.gmra.mxu0 %v783
      %v1292 = vpop.f32.mrf.mxu0
      %v1293 = vadd.f32 %v1100, %v1292
      %v1294 = vpop.f32.mrf.mxu0
      %v1295 = vpop.f32.mrf.mxu0
      %v1296 = vadd.f32 %v1103, %v1295
      %v1297 = vpop.f32.mrf.mxu0
      %1298 = vmatprep.mubr.bf16.mxu0 %v1213
      %1299 = vmatmul.mubr.bf16.gmra.mxu0 %v787
      %v1300 = vpop.f32.mrf.mxu0
      %v1301 = vadd.f32 %v1108, %v1300
      %v1302 = vpop.f32.mrf.mxu0
      %v1303 = vpop.f32.mrf.mxu0
      %v1304 = vadd.f32 %v1111, %v1303
      %v1305 = vpop.f32.mrf.mxu0
      %1306 = vmatprep.mubr.bf16.mxu0 %v1216
      %1307 = vmatmul.mubr.bf16.gmra.mxu0 %v791
      %v1308 = vpop.f32.mrf.mxu0
      %v1309 = vadd.f32 %v1116, %v1308
      %v1310 = vpop.f32.mrf.mxu0
      %v1311 = vpop.f32.mrf.mxu0
      %v1312 = vadd.f32 %v1119, %v1311
      %v1313 = vpop.f32.mrf.mxu0
      %1314 = vdwg.mxu0
      %v1315 = vrot.slane %v307, 7
      %v1316 = vrot.slane %v308, 7
      %v1317 = vsel %vm566, %v1315, %v1316
      %v1318 = vsel %vm566, %v818, %v1315
      %v1319 = vsel %vm566, %v1316, %v554
      %v1320 = vsel %vm599, %v1319, 0.0
      %v1321 = vsel %vm600, %v577, 0.0
      %v1322 = vsel %vm601, %v576, 0.0
      %v1323 = vsel %vm602, %v575, 0.0
      %v1324 = vsel %vm603, %v574, 0.0
      %v1325 = vsel %vm604, %v573, 0.0
      %v1326 = vsel %vm605, %v572, 0.0
      %v1327 = vsel %vm606, %v571, 0.0
      %v1328 = vsel %vm607, %v570, 0.0
      %v1329 = vsel %vm608, %v569, 0.0
      %v1330 = vsel %vm609, %v568, 0.0
      %v1331 = vsel %vm610, %v567, 0.0
      %v1332 = vsel %vm611, %v820, 0.0
      %v1333 = vsel %vm612, %v819, 0.0
      %v1334 = vsel %vm613, %v1318, 0.0
      %v1335 = vsel %vm614, %v1317, 0.0
      %v1336 = vpack.c.bf16 %v1321, %v1320
      %v1337 = vpack.c.bf16 %v1323, %v1322
      %v1338 = vpack.c.bf16 %v1325, %v1324
      %v1339 = vpack.c.bf16 %v1327, %v1326
      %v1340 = vpack.c.bf16 %v1329, %v1328
      %v1341 = vpack.c.bf16 %v1331, %v1330
      %v1342 = vpack.c.bf16 %v1333, %v1332
      %v1343 = vpack.c.bf16 %v1335, %v1334
      %v1344 = vpack.c.bf16 %v308, %v307
      %v1345 = vrot.slane %v307, 1
      %v1346 = vrot.slane %v308, 1
      %v1347 = vsel %vm663, %v1345, %v1346
      %v1348 = vsel %vm663, %v848, %v1345
      %v1349 = vsel %vm663, %v1346, %v651
      %v1350 = vsel %vm696, %v674, 0.0
      %v1351 = vsel %vm697, %v673, 0.0
      %v1352 = vsel %vm698, %v672, 0.0
      %v1353 = vsel %vm699, %v671, 0.0
      %v1354 = vsel %vm700, %v670, 0.0
      %v1355 = vsel %vm701, %v669, 0.0
      %v1356 = vsel %vm702, %v668, 0.0
      %v1357 = vsel %vm703, %v667, 0.0
      %v1358 = vsel %vm704, %v666, 0.0
      %v1359 = vsel %vm705, %v665, 0.0
      %v1360 = vsel %vm706, %v664, 0.0
      %v1361 = vsel %vm707, %v850, 0.0
      %v1362 = vsel %vm708, %v849, 0.0
      %v1363 = vsel %vm709, %v1348, 0.0
      %v1364 = vsel %vm710, %v1347, 0.0
      %v1365 = vsel %vm711, %v1349, 0.0
      %v1366 = vpack.c.bf16 %v1351, %v1350
      %v1367 = vpack.c.bf16 %v1353, %v1352
      %v1368 = vpack.c.bf16 %v1355, %v1354
      %v1369 = vpack.c.bf16 %v1357, %v1356
      %v1370 = vpack.c.bf16 %v1359, %v1358
      %v1371 = vpack.c.bf16 %v1361, %v1360
      %v1372 = vpack.c.bf16 %v1363, %v1362
      %v1373 = vpack.c.bf16 %v1365, %v1364
      %1375 = vrot.lane.b32.xlu0 %v1344, 64
      %v1376 = vpop.permute.xlu0 %1375
      %v1378 = vsel %vm760, %v1336, %v749
      %v1381 = vsel %vm760, %v1337, %v751
      %v1384 = vsel %vm760, %v1338, %v753
      %v1387 = vsel %vm760, %v1339, %v755
      %v1390 = vsel %vm760, %v1340, %v757
      %v1393 = vsel %vm760, %v1341, %v759
      %v1396 = vsel %vm760, %v1342, %v878
      %v1400 = vsel %vm760, %v1343, %v1376
      %s1402 = scalar_lea.vmem %s2, 192
      %v1403 = vld [vmem:[%s1402] sm:$0xf]
      %v1404 = vld [vmem:[%s1402 + $0x4] sm:$0xf]
      %v1405 = vld [vmem:[%s1402 + $0x8] sm:$0xf]
      %v1406 = vld [vmem:[%s1402 + $0xc] sm:$0xf]
      %v1407 = vld [vmem:[%s1402 + $0x10] sm:$0xf]
      %v1408 = vld [vmem:[%s1402 + $0x14] sm:$0xf]
      %v1409 = vld [vmem:[%s1402 + $0x18] sm:$0xf]
      %v1410 = vld [vmem:[%s1402 + $0x1c] sm:$0xf]
      %v1411 = vld [vmem:[%s1402 + $0x20] sm:$0xf]
      %v1412 = vld [vmem:[%s1402 + $0x24] sm:$0xf]
      %v1413 = vld [vmem:[%s1402 + $0x28] sm:$0xf]
      %v1414 = vld [vmem:[%s1402 + $0x2c] sm:$0xf]
      %v1415 = vld [vmem:[%s1402 + $0x30] sm:$0xf]
      %v1416 = vld [vmem:[%s1402 + $0x34] sm:$0xf]
      %v1417 = vld [vmem:[%s1402 + $0x38] sm:$0xf]
      %v1418 = vld [vmem:[%s1402 + $0x3c] sm:$0xf]
      %v1419 = vld [vmem:[%s1402 + $0x40] sm:$0xf]
      %v1420 = vld [vmem:[%s1402 + $0x44] sm:$0xf]
      %v1421 = vld [vmem:[%s1402 + $0x48] sm:$0xf]
      %v1422 = vld [vmem:[%s1402 + $0x4c] sm:$0xf]
      %v1423 = vld [vmem:[%s1402 + $0x50] sm:$0xf]
      %v1424 = vld [vmem:[%s1402 + $0x54] sm:$0xf]
      %v1425 = vld [vmem:[%s1402 + $0x58] sm:$0xf]
      %v1426 = vld [vmem:[%s1402 + $0x5c] sm:$0xf]
      %v1451 = vunpack.c.l.b16 %v1403
      %v1452 = vunpack.c.l.b16 %v1404
      %v1453 = vunpack.c.l.b16 %v1405
      %v1454 = vunpack.c.l.b16 %v1406
      %v1455 = vunpack.c.l.b16 %v1407
      %v1456 = vunpack.c.l.b16 %v1408
      %v1457 = vunpack.c.l.b16 %v1409
      %v1458 = vunpack.c.l.b16 %v1410
      %v1459 = vunpack.c.l.b16 %v1411
      %v1460 = vunpack.c.l.b16 %v1412
      %v1461 = vunpack.c.l.b16 %v1413
      %v1462 = vunpack.c.l.b16 %v1414
      %v1463 = vunpack.c.l.b16 %v1415
      %v1464 = vunpack.c.l.b16 %v1416
      %v1465 = vunpack.c.l.b16 %v1417
      %v1466 = vunpack.c.l.b16 %v1418
      %v1467 = vunpack.c.l.b16 %v1419
      %v1468 = vunpack.c.l.b16 %v1420
      %v1469 = vunpack.c.l.b16 %v1421
      %v1470 = vunpack.c.l.b16 %v1422
      %v1471 = vunpack.c.l.b16 %v1423
      %v1472 = vunpack.c.l.b16 %v1424
      %v1473 = vunpack.c.l.b16 %v1425
      %v1474 = vunpack.c.l.b16 %v1426
      %v1475 = vpack.c.b16 %v1452, %v1451
      %v1476 = vpack.c.b16 %v1454, %v1453
      %v1477 = vpack.c.b16 %v1456, %v1455
      %v1478 = vpack.c.b16 %v1458, %v1457
      %v1479 = vpack.c.b16 %v1460, %v1459
      %v1480 = vpack.c.b16 %v1462, %v1461
      %v1481 = vpack.c.b16 %v1464, %v1463
      %v1482 = vpack.c.b16 %v1466, %v1465
      %v1483 = vpack.c.b16 %v1468, %v1467
      %v1484 = vpack.c.b16 %v1470, %v1469
      %v1485 = vpack.c.b16 %v1472, %v1471
      %v1486 = vpack.c.b16 %v1474, %v1473
      %v1500 = vsel %vm760, %v1366, 0
      %v1503 = vsel %vm760, %v1367, 0
      %v1506 = vsel %vm760, %v1368, 0
      %v1509 = vsel %vm760, %v1369, 0
      %v1512 = vsel %vm760, %v1370, 0
      %v1515 = vsel %vm760, %v1371, 0
      %v1518 = vsel %vm760, %v1372, 0
      %v1521 = vsel %vm760, %v1373, 0
      %1523 = vmatprep.subr.bf16.mxu0 0
      %1524 = vmatpush1.bf16.msra.mxu0 %v1482
      %1525 = vmatprep.subr.bf16.mxu0 0
      %1526 = vmatpush1.bf16.msra.mxu0 %v1481
      %1527 = vmatprep.subr.bf16.mxu0 0
      %1528 = vmatpush1.bf16.msra.mxu0 %v1480
      %1529 = vmatprep.subr.bf16.mxu0 0
      %1530 = vmatpush1.bf16.msra.mxu0 %v1479
      %1531 = vmatprep.subr.bf16.mxu0 0
      %1532 = vmatpush1.bf16.msra.mxu0 %v1478
      %1533 = vmatprep.subr.bf16.mxu0 0
      %1534 = vmatpush1.bf16.msra.mxu0 %v1477
      %1535 = vmatprep.subr.bf16.mxu0 0
      %1536 = vmatpush1.bf16.msra.mxu0 %v1476
      %1537 = vmatprep.subr.bf16.mxu0 0
      %1538 = vmatpush1.bf16.msra.mxu0 %v1475
      %1539 = vmatprep.subr.bf16.mxu0 0
      %1540 = vmatpush2.bf16.msra.mxu0 0
      %1541 = vmatprep.subr.bf16.mxu0 0
      %1542 = vmatpush2.bf16.msra.mxu0 0
      %1543 = vmatprep.subr.bf16.mxu0 0
      %1544 = vmatpush2.bf16.msra.mxu0 0
      %1545 = vmatprep.subr.bf16.mxu0 0
      %1546 = vmatpush2.bf16.msra.mxu0 0
      %1547 = vmatprep.subr.bf16.mxu0 0
      %1548 = vmatpush2.bf16.msra.mxu0 %v1486
      %1549 = vmatprep.subr.bf16.mxu0 0
      %1550 = vmatpush2.bf16.msra.mxu0 %v1485
      %1551 = vmatprep.subr.bf16.mxu0 0
      %1552 = vmatpush2.bf16.msra.mxu0 %v1484
      %1553 = vmatprep.subr.bf16.mxu0 0
      %1554 = vmatpush2.bf16.msra.mxu0 %v1483
      %1555 = vmatprep.mubr.bf16.mxu0 %v1500
      %1556 = vmatmul.mubr.bf16.gmra.mxu0 %v1378
      %v1557 = vpop.f32.mrf.mxu0
      %v1558 = vadd.f32 0.0, %v1557
      %v1559 = vpop.f32.mrf.mxu0
      %v1560 = vpop.f32.mrf.mxu0
      %v1561 = vadd.f32 0.0, %v1560
      %v1562 = vpop.f32.mrf.mxu0
      %1563 = vmatprep.mubr.bf16.mxu0 %v1503
      %1564 = vmatmul.mubr.bf16.gmra.mxu0 %v1381
      %v1565 = vpop.f32.mrf.mxu0
      %v1566 = vadd.f32 0.0, %v1565
      %v1567 = vpop.f32.mrf.mxu0
      %v1568 = vpop.f32.mrf.mxu0
      %v1569 = vadd.f32 0.0, %v1568
      %v1570 = vpop.f32.mrf.mxu0
      %1571 = vmatprep.mubr.bf16.mxu0 %v1506
      %1572 = vmatmul.mubr.bf16.gmra.mxu0 %v1384
      %v1573 = vpop.f32.mrf.mxu0
      %v1574 = vadd.f32 0.0, %v1573
      %v1575 = vpop.f32.mrf.mxu0
      %v1576 = vpop.f32.mrf.mxu0
      %v1577 = vadd.f32 0.0, %v1576
      %v1578 = vpop.f32.mrf.mxu0
      %1579 = vmatprep.mubr.bf16.mxu0 %v1509
      %1580 = vmatmul.mubr.bf16.gmra.mxu0 %v1387
      %v1581 = vpop.f32.mrf.mxu0
      %v1582 = vadd.f32 0.0, %v1581
      %v1583 = vpop.f32.mrf.mxu0
      %v1584 = vpop.f32.mrf.mxu0
      %v1585 = vadd.f32 0.0, %v1584
      %v1586 = vpop.f32.mrf.mxu0
      %1587 = vmatprep.mubr.bf16.mxu0 %v1512
      %1588 = vmatmul.mubr.bf16.gmra.mxu0 %v1390
      %v1589 = vpop.f32.mrf.mxu0
      %v1590 = vadd.f32 0.0, %v1589
      %v1591 = vpop.f32.mrf.mxu0
      %v1592 = vpop.f32.mrf.mxu0
      %v1593 = vadd.f32 0.0, %v1592
      %v1594 = vpop.f32.mrf.mxu0
      %1595 = vmatprep.mubr.bf16.mxu0 %v1515
      %1596 = vmatmul.mubr.bf16.gmra.mxu0 %v1393
      %v1597 = vpop.f32.mrf.mxu0
      %v1598 = vadd.f32 0.0, %v1597
      %v1599 = vpop.f32.mrf.mxu0
      %v1600 = vpop.f32.mrf.mxu0
      %v1601 = vadd.f32 0.0, %v1600
      %v1602 = vpop.f32.mrf.mxu0
      %1603 = vmatprep.mubr.bf16.mxu0 %v1518
      %1604 = vmatmul.mubr.bf16.gmra.mxu0 %v1396
      %v1605 = vpop.f32.mrf.mxu0
      %v1606 = vadd.f32 0.0, %v1605
      %v1607 = vpop.f32.mrf.mxu0
      %v1608 = vpop.f32.mrf.mxu0
      %v1609 = vadd.f32 0.0, %v1608
      %v1610 = vpop.f32.mrf.mxu0
      %1611 = vmatprep.mubr.bf16.mxu0 %v1521
      %1612 = vmatmul.mubr.bf16.gmra.mxu0 %v1400
      %v1613 = vpop.f32.mrf.mxu0
      %v1614 = vadd.f32 0.0, %v1613
      %v1615 = vpop.f32.mrf.mxu0
      %v1616 = vpop.f32.mrf.mxu0
      %v1617 = vadd.f32 0.0, %v1616
      %v1618 = vpop.f32.mrf.mxu0
      %1619 = vdwg.mxu0
      %v1620 = vadd.f32 %v1253, %v1558
      %v1621 = vadd.f32 %v1256, %v1561
      %v1622 = vadd.f32 %v1261, %v1566
      %v1623 = vadd.f32 %v1264, %v1569
      %v1624 = vadd.f32 %v1269, %v1574
      %v1625 = vadd.f32 %v1272, %v1577
      %v1626 = vadd.f32 %v1277, %v1582
      %v1627 = vadd.f32 %v1280, %v1585
      %v1628 = vadd.f32 %v1285, %v1590
      %v1629 = vadd.f32 %v1288, %v1593
      %v1630 = vadd.f32 %v1293, %v1598
      %v1631 = vadd.f32 %v1296, %v1601
      %v1632 = vadd.f32 %v1301, %v1606
      %v1633 = vadd.f32 %v1304, %v1609
      %v1634 = vadd.f32 %v1309, %v1614
      %v1635 = vadd.f32 %v1312, %v1617
      %1636 = vst.msk [vmem:[%s282] sm:$0xff] %vm760, %v1620
      %1637 = vst.msk [vmem:[%s282 + $0x8] sm:$0xff] %vm760, %v1621
      %1638 = vst.msk [vmem:[%s282 + $0x10] sm:$0xff] %vm760, %v1622
      %1639 = vst.msk [vmem:[%s282 + $0x18] sm:$0xff] %vm760, %v1623
      %1640 = vst.msk [vmem:[%s282 + $0x20] sm:$0xff] %vm760, %v1624
      %1641 = vst.msk [vmem:[%s282 + $0x28] sm:$0xff] %vm760, %v1625
      %1642 = vst.msk [vmem:[%s282 + $0x30] sm:$0xff] %vm760, %v1626
      %1643 = vst.msk [vmem:[%s282 + $0x38] sm:$0xff] %vm760, %v1627
      %1644 = vst.msk [vmem:[%s282 + $0x40] sm:$0xff] %vm760, %v1628
      %1645 = vst.msk [vmem:[%s282 + $0x48] sm:$0xff] %vm760, %v1629
      %1646 = vst.msk [vmem:[%s282 + $0x50] sm:$0xff] %vm760, %v1630
      %1647 = vst.msk [vmem:[%s282 + $0x58] sm:$0xff] %vm760, %v1631
      %1648 = vst.msk [vmem:[%s282 + $0x60] sm:$0xff] %vm760, %v1632
      %1649 = vst.msk [vmem:[%s282 + $0x68] sm:$0xff] %vm760, %v1633
      %1650 = vst.msk [vmem:[%s282 + $0x70] sm:$0xff] %vm760, %v1634
      %1651 = vst.msk [vmem:[%s282 + $0x78] sm:$0xff] %vm760, %v1635
      %v1652 = vmul.f32 %v1620, %v1620
      %v1653 = vmul.f32 %v1621, %v1621
      %v1654 = vmul.f32 %v1622, %v1622
      %v1655 = vmul.f32 %v1623, %v1623
      %v1656 = vmul.f32 %v1624, %v1624
      %v1657 = vmul.f32 %v1625, %v1625
      %v1658 = vmul.f32 %v1626, %v1626
      %v1659 = vmul.f32 %v1627, %v1627
      %v1660 = vmul.f32 %v1628, %v1628
      %v1661 = vmul.f32 %v1629, %v1629
      %v1662 = vmul.f32 %v1630, %v1630
      %v1663 = vmul.f32 %v1631, %v1631
      %v1664 = vmul.f32 %v1632, %v1632
      %v1665 = vmul.f32 %v1633, %v1633
      %v1666 = vmul.f32 %v1634, %v1634
      %v1667 = vmul.f32 %v1635, %v1635
      %1684 = vrot.lane.b32.xlu0 %v1652, 64
      %v1685 = vpop.permute.xlu0 %1684
      %1686 = vrot.lane.b32.xlu0 %v1653, 64
      %v1687 = vpop.permute.xlu0 %1686
      %1688 = vrot.lane.b32.xlu0 %v1654, 64
      %v1689 = vpop.permute.xlu0 %1688
      %1690 = vrot.lane.b32.xlu0 %v1655, 64
      %v1691 = vpop.permute.xlu0 %1690
      %1692 = vrot.lane.b32.xlu0 %v1656, 64
      %v1693 = vpop.permute.xlu0 %1692
      %1694 = vrot.lane.b32.xlu0 %v1657, 64
      %v1695 = vpop.permute.xlu0 %1694
      %1696 = vrot.lane.b32.xlu0 %v1658, 64
      %v1697 = vpop.permute.xlu0 %1696
      %1698 = vrot.lane.b32.xlu0 %v1659, 64
      %v1699 = vpop.permute.xlu0 %1698
      %1700 = vrot.lane.b32.xlu0 %v1660, 64
      %v1701 = vpop.permute.xlu0 %1700
      %1702 = vrot.lane.b32.xlu0 %v1661, 64
      %v1703 = vpop.permute.xlu0 %1702
      %1704 = vrot.lane.b32.xlu0 %v1662, 64
      %v1705 = vpop.permute.xlu0 %1704
      %1706 = vrot.lane.b32.xlu0 %v1663, 64
      %v1707 = vpop.permute.xlu0 %1706
      %1708 = vrot.lane.b32.xlu0 %v1664, 64
      %v1709 = vpop.permute.xlu0 %1708
      %1710 = vrot.lane.b32.xlu0 %v1665, 64
      %v1711 = vpop.permute.xlu0 %1710
      %1712 = vrot.lane.b32.xlu0 %v1666, 64
      %v1713 = vpop.permute.xlu0 %1712
      %1714 = vrot.lane.b32.xlu0 %v1667, 64
      %v1715 = vpop.permute.xlu0 %1714
      %v1732 = vsel %vm760, %v1620, %v1685
      %v1733 = vsel %vm760, %v1621, %v1687
      %v1734 = vsel %vm760, %v1622, %v1689
      %v1735 = vsel %vm760, %v1623, %v1691
      %v1736 = vsel %vm760, %v1624, %v1693
      %v1737 = vsel %vm760, %v1625, %v1695
      %v1738 = vsel %vm760, %v1626, %v1697
      %v1739 = vsel %vm760, %v1627, %v1699
      %v1740 = vsel %vm760, %v1628, %v1701
      %v1741 = vsel %vm760, %v1629, %v1703
      %v1742 = vsel %vm760, %v1630, %v1705
      %v1743 = vsel %vm760, %v1631, %v1707
      %v1744 = vsel %vm760, %v1632, %v1709
      %v1745 = vsel %vm760, %v1633, %v1711
      %v1746 = vsel %vm760, %v1634, %v1713
      %v1747 = vsel %vm760, %v1635, %v1715
      %1748 = vmatprep.subr.mxu0 0.0
      %1749 = vmatpush1.msra.mxu0 %v1747
      %1750 = vmatprep.subr.mxu0 0.0
      %1751 = vmatpush1.msra.mxu0 %v1746
      %1752 = vmatprep.subr.mxu0 0.0
      %1753 = vmatpush1.msra.mxu0 %v1745
      %1754 = vmatprep.subr.mxu0 0.0
      %1755 = vmatpush1.msra.mxu0 %v1744
      %1756 = vmatprep.subr.mxu0 0.0
      %1757 = vmatpush1.msra.mxu0 %v1743
      %1758 = vmatprep.subr.mxu0 0.0
      %1759 = vmatpush1.msra.mxu0 %v1742
      %1760 = vmatprep.subr.mxu0 0.0
      %1761 = vmatpush1.msra.mxu0 %v1741
      %1762 = vmatprep.subr.mxu0 0.0
      %1763 = vmatpush1.msra.mxu0 %v1740
      %1764 = vmatprep.subr.mxu0 0.0
      %1765 = vmatpush1.msra.mxu0 %v1739
      %1766 = vmatprep.subr.mxu0 0.0
      %1767 = vmatpush1.msra.mxu0 %v1738
      %1768 = vmatprep.subr.mxu0 0.0
      %1769 = vmatpush1.msra.mxu0 %v1737
      %1770 = vmatprep.subr.mxu0 0.0
      %1771 = vmatpush1.msra.mxu0 %v1736
      %1772 = vmatprep.subr.mxu0 0.0
      %1773 = vmatpush1.msra.mxu0 %v1735
      %1774 = vmatprep.subr.mxu0 0.0
      %1775 = vmatpush1.msra.mxu0 %v1734
      %1776 = vmatprep.subr.mxu0 0.0
      %1777 = vmatpush1.msra.mxu0 %v1733
      %1778 = vmatprep.subr.mxu0 0.0
      %1779 = vmatpush1.msra.mxu0 %v1732
      %1780 = vmatprep.subr.mxu0 0.0
      %1781 = vmatpush2.msra.mxu0 0.0
      %1782 = vmatprep.subr.mxu0 0.0
      %1783 = vmatpush2.msra.mxu0 0.0
      %1784 = vmatprep.subr.mxu0 0.0
      %1785 = vmatpush2.msra.mxu0 0.0
      %1786 = vmatprep.subr.mxu0 0.0
      %1787 = vmatpush2.msra.mxu0 0.0
      %1788 = vmatprep.subr.mxu0 0.0
      %1789 = vmatpush2.msra.mxu0 0.0
      %1790 = vmatprep.subr.mxu0 0.0
      %1791 = vmatpush2.msra.mxu0 0.0
      %1792 = vmatprep.subr.mxu0 0.0
      %1793 = vmatpush2.msra.mxu0 0.0
      %1794 = vmatprep.subr.mxu0 0.0
      %1795 = vmatpush2.msra.mxu0 0.0
      %1796 = vmatprep.subr.mxu0 0.0
      %1797 = vmatpush2.msra.mxu0 0.0
      %1798 = vmatprep.subr.mxu0 0.0
      %1799 = vmatpush2.msra.mxu0 0.0
      %1800 = vmatprep.subr.mxu0 0.0
      %1801 = vmatpush2.msra.mxu0 0.0
      %1802 = vmatprep.subr.mxu0 0.0
      %1803 = vmatpush2.msra.mxu0 0.0
      %1804 = vmatprep.subr.mxu0 0.0
      %1805 = vmatpush2.msra.mxu0 0.0
      %1806 = vmatprep.subr.mxu0 0.0
      %1807 = vmatpush2.msra.mxu0 0.0
      %1808 = vmatprep.subr.mxu0 0.0
      %1809 = vmatpush2.msra.mxu0 0.0
      %1810 = vmatprep.subr.mxu0 0.0
      %1811 = vmatpush2.msra.mxu0 0.0
      %1812 = vmatprep.mubr.f32.mxu0 0.0
      %1813 = vmatmul.mubr.f32.gmra.mxu0 1.0
      %v1814 = vpop.f32.mrf.mxu0
      %v1815 = vadd.f32 0.0, %v1814
      %v1816 = vpop.f32.mrf.mxu0
      %1817 = vdwg.mxu0
      %1818 = vst [vmem:[%s287] sm:$0xff] %v1815
      %s1819 = smul.u32 16, %s18
      %p1820 = scmp.lt.s32.totalorder %s1819, 63
      %s1821 = scalar_select %p1820, %s1819, 63
      %s1822 = smul.addr %s1821, 8
      %s1823 = scalar_lea.vmem %s5, %s1822
      %p1824 = scmp.lt.s32.totalorder %s18, 3
      %s1825 = scalar_select %p1824, %s18, 3
      %s1826 = smul.addr %s1825, 8
      %s1827 = scalar_lea.vmem %s6, %s1826
      // Predicated region
      $region41: #{resudial_block.3} parent=39 // pred_check
        %p1828 = pneg %p151
      $region42: #{resudial_block.3} parent=39 // pred_check_branch
        %1830 = sbr.rel (%p1828) target = $region44
      $region43: #{resudial_block.3} parent=39 // pred_region
        %s1831 = smul.u32 16, %s18
      $region44: #{resudial_block.3} parent=39 // pred_fallthru
        _
      // Predicated region
      $region45: #{resudial_block.3} parent=39 // pred_check
        %p1832 = pneg %p177
      $region46: #{resudial_block.3} parent=39 // pred_check_branch
        %1834 = sbr.rel (%p1832) target = $region48
      $region47: #{resudial_block.3} parent=39 // pred_region
        _
      $region48: #{resudial_block.3} parent=39 // pred_fallthru
        _
    $region40: #{resudial_block.3} parent=5 // pred_fallthru
      _
    %p1835 = scmp.le.s32.totalorder 2, %s13
    // Predicated region
    $region49: #{resudial_block.3} parent=5 // pred_check
      %p1836 = pneg %p1835
    $region50: #{resudial_block.3} parent=5 // pred_check_branch
      %1838 = sbr.rel (%p1836) target = $region52
    $region51: #{resudial_block.3} parent=5 // pred_region
      %s1839 = ssub.s32 %s13, 2
      // Predicated region
      $region53: #{resudial_block.3} parent=51 // pred_check
        %p1840 = pneg %p157
      $region54: #{resudial_block.3} parent=51 // pred_check_branch
        %1842 = sbr.rel (%p1840) target = $region56
      $region55: #{resudial_block.3} parent=51 // pred_region
        %s1843 = smul.u32 16, %s19
        %p1844 = scmp.lt.s32.totalorder %s1843, 63
        %s1845 = scalar_select %p1844, %s1843, 63
        %s1846 = smul.addr %s1845, 8
        %s1847 = scalar_lea.vmem %s5, %s1846
      $region56: #{resudial_block.3} parent=51 // pred_fallthru
        _
      // Predicated region
      $region57: #{resudial_block.3} parent=51 // pred_check
        %p1848 = pneg %p183
      $region58: #{resudial_block.3} parent=51 // pred_check_branch
        %1850 = sbr.rel (%p1848) target = $region60
      $region59: #{resudial_block.3} parent=51 // pred_region
        %p1851 = scmp.lt.s32.totalorder %s19, 3
        %s1852 = scalar_select %p1851, %s19, 3
        %s1853 = smul.addr %s1852, 8
        %s1854 = scalar_lea.vmem %s6, %s1853
      $region60: #{resudial_block.3} parent=51 // pred_fallthru
        _
    $region52: #{resudial_block.3} parent=5 // pred_fallthru
      _
  $region6: #{resudial_block.3} parent=0 // loop_footer
    %s17 = sadd.s32 1, %s13
  $region7: #{resudial_block.3} parent=0 // loop_footer_branch
    %12 = sbr.rel target = $region3
  $region8: #{resudial_block.3} parent=0 // loop_exit
    _

</llo_original>
